<compile_context>
chip_gen: v7x
topology: tpu7x:2x2x1
jax: 0.10.0
libtpu: 0.0.40
codegen_flags: <defaults>
</compile_context>

<pallas_src>
import functools

import jax
import jax.numpy as jnp
from jax import lax
from jax.experimental import pallas as pl
from jax.experimental.pallas import tpu as pltpu

NEG_SLOPE = 0.2
BN_EPS = 1e-5


# ---------------------------------------------------------------------------
# Kernel 1: fused 3x3x3 conv + bias + (optional) LeakyReLU
# ---------------------------------------------------------------------------
def _conv3d_kernel(x_ref, w_ref, b_ref, o_ref, acc_ref, *, H, W, slope):
    kd = pl.program_id(2)
    cin = x_ref.shape[-1]

    @pl.when(kd == 0)
    def _init():
        acc_ref[...] = jnp.zeros_like(acc_ref)

    xs = x_ref[0, 0]                                   # (H+2, W+2, Cin)
    acc = acc_ref[...]                                 # (H*W, Cout) f32
    for kh in range(3):
        for kw in range(3):
            win = xs[kh:kh + H, kw:kw + W, :].reshape(H * W, cin)
            wk = w_ref[0, kh * 3 + kw]                 # (Cin, Cout)
            if cin >= 8:
                acc = acc + jnp.dot(win, wk, preferred_element_type=jnp.float32)
            else:
                # tiny input-channel counts (branch convs): VPU broadcast-MACs
                # instead of a degenerate K<8 MXU matmul.
                for ci in range(cin):
                    acc = acc + win[:, ci:ci + 1] * wk[ci:ci + 1, :]
    acc_ref[...] = acc

    @pl.when(kd == pl.num_programs(2) - 1)
    def _finalize():
        y = acc_ref[...] + b_ref[...]
        if slope is not None:
            y = jnp.where(y >= 0.0, y, y * slope)
        o_ref[0, 0] = y.astype(o_ref.dtype)


@functools.partial(jax.jit, static_argnames=("slope",))
def conv3d_3x3x3(x, weight, bias, slope=None):
    """x: (N, D, H, W, Cin) f32; weight: (3,3,3,Cin,Cout); bias: (Cout,)."""
    N, D, H, W, Cin = x.shape
    Cout = weight.shape[-1]
    xp = jnp.pad(x, ((0, 0), (1, 1), (1, 1), (1, 1), (0, 0)))
    wr = weight.reshape(3, 9, Cin, Cout)
    br = bias.reshape(1, Cout).astype(jnp.float32)

    out = pl.pallas_call(
        functools.partial(_conv3d_kernel, H=H, W=W, slope=slope),
        out_shape=jax.ShapeDtypeStruct((N, D, H * W, Cout), jnp.float32),
        grid=(N, D, 3),
        in_specs=[
            pl.BlockSpec((1, 1, H + 2, W + 2, Cin),
                         lambda n, d, kd: (n, d + kd, 0, 0, 0)),
            pl.BlockSpec((1, 9, Cin, Cout), lambda n, d, kd: (kd, 0, 0, 0)),
            pl.BlockSpec((1, Cout), lambda n, d, kd: (0, 0)),
        ],
        out_specs=pl.BlockSpec((1, 1, H * W, Cout), lambda n, d, kd: (n, d, 0, 0)),
        scratch_shapes=[pltpu.VMEM((H * W, Cout), jnp.float32)],
        compiler_params=pltpu.CompilerParams(
            dimension_semantics=("parallel", "parallel", "arbitrary")),
    )(xp, wr, br)
    return out.reshape(N, D, H, W, Cout)


# ---------------------------------------------------------------------------
# Kernel 2: MaxPool3d(kernel=2, stride=2)
# ---------------------------------------------------------------------------
def _maxpool_kernel(x_ref, o_ref):
    m = jnp.maximum(x_ref[0], x_ref[1])                # depth pair -> (Hh,2,Wh,2,C)
    m = jnp.maximum(m[:, 0], m[:, 1])                  # height pair -> (Hh,Wh,2,C)
    m = jnp.maximum(m[:, :, 0, :], m[:, :, 1, :])      # width pair  -> (Hh,Wh,C)
    o_ref[0] = m


@jax.jit
def maxpool3d_2x2x2(x):
    N, D, H, W, C = x.shape
    Dh, Hh, Wh = D // 2, H // 2, W // 2
    xr = x.reshape(N * D, Hh, 2, Wh, 2, C)
    out = pl.pallas_call(
        _maxpool_kernel,
        out_shape=jax.ShapeDtypeStruct((N * Dh, Hh, Wh, C), x.dtype),
        grid=(N * Dh,),
        in_specs=[pl.BlockSpec((2, Hh, 2, Wh, 2, C),
                               lambda i: (i, 0, 0, 0, 0, 0))],
        out_specs=pl.BlockSpec((1, Hh, Wh, C), lambda i: (i, 0, 0, 0)),
        compiler_params=pltpu.CompilerParams(dimension_semantics=("parallel",)),
    )(xr)
    return out.reshape(N, Dh, Hh, Wh, C)


# ---------------------------------------------------------------------------
# Kernel 3: Linear (+ optional LeakyReLU), K-tiled with a VMEM accumulator
# ---------------------------------------------------------------------------
def _linear_kernel(x_ref, w_ref, b_ref, o_ref, acc_ref, *, slope):
    k = pl.program_id(0)

    @pl.when(k == 0)
    def _init():
        acc_ref[...] = jnp.zeros_like(acc_ref)

    acc_ref[...] += jnp.dot(x_ref[...], w_ref[...],
                            preferred_element_type=jnp.float32)

    @pl.when(k == pl.num_programs(0) - 1)
    def _finalize():
        y = acc_ref[...] + b_ref[...]
        if slope is not None:
            y = jnp.where(y >= 0.0, y, y * slope)
        o_ref[...] = y.astype(o_ref.dtype)


@functools.partial(jax.jit, static_argnames=("slope",))
def linear(x, weight, bias, slope=None):
    """x: (B, K); weight: (K, O); bias: (O,)."""
    B, K = x.shape
    out_dim = weight.shape[-1]
    TK = 512
    Bp = ((B + 7) // 8) * 8
    Kp = ((K + TK - 1) // TK) * TK
    xp = jnp.pad(x, ((0, Bp - B), (0, Kp - K)))
    wp = jnp.pad(weight, ((0, Kp - K), (0, 0)))

    out = pl.pallas_call(
        functools.partial(_linear_kernel, slope=slope),
        out_shape=jax.ShapeDtypeStruct((Bp, out_dim), jnp.float32),
        grid=(Kp // TK,),
        in_specs=[
            pl.BlockSpec((Bp, TK), lambda k: (0, k)),
            pl.BlockSpec((TK, out_dim), lambda k: (k, 0)),
            pl.BlockSpec((1, out_dim), lambda k: (0, 0)),
        ],
        out_specs=pl.BlockSpec((Bp, out_dim), lambda k: (0, 0)),
        scratch_shapes=[pltpu.VMEM((Bp, out_dim), jnp.float32)],
        compiler_params=pltpu.CompilerParams(dimension_semantics=("arbitrary",)),
    )(xp, wp, bias.reshape(1, out_dim))
    return out[:B]


# ---------------------------------------------------------------------------
# Parameters
# ---------------------------------------------------------------------------
def _init_conv(key, cin, cout):
    kw, kb = jax.random.split(key)
    w = jax.random.normal(kw, (3, 3, 3, cin, cout), jnp.float32) * (27.0 * cin) ** -0.5
    b = 0.05 * jax.random.normal(kb, (cout,), jnp.float32)
    return w, b


def _init_bn(key, c):
    kg, kb, km, kv = jax.random.split(key, 4)
    gamma = 1.0 + 0.1 * jax.random.normal(kg, (c,), jnp.float32)
    beta = 0.1 * jax.random.normal(kb, (c,), jnp.float32)
    mean = 0.1 * jax.random.normal(km, (c,), jnp.float32)
    var = 1.0 + 0.1 * jax.random.uniform(kv, (c,), jnp.float32)
    return gamma, beta, mean, var


def _init_linear(key, fin, fout):
    kw, kb = jax.random.split(key)
    w = jax.random.normal(kw, (fin, fout), jnp.float32) * float(fin) ** -0.5
    b = 0.05 * jax.random.normal(kb, (fout,), jnp.float32)
    return w, b


def _init_res_block(key, cin, cout):
    # conv_2_1 / batch_2_2 / conv_3_1 / batch_3_2 exist in the PyTorch module but
    # are never used in its forward(), so they are omitted here.
    k1, k2, k3, k4 = jax.random.split(key, 4)
    return {"conv1": _init_conv(k1, cin, cout), "bn1": _init_bn(k2, cout),
            "conv2": _init_conv(k3, cout, cout), "bn2": _init_bn(k4, cout)}


def init_params(key, spatial):
    keys = iter(jax.random.split(key, 32))
    branch_chs = [(1, 2), (2, 4), (4, 8)]
    branches = [[_init_conv(next(keys), ci, co) for ci, co in branch_chs]
                for _ in range(3)]
    res_stages = [[_init_res_block(next(keys), c, c) for _ in range(3)]
                  for c in (8, 24, 72, 216)]
    feat = 3 * 648 * (spatial // 32) ** 3
    fcs = [_init_linear(next(keys), feat, 1300),
           _init_linear(next(keys), 1300, 500),
           _init_linear(next(keys), 500, 2)]
    return {"branches": branches, "res": res_stages, "fc": fcs}


def _fold_bn(weight, bias, bn):
    gamma, beta, mean, var = bn
    scale = gamma * lax.rsqrt(var + BN_EPS)
    return weight * scale, (bias - mean) * scale + beta


# ---------------------------------------------------------------------------
# Forward (shared structure; Pallas primitives vs pure-JAX reference)
# ---------------------------------------------------------------------------
def _forward(params, x1, x2, x3, conv_fn, pool_fn, linear_fn):
    def branch(bp, x):
        for (w, b) in bp:
            x = conv_fn(x, w, b, bn=None, slope=None)
        return pool_fn(x)

    def res_block(rp, a, b_, c):
        y = conv_fn(a, *rp["conv1"], bn=rp["bn1"], slope=NEG_SLOPE)
        y = conv_fn(y, *rp["conv2"], bn=rp["bn2"], slope=NEG_SLOPE)
        return jnp.concatenate([y, b_, c], axis=-1)

    x1o = branch(params["branches"][0], x1)
    x2o = branch(params["branches"][1], x2)
    x3o = branch(params["branches"][2], x3)
    for stage in params["res"]:
        y1 = res_block(stage[0], x1o, x2o, x3o)
        y2 = res_block(stage[1], x2o, x1o, x3o)
        y3 = res_block(stage[2], x3o, x1o, x2o)
        x1o, x2o, x3o = pool_fn(y1), pool_fn(y2), pool_fn(y3)
    x = jnp.concatenate([x1o, x2o, x3o], axis=-1)
    x = x.reshape(x.shape[0], -1)       # Flatten; Dropout(0.5) == identity (eval)
    (w1, b1), (w2, b2), (w3, b3) = params["fc"]
    x = linear_fn(x, w1, b1, slope=NEG_SLOPE)
    x = linear_fn(x, w2, b2, slope=NEG_SLOPE)
    return linear_fn(x, w3, b3, slope=None)


# --- Pallas primitives ---
def _conv_pallas(x, weight, bias, bn=None, slope=None):
    if bn is not None:
        weight, bias = _fold_bn(weight, bias, bn)
    return conv3d_3x3x3(x, weight, bias, slope=slope)


def _linear_pallas(x, w, b, slope=None):
    return linear(x, w, b, slope=slope)


def multimodal_three_pallas(params, x1, x2, x3):
    return _forward(params, x1, x2, x3, _conv_pallas, maxpool3d_2x2x2, _linear_pallas)


# --- pure-JAX reference ---
_DN = ("NDHWC", "DHWIO", "NDHWC")


def _conv_ref(x, weight, bias, bn=None, slope=None):
    y = lax.conv_general_dilated(x, weight, (1, 1, 1), "SAME",
                                 dimension_numbers=_DN,
                                 precision=lax.Precision.HIGHEST) + bias
    if bn is not None:
        gamma, beta, mean, var = bn
        y = (y - mean) / jnp.sqrt(var + BN_EPS) * gamma + beta
    if slope is not None:
        y = jnp.where(y >= 0.0, y, slope * y)
    return y


def _pool_ref(x):
    return lax.reduce_window(x, -jnp.inf, lax.max,
                             (1, 2, 2, 2, 1), (1, 2, 2, 2, 1), "VALID")


def _linear_ref(x, w, b, slope=None):
    y = jnp.dot(x, w, precision=lax.Precision.HIGHEST) + b
    if slope is not None:
        y = jnp.where(y >= 0.0, y, slope * y)
    return y


@jax.jit
def multimodal_three_ref(params, x1, x2, x3):
    return _forward(params, x1, x2, x3, _conv_ref, _pool_ref, _linear_ref)


# ---------------------------------------------------------------------------
if __name__ == "__main__":
    key = jax.random.PRNGKey(0)
    kp, k1, k2, k3 = jax.random.split(key, 4)

    S = 32  # smallest spatial size compatible with the five stride-2 max pools
    assert S % 32 == 0
    params = init_params(kp, S)
    x1 = jax.random.normal(k1, (1, S, S, S, 1), jnp.float32)  # NDHWC (=NCDHW (1,1,S,S,S))
    x2 = jax.random.normal(k2, (1, S, S, S, 1), jnp.float32)
    x3 = jax.random.normal(k3, (1, S, S, S, 1), jnp.float32)

    out = multimodal_three_pallas(params, x1, x2, x3)
    out = jax.block_until_ready(out)
    assert out.shape == (1, 2), out.shape

    ref = jax.block_until_ready(multimodal_three_ref(params, x1, x2, x3))
    assert jnp.allclose(out, ref, atol=2e-3, rtol=2e-3), (out, ref)
    print("KERNEL_OK")
</pallas_src>

<mosaic_0001>
module attributes {stable_mosaic.version = 11 : i64} {
  func.func @_conv3d_kernel(%arg0: i32, %arg1: i32, %arg2: i32, %arg3: memref<1x1x34x34x1xf32, #tpu.memory_space<vmem>>, %arg4: memref<1x9x1x2xf32, #tpu.memory_space<vmem>>, %arg5: memref<1x2xf32, #tpu.memory_space<vmem>>, %arg6: memref<1x1x1024x2xf32, #tpu.memory_space<vmem>>, %arg7: memref<1024x2xf32, #tpu.memory_space<vmem>>) attributes {dimension_semantics = [#tpu.dimension_semantics<parallel>, #tpu.dimension_semantics<parallel>, #tpu.dimension_semantics<arbitrary>], iteration_bounds = array<i64: 1, 32, 3>, scalar_prefetch = 0 : i64, scratch_operands = 1 : i64, tpu.core_type = #tpu.core_type<tc>, window_params = [{transform_indices = @transform_0, window_bounds = array<i64: 1, 1, 34, 34, 1>}, {transform_indices = @transform_1, window_bounds = array<i64: 1, 9, 1, 2>}, {pipeline_mode = #tpu.pipeline_mode<synchronous>, transform_indices = @transform_2, window_bounds = array<i64: 1, 2>}, {transform_indices = @transform_3, window_bounds = array<i64: 1, 1, 1024, 2>}]} {
    %c0_i32 = arith.constant 0 : i32
    %0 = arith.cmpi eq, %arg2, %c0_i32 : i32
    %1 = arith.extui %0 : i1 to i32
    %c0_i32_0 = arith.constant 0 : i32
    %2 = arith.cmpi ne, %1, %c0_i32_0 : i32
    scf.if %2 {
      %cst = arith.constant 0.000000e+00 : f32
      %82 = vector.broadcast %cst : f32 to vector<1024x2xf32>
      %c0_38 = arith.constant 0 : index
      %c0_39 = arith.constant 0 : index
      %83 = vector.load %arg7[%c0_38, %c0_39] : memref<1024x2xf32, #tpu.memory_space<vmem>>, vector<1024x2xf32>
      tpu.vector_store %arg7[%c0_38, %c0_39], %82 {strides = array<i32>} : memref<1024x2xf32, #tpu.memory_space<vmem>>, vector<1024x2xf32>,
    } else {
    }
    %c0 = arith.constant 0 : index
    %c0_1 = arith.constant 0 : index
    %c0_2 = arith.constant 0 : index
    %c0_3 = arith.constant 0 : index
    %c0_4 = arith.constant 0 : index
    %3 = vector.load %arg3[%c0, %c0_1, %c0_2, %c0_3, %c0_4] : memref<1x1x34x34x1xf32, #tpu.memory_space<vmem>>, vector<1x1x34x34x1xf32>
    %4 = vector.shape_cast %3 : vector<1x1x34x34x1xf32> to vector<34x34x1xf32>
    %c0_5 = arith.constant 0 : index
    %c0_6 = arith.constant 0 : index
    %5 = vector.load %arg7[%c0_5, %c0_6] : memref<1024x2xf32, #tpu.memory_space<vmem>>, vector<1024x2xf32>
    %6 = vector.extract_strided_slice %4 {offsets = [0, 0, 0], sizes = [32, 32, 1], strides = [1, 1, 1]} : vector<34x34x1xf32> to vector<32x32x1xf32>
    %7 = vector.shape_cast %6 : vector<32x32x1xf32> to vector<1024x1xf32>
    %c0_7 = arith.constant 0 : index
    %c0_8 = arith.constant 0 : index
    %c0_9 = arith.constant 0 : index
    %c0_10 = arith.constant 0 : index
    %8 = vector.load %arg4[%c0_7, %c0_8, %c0_9, %c0_10] : memref<1x9x1x2xf32, #tpu.memory_space<vmem>>, vector<1x1x1x2xf32>
    %9 = vector.shape_cast %8 : vector<1x1x1x2xf32> to vector<1x2xf32>
    %10 = vector.broadcast %7 : vector<1024x1xf32> to vector<1024x2xf32>
    %11 = vector.broadcast %9 : vector<1x2xf32> to vector<1024x2xf32>
    %12 = arith.mulf %10, %11 : vector<1024x2xf32>
    %13 = arith.addf %5, %12 : vector<1024x2xf32>
    %14 = vector.extract_strided_slice %4 {offsets = [0, 1, 0], sizes = [32, 32, 1], strides = [1, 1, 1]} : vector<34x34x1xf32> to vector<32x32x1xf32>
    %15 = vector.shape_cast %14 : vector<32x32x1xf32> to vector<1024x1xf32>
    %c0_11 = arith.constant 0 : index
    %c1 = arith.constant 1 : index
    %c0_12 = arith.constant 0 : index
    %c0_13 = arith.constant 0 : index
    %16 = vector.load %arg4[%c0_11, %c1, %c0_12, %c0_13] : memref<1x9x1x2xf32, #tpu.memory_space<vmem>>, vector<1x1x1x2xf32>
    %17 = vector.shape_cast %16 : vector<1x1x1x2xf32> to vector<1x2xf32>
    %18 = vector.broadcast %15 : vector<1024x1xf32> to vector<1024x2xf32>
    %19 = vector.broadcast %17 : vector<1x2xf32> to vector<1024x2xf32>
    %20 = arith.mulf %18, %19 : vector<1024x2xf32>
    %21 = arith.addf %13, %20 : vector<1024x2xf32>
    %22 = vector.extract_strided_slice %4 {offsets = [0, 2, 0], sizes = [32, 32, 1], strides = [1, 1, 1]} : vector<34x34x1xf32> to vector<32x32x1xf32>
    %23 = vector.shape_cast %22 : vector<32x32x1xf32> to vector<1024x1xf32>
    %c0_14 = arith.constant 0 : index
    %c2 = arith.constant 2 : index
    %c0_15 = arith.constant 0 : index
    %c0_16 = arith.constant 0 : index
    %24 = vector.load %arg4[%c0_14, %c2, %c0_15, %c0_16] : memref<1x9x1x2xf32, #tpu.memory_space<vmem>>, vector<1x1x1x2xf32>
    %25 = vector.shape_cast %24 : vector<1x1x1x2xf32> to vector<1x2xf32>
    %26 = vector.broadcast %23 : vector<1024x1xf32> to vector<1024x2xf32>
    %27 = vector.broadcast %25 : vector<1x2xf32> to vector<1024x2xf32>
    %28 = arith.mulf %26, %27 : vector<1024x2xf32>
    %29 = arith.addf %21, %28 : vector<1024x2xf32>
    %30 = vector.extract_strided_slice %4 {offsets = [1, 0, 0], sizes = [32, 32, 1], strides = [1, 1, 1]} : vector<34x34x1xf32> to vector<32x32x1xf32>
    %31 = vector.shape_cast %30 : vector<32x32x1xf32> to vector<1024x1xf32>
    %c0_17 = arith.constant 0 : index
    %c3 = arith.constant 3 : index
    %c0_18 = arith.constant 0 : index
    %c0_19 = arith.constant 0 : index
    %32 = vector.load %arg4[%c0_17, %c3, %c0_18, %c0_19] : memref<1x9x1x2xf32, #tpu.memory_space<vmem>>, vector<1x1x1x2xf32>
    %33 = vector.shape_cast %32 : vector<1x1x1x2xf32> to vector<1x2xf32>
    %34 = vector.broadcast %31 : vector<1024x1xf32> to vector<1024x2xf32>
    %35 = vector.broadcast %33 : vector<1x2xf32> to vector<1024x2xf32>
    %36 = arith.mulf %34, %35 : vector<1024x2xf32>
    %37 = arith.addf %29, %36 : vector<1024x2xf32>
    %38 = vector.extract_strided_slice %4 {offsets = [1, 1, 0], sizes = [32, 32, 1], strides = [1, 1, 1]} : vector<34x34x1xf32> to vector<32x32x1xf32>
    %39 = vector.shape_cast %38 : vector<32x32x1xf32> to vector<1024x1xf32>
    %c0_20 = arith.constant 0 : index
    %c4 = arith.constant 4 : index
    %c0_21 = arith.constant 0 : index
    %c0_22 = arith.constant 0 : index
    %40 = vector.load %arg4[%c0_20, %c4, %c0_21, %c0_22] : memref<1x9x1x2xf32, #tpu.memory_space<vmem>>, vector<1x1x1x2xf32>
    %41 = vector.shape_cast %40 : vector<1x1x1x2xf32> to vector<1x2xf32>
    %42 = vector.broadcast %39 : vector<1024x1xf32> to vector<1024x2xf32>
    %43 = vector.broadcast %41 : vector<1x2xf32> to vector<1024x2xf32>
    %44 = arith.mulf %42, %43 : vector<1024x2xf32>
    %45 = arith.addf %37, %44 : vector<1024x2xf32>
    %46 = vector.extract_strided_slice %4 {offsets = [1, 2, 0], sizes = [32, 32, 1], strides = [1, 1, 1]} : vector<34x34x1xf32> to vector<32x32x1xf32>
    %47 = vector.shape_cast %46 : vector<32x32x1xf32> to vector<1024x1xf32>
    %c0_23 = arith.constant 0 : index
    %c5 = arith.constant 5 : index
    %c0_24 = arith.constant 0 : index
    %c0_25 = arith.constant 0 : index
    %48 = vector.load %arg4[%c0_23, %c5, %c0_24, %c0_25] : memref<1x9x1x2xf32, #tpu.memory_space<vmem>>, vector<1x1x1x2xf32>
    %49 = vector.shape_cast %48 : vector<1x1x1x2xf32> to vector<1x2xf32>
    %50 = vector.broadcast %47 : vector<1024x1xf32> to vector<1024x2xf32>
    %51 = vector.broadcast %49 : vector<1x2xf32> to vector<1024x2xf32>
    %52 = arith.mulf %50, %51 : vector<1024x2xf32>
    %53 = arith.addf %45, %52 : vector<1024x2xf32>
    %54 = vector.extract_strided_slice %4 {offsets = [2, 0, 0], sizes = [32, 32, 1], strides = [1, 1, 1]} : vector<34x34x1xf32> to vector<32x32x1xf32>
    %55 = vector.shape_cast %54 : vector<32x32x1xf32> to vector<1024x1xf32>
    %c0_26 = arith.constant 0 : index
    %c6 = arith.constant 6 : index
    %c0_27 = arith.constant 0 : index
    %c0_28 = arith.constant 0 : index
    %56 = vector.load %arg4[%c0_26, %c6, %c0_27, %c0_28] : memref<1x9x1x2xf32, #tpu.memory_space<vmem>>, vector<1x1x1x2xf32>
    %57 = vector.shape_cast %56 : vector<1x1x1x2xf32> to vector<1x2xf32>
    %58 = vector.broadcast %55 : vector<1024x1xf32> to vector<1024x2xf32>
    %59 = vector.broadcast %57 : vector<1x2xf32> to vector<1024x2xf32>
    %60 = arith.mulf %58, %59 : vector<1024x2xf32>
    %61 = arith.addf %53, %60 : vector<1024x2xf32>
    %62 = vector.extract_strided_slice %4 {offsets = [2, 1, 0], sizes = [32, 32, 1], strides = [1, 1, 1]} : vector<34x34x1xf32> to vector<32x32x1xf32>
    %63 = vector.shape_cast %62 : vector<32x32x1xf32> to vector<1024x1xf32>
    %c0_29 = arith.constant 0 : index
    %c7 = arith.constant 7 : index
    %c0_30 = arith.constant 0 : index
    %c0_31 = arith.constant 0 : index
    %64 = vector.load %arg4[%c0_29, %c7, %c0_30, %c0_31] : memref<1x9x1x2xf32, #tpu.memory_space<vmem>>, vector<1x1x1x2xf32>
    %65 = vector.shape_cast %64 : vector<1x1x1x2xf32> to vector<1x2xf32>
    %66 = vector.broadcast %63 : vector<1024x1xf32> to vector<1024x2xf32>
    %67 = vector.broadcast %65 : vector<1x2xf32> to vector<1024x2xf32>
    %68 = arith.mulf %66, %67 : vector<1024x2xf32>
    %69 = arith.addf %61, %68 : vector<1024x2xf32>
    %70 = vector.extract_strided_slice %4 {offsets = [2, 2, 0], sizes = [32, 32, 1], strides = [1, 1, 1]} : vector<34x34x1xf32> to vector<32x32x1xf32>
    %71 = vector.shape_cast %70 : vector<32x32x1xf32> to vector<1024x1xf32>
    %c0_32 = arith.constant 0 : index
    %c8 = arith.constant 8 : index
    %c0_33 = arith.constant 0 : index
    %c0_34 = arith.constant 0 : index
    %72 = vector.load %arg4[%c0_32, %c8, %c0_33, %c0_34] : memref<1x9x1x2xf32, #tpu.memory_space<vmem>>, vector<1x1x1x2xf32>
    %73 = vector.shape_cast %72 : vector<1x1x1x2xf32> to vector<1x2xf32>
    %74 = vector.broadcast %71 : vector<1024x1xf32> to vector<1024x2xf32>
    %75 = vector.broadcast %73 : vector<1x2xf32> to vector<1024x2xf32>
    %76 = arith.mulf %74, %75 : vector<1024x2xf32>
    %77 = arith.addf %69, %76 : vector<1024x2xf32>
    %c0_35 = arith.constant 0 : index
    %c0_36 = arith.constant 0 : index
    %78 = vector.load %arg7[%c0_35, %c0_36] : memref<1024x2xf32, #tpu.memory_space<vmem>>, vector<1024x2xf32>
    tpu.vector_store %arg7[%c0_35, %c0_36], %77 {strides = array<i32>} : memref<1024x2xf32, #tpu.memory_space<vmem>>, vector<1024x2xf32>,
    %c2_i32 = arith.constant 2 : i32
    %79 = arith.cmpi eq, %arg2, %c2_i32 : i32
    %80 = arith.extui %79 : i1 to i32
    %c0_i32_37 = arith.constant 0 : i32
    %81 = arith.cmpi ne, %80, %c0_i32_37 : i32
    scf.if %81 {
      %c0_38 = arith.constant 0 : index
      %c0_39 = arith.constant 0 : index
      %82 = vector.load %arg7[%c0_38, %c0_39] : memref<1024x2xf32, #tpu.memory_space<vmem>>, vector<1024x2xf32>
      %c0_40 = arith.constant 0 : index
      %c0_41 = arith.constant 0 : index
      %83 = vector.load %arg5[%c0_40, %c0_41] : memref<1x2xf32, #tpu.memory_space<vmem>>, vector<1x2xf32>
      %84 = vector.broadcast %83 : vector<1x2xf32> to vector<1024x2xf32>
      %85 = arith.addf %82, %84 : vector<1024x2xf32>
      %c0_42 = arith.constant 0 : index
      %c0_43 = arith.constant 0 : index
      %c0_44 = arith.constant 0 : index
      %c0_45 = arith.constant 0 : index
      %86 = vector.load %arg6[%c0_42, %c0_43, %c0_44, %c0_45] : memref<1x1x1024x2xf32, #tpu.memory_space<vmem>>, vector<1x1x1024x2xf32>
      %87 = vector.shape_cast %86 : vector<1x1x1024x2xf32> to vector<1024x2xf32>
      %88 = vector.shape_cast %85 : vector<1024x2xf32> to vector<1x1x1024x2xf32>
      tpu.vector_store %arg6[%c0_42, %c0_43, %c0_44, %c0_45], %88 {strides = array<i32>} : memref<1x1x1024x2xf32, #tpu.memory_space<vmem>>, vector<1x1x1024x2xf32>,
    } else {
    }
    return
  }
  func.func @transform_0(%arg0: i32, %arg1: i32, %arg2: i32) -> (i32, i32, i32, i32, i32) {
    %0 = arith.addi %arg1, %arg2 : i32
    %c0_i32 = arith.constant 0 : i32
    %c0_i32_0 = arith.constant 0 : i32
    %c0_i32_1 = arith.constant 0 : i32
    %c0_i32_2 = arith.constant 0 : i32
    return %arg0, %0, %c0_i32, %c0_i32_0, %c0_i32_1 : i32, i32, i32, i32, i32
  }
  func.func @transform_1(%arg0: i32, %arg1: i32, %arg2: i32) -> (i32, i32, i32, i32) {
    %c0_i32 = arith.constant 0 : i32
    %c0_i32_0 = arith.constant 0 : i32
    %c0_i32_1 = arith.constant 0 : i32
    %c0_i32_2 = arith.constant 0 : i32
    return %arg2, %c0_i32, %c0_i32_0, %c0_i32_1 : i32, i32, i32, i32
  }
  func.func @transform_2(%arg0: i32, %arg1: i32, %arg2: i32) -> (i32, i32) {
    %c0_i32 = arith.constant 0 : i32
    %c0_i32_0 = arith.constant 0 : i32
    %c0_i32_1 = arith.constant 0 : i32
    return %c0_i32, %c0_i32_0 : i32, i32
  }
  func.func @transform_3(%arg0: i32, %arg1: i32, %arg2: i32) -> (i32, i32, i32, i32) {
    %c0_i32 = arith.constant 0 : i32
    %c0_i32_0 = arith.constant 0 : i32
    %c0_i32_1 = arith.constant 0 : i32
    return %arg0, %arg1, %c0_i32, %c0_i32_0 : i32, i32, i32, i32
  }
}

</mosaic_0001>

<llo_original>
// kernel: conv3d_3x3x3.1
$region0: #{conv3d_3x3x3.1}
  #allocation0 [shape = 'u32[]', space=smem, size = 0x4, offset = 0x4, fixed_abs, tag = 'smem constant byte address 0x4 - core index']
  #allocation1 [shape = 'u32[144,128]{1,0:T(1,128)}', space=vmem, size = 0x12000, scoped, tag = 'internal scratch']
  #allocation2 [shape = 'f32[1024,2]{1,0:T(8,128)}', space=vmem, size = 0x80000, scoped, tag = 'scratch operand']
  %s0 = inlined_call_operand.vmem [shape: f32[1,34,34,34,1], index: 0, kind: input, shape index: {}]
  %s1 = inlined_call_operand.vmem [shape: f32[3,9,1,2], index: 1, kind: input, shape index: {}]
  %s2 = inlined_call_operand.vmem [shape: f32[1,2], index: 2, kind: input, shape index: {}]
  %s3 = inlined_call_operand.hbm [shape: f32[1,32,1024,2], index: 3, kind: output, shape index: {}]
  %s4 = sld [smem:[#allocation0]]
  $region53: #{conv3d_3x3x3.1} parent=0
    _
  %s6 = ssub.s32 1, %s4
  %s7 = scalar_select 0, %s6, %s4
  $region1: #{conv3d_3x3x3.1} parent=0
    #allocation3 [shape = 'u8[1048576]{0}', space=vmem, size = 0x100000, scoped, tag = 'output window, operand 0']
    #allocation4 [shape = 's32[2]{0}', space=sflag, size = 0x8, scoped, tag = 'scoped memory for conv3d_3x3x3.1']
    %8 = vsyncpa [#allocation4], 0
    %s9 = scalar_lea.sflag [#allocation4], 1
    %10 = vsyncpa %s9, 0
    loop: start=0, step=1, limit=98
    $region2: #{conv3d_3x3x3.1} parent=1 // loop_pre_header
      _
    $region3: #{conv3d_3x3x3.1} parent=1 // loop_header
      %s12 = sphi 0, %s16
      %p13 = scmp.ge.s32.totalorder %s12, 98
      %s19 = sphi 0, %s38
      %s20 = sphi 0, %s34
      %s21 = sphi 0, %s30
      %s22 = sphi 0, %s19
      %s23 = sphi 0, %s20
      %s24 = sphi 0, %s21
      %s25 = sphi 0, %s22
      %s26 = sphi 0, %s23
      %s27 = sphi 0, %s24
      %s45 = sphi 0, %s47
      %s48 = sphi 0, %s45
      %s49 = sphi 0, %s48
      %s65 = sphi 0, %s49
      %s71 = sphi 0, %s73
      %s74 = sphi 0, %s71
      %s75 = sphi 0, %s74
      %s91 = sphi 0, %s75
      %s95 = sphi 0, %s95
      %s97 = sphi 0, %s95
      %s98 = sphi 0, %s97
      %s112 = sphi 0, %s98
      %s120 = sphi 0, %s122
      %s123 = sphi 0, %s120
      %s124 = sphi 0, %s123
      %s140 = sphi 0, %s124
    $region4: #{conv3d_3x3x3.1} parent=1 // loop_header_branch
      %15 = sbr.rel (%p13) target = $region8
    $region5: #{conv3d_3x3x3.1} parent=1 // loop_body
      %s17 = ssub.s32 %s12, 1
      %s18 = ssub.s32 %s12, 2
      %s28 = sadd.s32 1, %s21
      %p29 = scmp.ge.s32.totalorder %s28, 3
      %s30 = scalar_select %p29, 0, %s28
      %s31 = sadd.s32 1, %s20
      %s32 = scalar_select %p29, %s31, %s20
      %p33 = scmp.ge.s32.totalorder %s32, 32
      %s34 = scalar_select %p33, 0, %s32
      %s35 = sadd.s32 1, %s19
      %s36 = scalar_select %p33, %s35, %s19
      %p37 = scmp.ge.s32.totalorder %s36, 1
      %s38 = scalar_select %p37, 0, %s36
      %s39 = sadd.s32 %s20, %s21
      %s40 = sadd.s32 %s34, %s30
      %s41 = ssub.s32 %s19, %s38
      %s42 = ssub.s32 %s39, %s40
      %s43 = sor.u32 %s41, %s42
      %p44 = scmp.eq.s32.totalorder %s43, 0
      %s46 = sadd.s32 %s45, 1
      %s47 = scalar_select %p44, %s45, %s46
      %p50 = pneg %p44
      %p51 = scmp.eq.s32.totalorder %s12, 95
      %p52 = por %p50, %p51
      %p53 = scmp.ne.s32.totalorder %s45, %s48
      %p54 = scmp.eq.s32.totalorder %s12, 0
      %p55 = por %p53, %p54
      %p56 = scmp.ne.s32.totalorder %s45, %s48
      %p57 = scmp.eq.s32.totalorder %s17, 95
      %p58 = por %p56, %p57
      %p59 = scmp.ne.s32.totalorder %s48, %s49
      %p60 = scmp.eq.s32.totalorder %s17, 0
      %p61 = por %p59, %p60
      %p62 = scmp.ne.s32.totalorder %s48, %s49
      %p63 = scmp.eq.s32.totalorder %s18, 95
      %p64 = por %p62, %p63
      %p66 = scmp.ne.s32.totalorder %s49, %s65
      %p67 = scmp.eq.s32.totalorder %s18, 0
      %p68 = por %p66, %p67
      %s69 = ssub.s32 %s21, %s30
      %p70 = scmp.eq.s32.totalorder %s69, 0
      %s72 = sadd.s32 %s71, 1
      %s73 = scalar_select %p70, %s71, %s72
      %p76 = pneg %p70
      %p77 = scmp.eq.s32.totalorder %s12, 95
      %p78 = por %p76, %p77
      %p79 = scmp.ne.s32.totalorder %s71, %s74
      %p80 = scmp.eq.s32.totalorder %s12, 0
      %p81 = por %p79, %p80
      %p82 = scmp.ne.s32.totalorder %s71, %s74
      %p83 = scmp.eq.s32.totalorder %s17, 95
      %p84 = por %p82, %p83
      %p85 = scmp.ne.s32.totalorder %s74, %s75
      %p86 = scmp.eq.s32.totalorder %s17, 0
      %p87 = por %p85, %p86
      %p88 = scmp.ne.s32.totalorder %s74, %s75
      %p89 = scmp.eq.s32.totalorder %s18, 95
      %p90 = por %p88, %p89
      %p92 = scmp.ne.s32.totalorder %s75, %s91
      %p93 = scmp.eq.s32.totalorder %s18, 0
      %p94 = por %p92, %p93
      %s96 = sadd.s32 %s95, 1
      %p99 = scmp.eq.s32.totalorder %s12, 95
      %p100 = scmp.ne.s32.totalorder %s95, %s97
      %p101 = scmp.eq.s32.totalorder %s12, 0
      %p102 = por %p100, %p101
      %p103 = scmp.ne.s32.totalorder %s95, %s97
      %p104 = scmp.eq.s32.totalorder %s17, 95
      %p105 = por %p103, %p104
      %p106 = scmp.ne.s32.totalorder %s97, %s98
      %p107 = scmp.eq.s32.totalorder %s17, 0
      %p108 = por %p106, %p107
      %p109 = scmp.ne.s32.totalorder %s97, %s98
      %p110 = scmp.eq.s32.totalorder %s18, 95
      %p111 = por %p109, %p110
      %p113 = scmp.ne.s32.totalorder %s98, %s112
      %p114 = scmp.eq.s32.totalorder %s18, 0
      %p115 = por %p113, %p114
      %s116 = ssub.s32 %s19, %s38
      %s117 = ssub.s32 %s20, %s34
      %s118 = sor.u32 %s116, %s117
      %p119 = scmp.eq.s32.totalorder %s118, 0
      %s121 = sadd.s32 %s120, 1
      %s122 = scalar_select %p119, %s120, %s121
      %p125 = pneg %p119
      %p126 = scmp.eq.s32.totalorder %s12, 95
      %p127 = por %p125, %p126
      %p128 = scmp.ne.s32.totalorder %s120, %s123
      %p129 = scmp.eq.s32.totalorder %s12, 0
      %p130 = por %p128, %p129
      %p131 = scmp.ne.s32.totalorder %s120, %s123
      %p132 = scmp.eq.s32.totalorder %s17, 95
      %p133 = por %p131, %p132
      %p134 = scmp.ne.s32.totalorder %s123, %s124
      %p135 = scmp.eq.s32.totalorder %s17, 0
      %p136 = por %p134, %p135
      %p137 = scmp.ne.s32.totalorder %s123, %s124
      %p138 = scmp.eq.s32.totalorder %s18, 95
      %p139 = por %p137, %p138
      %p141 = scmp.ne.s32.totalorder %s124, %s140
      %p142 = scmp.eq.s32.totalorder %s18, 0
      %p143 = por %p141, %p142
      %p144 = scmp.le.s32.totalorder 1, %s12
      %p145 = scmp.lt.s32.totalorder %s12, 97
      %p146 = pnand %p144, %p145
      %p147 = pneg %p146
      // Predicated region
      $region9: #{conv3d_3x3x3.1} parent=5 // pred_check
        _
      $region10: #{conv3d_3x3x3.1} parent=5 // pred_check_branch
        %149 = sbr.rel (%p146) target = $region12
      $region11: #{conv3d_3x3x3.1} parent=5 // pred_region
        %s150 = ssub.s32 %s12, 1
        // Predicated region
        $region13: #{conv3d_3x3x3.1} parent=11 // pred_check
          %p151 = pneg %p108
        $region14: #{conv3d_3x3x3.1} parent=11 // pred_check_branch
          %153 = sbr.rel (%p151) target = $region16
        $region15: #{conv3d_3x3x3.1} parent=11 // pred_region
          _
        $region16: #{conv3d_3x3x3.1} parent=11 // pred_fallthru
          _
      $region12: #{conv3d_3x3x3.1} parent=5 // pred_fallthru
        _
      %p154 = scmp.lt.s32.totalorder %s12, 96
      // Predicated region
      $region17: #{conv3d_3x3x3.1} parent=5 // pred_check
        %p155 = pneg %p154
      $region18: #{conv3d_3x3x3.1} parent=5 // pred_check_branch
        %157 = sbr.rel (%p155) target = $region20
      $region19: #{conv3d_3x3x3.1} parent=5 // pred_region
        // Predicated region
        $region21: #{conv3d_3x3x3.1} parent=19 // pred_check
          %p158 = pneg %p55
        $region22: #{conv3d_3x3x3.1} parent=19 // pred_check_branch
          %160 = sbr.rel (%p158) target = $region24
        $region23: #{conv3d_3x3x3.1} parent=19 // pred_region
          %s161 = sadd.s32 %s20, %s21
          %p162 = scmp.lt.s32.totalorder %s19, 0
          %s163 = scalar_select %p162, %s19, 0
          %p164 = scmp.lt.s32.totalorder %s161, 33
          %s165 = scalar_select %p164, %s161, 33
          %s166 = smul.addr %s165, 170
          %s167 = smul.addr %s163, 5780
          %s168 = sadd.s32 %s166, %s167
          %s169 = smul.addr %s168, 8
          %s170 = scalar_lea.vmem %s0, %s169
          %s171 = sadd.s32 %s20, %s21
        $region24: #{conv3d_3x3x3.1} parent=19 // pred_fallthru
          _
        // Predicated region
        $region25: #{conv3d_3x3x3.1} parent=19 // pred_check
          %p172 = pneg %p81
        $region26: #{conv3d_3x3x3.1} parent=19 // pred_check_branch
          %174 = sbr.rel (%p172) target = $region28
        $region27: #{conv3d_3x3x3.1} parent=19 // pred_region
          %p175 = scmp.lt.s32.totalorder %s21, 2
          %s176 = scalar_select %p175, %s21, 2
          %s177 = smul.addr %s176, 9
          %s178 = scalar_lea.vmem %s1, %s177
        $region28: #{conv3d_3x3x3.1} parent=19 // pred_fallthru
          _
      $region20: #{conv3d_3x3x3.1} parent=5 // pred_fallthru
        _
      %p179 = scmp.le.s32.totalorder 1, %s12
      %p180 = scmp.lt.s32.totalorder %s12, 97
      %p181 = pnand %p179, %p180
      %p182 = pneg %p181
      // Predicated region
      $region29: #{conv3d_3x3x3.1} parent=5 // pred_check
        _
      $region30: #{conv3d_3x3x3.1} parent=5 // pred_check_branch
        %184 = sbr.rel (%p181) target = $region32
      $region31: #{conv3d_3x3x3.1} parent=5 // pred_region
        %s185 = ssub.s32 %s12, 1
        %s186 = sadd.s32 %s23, %s24
        %p187 = scmp.lt.s32.totalorder %s22, 0
        %s188 = scalar_select %p187, %s22, 0
        %p189 = scmp.lt.s32.totalorder %s186, 33
        %s190 = scalar_select %p189, %s186, 33
        %s191 = smul.addr %s190, 170
        %s192 = smul.addr %s188, 5780
        %s193 = sadd.s32 %s191, %s192
        %s194 = smul.addr %s193, 8
        %s195 = scalar_lea.vmem %s0, %s194
        %p196 = pneg %p61
        %p197 = pneg %p58
        %p198 = scmp.lt.s32.totalorder %s24, 2
        %s199 = scalar_select %p198, %s24, 2
        %s200 = smul.addr %s199, 9
        %s201 = scalar_lea.vmem %s1, %s200
        %p202 = pneg %p87
        %p203 = pneg %p84
        %p204 = pneg %p108
        %p205 = pneg %p105
        %p206 = pneg %p136
        %p207 = pneg %p133
        %s208 = sand.u32 %s123, 1
        %s209 = scalar_lea.sflag [#allocation4], %s208
        %s210 = sand.u32 %s123, 1
        %s211 = smul.addr %s210, 1024
        %s212 = scalar_lea.vmem [#allocation3], %s211
        %s213 = sadd.s32 %s23, %s24
        %p214 = scmp.lt.s32.totalorder %s22, 0
        %s215 = scalar_select %p214, %s22, 0
        %p216 = scmp.lt.s32.totalorder %s213, 33
        %s217 = scalar_select %p216, %s213, 33
        %s218 = smul.addr %s217, 170
        %s219 = smul.addr %s215, 5780
        %s220 = sadd.s32 %s218, %s219
        %s221 = smul.addr %s220, 8
        %s222 = scalar_lea.vmem %s0, %s221
        %s223 = sadd.s32 %s23, %s24
        %p224 = scmp.lt.s32.totalorder %s24, 2
        %s225 = scalar_select %p224, %s24, 2
        %s226 = smul.addr %s225, 9
        %s227 = scalar_lea.vmem %s1, %s226
        %p228 = scmp.eq.s32.totalorder %s24, 0
        // Predicated region
        $region33: #{conv3d_3x3x3.1} parent=31 // pred_check
          %p229 = pneg %p228
        $region34: #{conv3d_3x3x3.1} parent=31 // pred_check_branch
          %231 = sbr.rel (%p229) target = $region36
        $region35: #{conv3d_3x3x3.1} parent=31 // pred_region
          %vm232 = vcmask 15360
          %233 = vst.msk [vmem:[#allocation2] sm:$0xff] %vm232, 0.0
          %234 = vst.msk [vmem:[#allocation2 + $0x8] sm:$0xff] %vm232, 0.0
          %235 = vst.msk [vmem:[#allocation2 + $0x10] sm:$0xff] %vm232, 0.0
          %236 = vst.msk [vmem:[#allocation2 + $0x18] sm:$0xff] %vm232, 0.0
          %237 = vst.msk [vmem:[#allocation2 + $0x20] sm:$0xff] %vm232, 0.0
          %238 = vst.msk [vmem:[#allocation2 + $0x28] sm:$0xff] %vm232, 0.0
          %239 = vst.msk [vmem:[#allocation2 + $0x30] sm:$0xff] %vm232, 0.0
          %240 = vst.msk [vmem:[#allocation2 + $0x38] sm:$0xff] %vm232, 0.0
          %241 = vst.msk [vmem:[#allocation2 + $0x40] sm:$0xff] %vm232, 0.0
          %242 = vst.msk [vmem:[#allocation2 + $0x48] sm:$0xff] %vm232, 0.0
          %243 = vst.msk [vmem:[#allocation2 + $0x50] sm:$0xff] %vm232, 0.0
          %244 = vst.msk [vmem:[#allocation2 + $0x58] sm:$0xff] %vm232, 0.0
          %245 = vst.msk [vmem:[#allocation2 + $0x60] sm:$0xff] %vm232, 0.0
          %246 = vst.msk [vmem:[#allocation2 + $0x68] sm:$0xff] %vm232, 0.0
          %247 = vst.msk [vmem:[#allocation2 + $0x70] sm:$0xff] %vm232, 0.0
          %248 = vst.msk [vmem:[#allocation2 + $0x78] sm:$0xff] %vm232, 0.0
          %249 = vst.msk [vmem:[#allocation2 + $0x80] sm:$0xff] %vm232, 0.0
          %250 = vst.msk [vmem:[#allocation2 + $0x88] sm:$0xff] %vm232, 0.0
          %251 = vst.msk [vmem:[#allocation2 + $0x90] sm:$0xff] %vm232, 0.0
          %252 = vst.msk [vmem:[#allocation2 + $0x98] sm:$0xff] %vm232, 0.0
          %253 = vst.msk [vmem:[#allocation2 + $0xa0] sm:$0xff] %vm232, 0.0
          %254 = vst.msk [vmem:[#allocation2 + $0xa8] sm:$0xff] %vm232, 0.0
          %255 = vst.msk [vmem:[#allocation2 + $0xb0] sm:$0xff] %vm232, 0.0
          %256 = vst.msk [vmem:[#allocation2 + $0xb8] sm:$0xff] %vm232, 0.0
          %257 = vst.msk [vmem:[#allocation2 + $0xc0] sm:$0xff] %vm232, 0.0
          %258 = vst.msk [vmem:[#allocation2 + $0xc8] sm:$0xff] %vm232, 0.0
          %259 = vst.msk [vmem:[#allocation2 + $0xd0] sm:$0xff] %vm232, 0.0
          %260 = vst.msk [vmem:[#allocation2 + $0xd8] sm:$0xff] %vm232, 0.0
          %261 = vst.msk [vmem:[#allocation2 + $0xe0] sm:$0xff] %vm232, 0.0
          %262 = vst.msk [vmem:[#allocation2 + $0xe8] sm:$0xff] %vm232, 0.0
          %263 = vst.msk [vmem:[#allocation2 + $0xf0] sm:$0xff] %vm232, 0.0
          %264 = vst.msk [vmem:[#allocation2 + $0xf8] sm:$0xff] %vm232, 0.0
          %265 = vst.msk [vmem:[#allocation2 + $0x100] sm:$0xff] %vm232, 0.0
          %266 = vst.msk [vmem:[#allocation2 + $0x108] sm:$0xff] %vm232, 0.0
          %267 = vst.msk [vmem:[#allocation2 + $0x110] sm:$0xff] %vm232, 0.0
          %268 = vst.msk [vmem:[#allocation2 + $0x118] sm:$0xff] %vm232, 0.0
          %269 = vst.msk [vmem:[#allocation2 + $0x120] sm:$0xff] %vm232, 0.0
          %270 = vst.msk [vmem:[#allocation2 + $0x128] sm:$0xff] %vm232, 0.0
          %271 = vst.msk [vmem:[#allocation2 + $0x130] sm:$0xff] %vm232, 0.0
          %272 = vst.msk [vmem:[#allocation2 + $0x138] sm:$0xff] %vm232, 0.0
          %273 = vst.msk [vmem:[#allocation2 + $0x140] sm:$0xff] %vm232, 0.0
          %274 = vst.msk [vmem:[#allocation2 + $0x148] sm:$0xff] %vm232, 0.0
          %275 = vst.msk [vmem:[#allocation2 + $0x150] sm:$0xff] %vm232, 0.0
          %276 = vst.msk [vmem:[#allocation2 + $0x158] sm:$0xff] %vm232, 0.0
          %277 = vst.msk [vmem:[#allocation2 + $0x160] sm:$0xff] %vm232, 0.0
          %278 = vst.msk [vmem:[#allocation2 + $0x168] sm:$0xff] %vm232, 0.0
          %279 = vst.msk [vmem:[#allocation2 + $0x170] sm:$0xff] %vm232, 0.0
          %280 = vst.msk [vmem:[#allocation2 + $0x178] sm:$0xff] %vm232, 0.0
          %281 = vst.msk [vmem:[#allocation2 + $0x180] sm:$0xff] %vm232, 0.0
          %282 = vst.msk [vmem:[#allocation2 + $0x188] sm:$0xff] %vm232, 0.0
          %283 = vst.msk [vmem:[#allocation2 + $0x190] sm:$0xff] %vm232, 0.0
          %284 = vst.msk [vmem:[#allocation2 + $0x198] sm:$0xff] %vm232, 0.0
          %285 = vst.msk [vmem:[#allocation2 + $0x1a0] sm:$0xff] %vm232, 0.0
          %286 = vst.msk [vmem:[#allocation2 + $0x1a8] sm:$0xff] %vm232, 0.0
          %287 = vst.msk [vmem:[#allocation2 + $0x1b0] sm:$0xff] %vm232, 0.0
          %288 = vst.msk [vmem:[#allocation2 + $0x1b8] sm:$0xff] %vm232, 0.0
          %289 = vst.msk [vmem:[#allocation2 + $0x1c0] sm:$0xff] %vm232, 0.0
          %290 = vst.msk [vmem:[#allocation2 + $0x1c8] sm:$0xff] %vm232, 0.0
          %291 = vst.msk [vmem:[#allocation2 + $0x1d0] sm:$0xff] %vm232, 0.0
          %292 = vst.msk [vmem:[#allocation2 + $0x1d8] sm:$0xff] %vm232, 0.0
          %293 = vst.msk [vmem:[#allocation2 + $0x1e0] sm:$0xff] %vm232, 0.0
          %294 = vst.msk [vmem:[#allocation2 + $0x1e8] sm:$0xff] %vm232, 0.0
          %295 = vst.msk [vmem:[#allocation2 + $0x1f0] sm:$0xff] %vm232, 0.0
          %296 = vst.msk [vmem:[#allocation2 + $0x1f8] sm:$0xff] %vm232, 0.0
          %297 = vst.msk [vmem:[#allocation2 + $0x200] sm:$0xff] %vm232, 0.0
          %298 = vst.msk [vmem:[#allocation2 + $0x208] sm:$0xff] %vm232, 0.0
          %299 = vst.msk [vmem:[#allocation2 + $0x210] sm:$0xff] %vm232, 0.0
          %300 = vst.msk [vmem:[#allocation2 + $0x218] sm:$0xff] %vm232, 0.0
          %301 = vst.msk [vmem:[#allocation2 + $0x220] sm:$0xff] %vm232, 0.0
          %302 = vst.msk [vmem:[#allocation2 + $0x228] sm:$0xff] %vm232, 0.0
          %303 = vst.msk [vmem:[#allocation2 + $0x230] sm:$0xff] %vm232, 0.0
          %304 = vst.msk [vmem:[#allocation2 + $0x238] sm:$0xff] %vm232, 0.0
          %305 = vst.msk [vmem:[#allocation2 + $0x240] sm:$0xff] %vm232, 0.0
          %306 = vst.msk [vmem:[#allocation2 + $0x248] sm:$0xff] %vm232, 0.0
          %307 = vst.msk [vmem:[#allocation2 + $0x250] sm:$0xff] %vm232, 0.0
          %308 = vst.msk [vmem:[#allocation2 + $0x258] sm:$0xff] %vm232, 0.0
          %309 = vst.msk [vmem:[#allocation2 + $0x260] sm:$0xff] %vm232, 0.0
          %310 = vst.msk [vmem:[#allocation2 + $0x268] sm:$0xff] %vm232, 0.0
          %311 = vst.msk [vmem:[#allocation2 + $0x270] sm:$0xff] %vm232, 0.0
          %312 = vst.msk [vmem:[#allocation2 + $0x278] sm:$0xff] %vm232, 0.0
          %313 = vst.msk [vmem:[#allocation2 + $0x280] sm:$0xff] %vm232, 0.0
          %314 = vst.msk [vmem:[#allocation2 + $0x288] sm:$0xff] %vm232, 0.0
          %315 = vst.msk [vmem:[#allocation2 + $0x290] sm:$0xff] %vm232, 0.0
          %316 = vst.msk [vmem:[#allocation2 + $0x298] sm:$0xff] %vm232, 0.0
          %317 = vst.msk [vmem:[#allocation2 + $0x2a0] sm:$0xff] %vm232, 0.0
          %318 = vst.msk [vmem:[#allocation2 + $0x2a8] sm:$0xff] %vm232, 0.0
          %319 = vst.msk [vmem:[#allocation2 + $0x2b0] sm:$0xff] %vm232, 0.0
          %320 = vst.msk [vmem:[#allocation2 + $0x2b8] sm:$0xff] %vm232, 0.0
          %321 = vst.msk [vmem:[#allocation2 + $0x2c0] sm:$0xff] %vm232, 0.0
          %322 = vst.msk [vmem:[#allocation2 + $0x2c8] sm:$0xff] %vm232, 0.0
          %323 = vst.msk [vmem:[#allocation2 + $0x2d0] sm:$0xff] %vm232, 0.0
          %324 = vst.msk [vmem:[#allocation2 + $0x2d8] sm:$0xff] %vm232, 0.0
          %325 = vst.msk [vmem:[#allocation2 + $0x2e0] sm:$0xff] %vm232, 0.0
          %326 = vst.msk [vmem:[#allocation2 + $0x2e8] sm:$0xff] %vm232, 0.0
          %327 = vst.msk [vmem:[#allocation2 + $0x2f0] sm:$0xff] %vm232, 0.0
          %328 = vst.msk [vmem:[#allocation2 + $0x2f8] sm:$0xff] %vm232, 0.0
          %329 = vst.msk [vmem:[#allocation2 + $0x300] sm:$0xff] %vm232, 0.0
          %330 = vst.msk [vmem:[#allocation2 + $0x308] sm:$0xff] %vm232, 0.0
          %331 = vst.msk [vmem:[#allocation2 + $0x310] sm:$0xff] %vm232, 0.0
          %332 = vst.msk [vmem:[#allocation2 + $0x318] sm:$0xff] %vm232, 0.0
          %333 = vst.msk [vmem:[#allocation2 + $0x320] sm:$0xff] %vm232, 0.0
          %334 = vst.msk [vmem:[#allocation2 + $0x328] sm:$0xff] %vm232, 0.0
          %335 = vst.msk [vmem:[#allocation2 + $0x330] sm:$0xff] %vm232, 0.0
          %336 = vst.msk [vmem:[#allocation2 + $0x338] sm:$0xff] %vm232, 0.0
          %337 = vst.msk [vmem:[#allocation2 + $0x340] sm:$0xff] %vm232, 0.0
          %338 = vst.msk [vmem:[#allocation2 + $0x348] sm:$0xff] %vm232, 0.0
          %339 = vst.msk [vmem:[#allocation2 + $0x350] sm:$0xff] %vm232, 0.0
          %340 = vst.msk [vmem:[#allocation2 + $0x358] sm:$0xff] %vm232, 0.0
          %341 = vst.msk [vmem:[#allocation2 + $0x360] sm:$0xff] %vm232, 0.0
          %342 = vst.msk [vmem:[#allocation2 + $0x368] sm:$0xff] %vm232, 0.0
          %343 = vst.msk [vmem:[#allocation2 + $0x370] sm:$0xff] %vm232, 0.0
          %344 = vst.msk [vmem:[#allocation2 + $0x378] sm:$0xff] %vm232, 0.0
          %345 = vst.msk [vmem:[#allocation2 + $0x380] sm:$0xff] %vm232, 0.0
          %346 = vst.msk [vmem:[#allocation2 + $0x388] sm:$0xff] %vm232, 0.0
          %347 = vst.msk [vmem:[#allocation2 + $0x390] sm:$0xff] %vm232, 0.0
          %348 = vst.msk [vmem:[#allocation2 + $0x398] sm:$0xff] %vm232, 0.0
          %349 = vst.msk [vmem:[#allocation2 + $0x3a0] sm:$0xff] %vm232, 0.0
          %350 = vst.msk [vmem:[#allocation2 + $0x3a8] sm:$0xff] %vm232, 0.0
          %351 = vst.msk [vmem:[#allocation2 + $0x3b0] sm:$0xff] %vm232, 0.0
          %352 = vst.msk [vmem:[#allocation2 + $0x3b8] sm:$0xff] %vm232, 0.0
          %353 = vst.msk [vmem:[#allocation2 + $0x3c0] sm:$0xff] %vm232, 0.0
          %354 = vst.msk [vmem:[#allocation2 + $0x3c8] sm:$0xff] %vm232, 0.0
          %355 = vst.msk [vmem:[#allocation2 + $0x3d0] sm:$0xff] %vm232, 0.0
          %356 = vst.msk [vmem:[#allocation2 + $0x3d8] sm:$0xff] %vm232, 0.0
          %357 = vst.msk [vmem:[#allocation2 + $0x3e0] sm:$0xff] %vm232, 0.0
          %358 = vst.msk [vmem:[#allocation2 + $0x3e8] sm:$0xff] %vm232, 0.0
          %359 = vst.msk [vmem:[#allocation2 + $0x3f0] sm:$0xff] %vm232, 0.0
          %360 = vst.msk [vmem:[#allocation2 + $0x3f8] sm:$0xff] %vm232, 0.0
        $region36: #{conv3d_3x3x3.1} parent=31 // pred_fallthru
          _
        %v361 = vld [vmem:[%s222] sm:$0xff]
        %v362 = vld [vmem:[%s222 + $0x8] sm:$0xff]
        %v363 = vld [vmem:[%s222 + $0x10] sm:$0xff]
        %v364 = vld [vmem:[%s222 + $0x18] sm:$0xff]
        %v365 = vld [vmem:[%s222 + $0x20] sm:$0x3]
        %v366 = vld [vmem:[%s222 + $0x28] sm:$0xff]
        %v367 = vld [vmem:[%s222 + $0x30] sm:$0xff]
        %v368 = vld [vmem:[%s222 + $0x38] sm:$0xff]
        %v369 = vld [vmem:[%s222 + $0x40] sm:$0xff]
        %v370 = vld [vmem:[%s222 + $0x48] sm:$0x3]
        %v371 = vld [vmem:[%s222 + $0x50] sm:$0xff]
        %v372 = vld [vmem:[%s222 + $0x58] sm:$0xff]
        %v373 = vld [vmem:[%s222 + $0x60] sm:$0xff]
        %v374 = vld [vmem:[%s222 + $0x68] sm:$0xff]
        %v375 = vld [vmem:[%s222 + $0x70] sm:$0x3]
        %v376 = vld [vmem:[%s222 + $0x78] sm:$0xff]
        %v377 = vld [vmem:[%s222 + $0x80] sm:$0xff]
        %v378 = vld [vmem:[%s222 + $0x88] sm:$0xff]
        %v379 = vld [vmem:[%s222 + $0x90] sm:$0xff]
        %v380 = vld [vmem:[%s222 + $0x98] sm:$0x3]
        %v381 = vld [vmem:[%s222 + $0xa0] sm:$0xff]
        %v382 = vld [vmem:[%s222 + $0xa8] sm:$0xff]
        %v383 = vld [vmem:[%s222 + $0xb0] sm:$0xff]
        %v384 = vld [vmem:[%s222 + $0xb8] sm:$0xff]
        %v385 = vld [vmem:[%s222 + $0xc0] sm:$0x3]
        %v386 = vld [vmem:[%s222 + $0xc8] sm:$0xff]
        %v387 = vld [vmem:[%s222 + $0xd0] sm:$0xff]
        %v388 = vld [vmem:[%s222 + $0xd8] sm:$0xff]
        %v389 = vld [vmem:[%s222 + $0xe0] sm:$0xff]
        %v390 = vld [vmem:[%s222 + $0xe8] sm:$0x3]
        %v391 = vld [vmem:[%s222 + $0xf0] sm:$0xff]
        %v392 = vld [vmem:[%s222 + $0xf8] sm:$0xff]
        %v393 = vld [vmem:[%s222 + $0x100] sm:$0xff]
        %v394 = vld [vmem:[%s222 + $0x108] sm:$0xff]
        %v395 = vld [vmem:[%s222 + $0x110] sm:$0x3]
        %v396 = vld [vmem:[%s222 + $0x118] sm:$0xff]
        %v397 = vld [vmem:[%s222 + $0x120] sm:$0xff]
        %v398 = vld [vmem:[%s222 + $0x128] sm:$0xff]
        %v399 = vld [vmem:[%s222 + $0x130] sm:$0xff]
        %v400 = vld [vmem:[%s222 + $0x138] sm:$0x3]
        %v401 = vld [vmem:[%s222 + $0x140] sm:$0xff]
        %v402 = vld [vmem:[%s222 + $0x148] sm:$0xff]
        %v403 = vld [vmem:[%s222 + $0x150] sm:$0xff]
        %v404 = vld [vmem:[%s222 + $0x158] sm:$0xff]
        %v405 = vld [vmem:[%s222 + $0x160] sm:$0x3]
        %v406 = vld [vmem:[%s222 + $0x168] sm:$0xff]
        %v407 = vld [vmem:[%s222 + $0x170] sm:$0xff]
        %v408 = vld [vmem:[%s222 + $0x178] sm:$0xff]
        %v409 = vld [vmem:[%s222 + $0x180] sm:$0xff]
        %v410 = vld [vmem:[%s222 + $0x188] sm:$0x3]
        %v411 = vld [vmem:[%s222 + $0x190] sm:$0xff]
        %v412 = vld [vmem:[%s222 + $0x198] sm:$0xff]
        %v413 = vld [vmem:[%s222 + $0x1a0] sm:$0xff]
        %v414 = vld [vmem:[%s222 + $0x1a8] sm:$0xff]
        %v415 = vld [vmem:[%s222 + $0x1b0] sm:$0x3]
        %v416 = vld [vmem:[%s222 + $0x1b8] sm:$0xff]
        %v417 = vld [vmem:[%s222 + $0x1c0] sm:$0xff]
        %v418 = vld [vmem:[%s222 + $0x1c8] sm:$0xff]
        %v419 = vld [vmem:[%s222 + $0x1d0] sm:$0xff]
        %v420 = vld [vmem:[%s222 + $0x1d8] sm:$0x3]
        %v421 = vld [vmem:[%s222 + $0x1e0] sm:$0xff]
        %v422 = vld [vmem:[%s222 + $0x1e8] sm:$0xff]
        %v423 = vld [vmem:[%s222 + $0x1f0] sm:$0xff]
        %v424 = vld [vmem:[%s222 + $0x1f8] sm:$0xff]
        %v425 = vld [vmem:[%s222 + $0x200] sm:$0x3]
        %v426 = vld [vmem:[%s222 + $0x208] sm:$0xff]
        %v427 = vld [vmem:[%s222 + $0x210] sm:$0xff]
        %v428 = vld [vmem:[%s222 + $0x218] sm:$0xff]
        %v429 = vld [vmem:[%s222 + $0x220] sm:$0xff]
        %v430 = vld [vmem:[%s222 + $0x228] sm:$0x3]
        %v431 = vld [vmem:[%s222 + $0x230] sm:$0xff]
        %v432 = vld [vmem:[%s222 + $0x238] sm:$0xff]
        %v433 = vld [vmem:[%s222 + $0x240] sm:$0xff]
        %v434 = vld [vmem:[%s222 + $0x248] sm:$0xff]
        %v435 = vld [vmem:[%s222 + $0x250] sm:$0x3]
        %v436 = vld [vmem:[%s222 + $0x258] sm:$0xff]
        %v437 = vld [vmem:[%s222 + $0x260] sm:$0xff]
        %v438 = vld [vmem:[%s222 + $0x268] sm:$0xff]
        %v439 = vld [vmem:[%s222 + $0x270] sm:$0xff]
        %v440 = vld [vmem:[%s222 + $0x278] sm:$0x3]
        %v441 = vld [vmem:[%s222 + $0x280] sm:$0xff]
        %v442 = vld [vmem:[%s222 + $0x288] sm:$0xff]
        %v443 = vld [vmem:[%s222 + $0x290] sm:$0xff]
        %v444 = vld [vmem:[%s222 + $0x298] sm:$0xff]
        %v445 = vld [vmem:[%s222 + $0x2a0] sm:$0x3]
        %v446 = vld [vmem:[%s222 + $0x2a8] sm:$0xff]
        %v447 = vld [vmem:[%s222 + $0x2b0] sm:$0xff]
        %v448 = vld [vmem:[%s222 + $0x2b8] sm:$0xff]
        %v449 = vld [vmem:[%s222 + $0x2c0] sm:$0xff]
        %v450 = vld [vmem:[%s222 + $0x2c8] sm:$0x3]
        %v451 = vld [vmem:[%s222 + $0x2d0] sm:$0xff]
        %v452 = vld [vmem:[%s222 + $0x2d8] sm:$0xff]
        %v453 = vld [vmem:[%s222 + $0x2e0] sm:$0xff]
        %v454 = vld [vmem:[%s222 + $0x2e8] sm:$0xff]
        %v455 = vld [vmem:[%s222 + $0x2f0] sm:$0x3]
        %v456 = vld [vmem:[%s222 + $0x2f8] sm:$0xff]
        %v457 = vld [vmem:[%s222 + $0x300] sm:$0xff]
        %v458 = vld [vmem:[%s222 + $0x308] sm:$0xff]
        %v459 = vld [vmem:[%s222 + $0x310] sm:$0xff]
        %v460 = vld [vmem:[%s222 + $0x318] sm:$0x3]
        %v461 = vld [vmem:[%s222 + $0x320] sm:$0xff]
        %v462 = vld [vmem:[%s222 + $0x328] sm:$0xff]
        %v463 = vld [vmem:[%s222 + $0x330] sm:$0xff]
        %v464 = vld [vmem:[%s222 + $0x338] sm:$0xff]
        %v465 = vld [vmem:[%s222 + $0x340] sm:$0x3]
        %v466 = vld [vmem:[%s222 + $0x348] sm:$0xff]
        %v467 = vld [vmem:[%s222 + $0x350] sm:$0xff]
        %v468 = vld [vmem:[%s222 + $0x358] sm:$0xff]
        %v469 = vld [vmem:[%s222 + $0x360] sm:$0xff]
        %v470 = vld [vmem:[%s222 + $0x368] sm:$0x3]
        %v471 = vld [vmem:[%s222 + $0x370] sm:$0xff]
        %v472 = vld [vmem:[%s222 + $0x378] sm:$0xff]
        %v473 = vld [vmem:[%s222 + $0x380] sm:$0xff]
        %v474 = vld [vmem:[%s222 + $0x388] sm:$0xff]
        %v475 = vld [vmem:[%s222 + $0x390] sm:$0x3]
        %v476 = vld [vmem:[%s222 + $0x398] sm:$0xff]
        %v477 = vld [vmem:[%s222 + $0x3a0] sm:$0xff]
        %v478 = vld [vmem:[%s222 + $0x3a8] sm:$0xff]
        %v479 = vld [vmem:[%s222 + $0x3b0] sm:$0xff]
        %v480 = vld [vmem:[%s222 + $0x3b8] sm:$0x3]
        %v481 = vld [vmem:[%s222 + $0x3c0] sm:$0xff]
        %v482 = vld [vmem:[%s222 + $0x3c8] sm:$0xff]
        %v483 = vld [vmem:[%s222 + $0x3d0] sm:$0xff]
        %v484 = vld [vmem:[%s222 + $0x3d8] sm:$0xff]
        %v485 = vld [vmem:[%s222 + $0x3e0] sm:$0x3]
        %v486 = vld [vmem:[%s222 + $0x3e8] sm:$0xff]
        %v487 = vld [vmem:[%s222 + $0x3f0] sm:$0xff]
        %v488 = vld [vmem:[%s222 + $0x3f8] sm:$0xff]
        %v489 = vld [vmem:[%s222 + $0x400] sm:$0xff]
        %v490 = vld [vmem:[%s222 + $0x408] sm:$0x3]
        %v491 = vld [vmem:[%s222 + $0x410] sm:$0xff]
        %v492 = vld [vmem:[%s222 + $0x418] sm:$0xff]
        %v493 = vld [vmem:[%s222 + $0x420] sm:$0xff]
        %v494 = vld [vmem:[%s222 + $0x428] sm:$0xff]
        %v495 = vld [vmem:[%s222 + $0x430] sm:$0x3]
        %v496 = vld [vmem:[%s222 + $0x438] sm:$0xff]
        %v497 = vld [vmem:[%s222 + $0x440] sm:$0xff]
        %v498 = vld [vmem:[%s222 + $0x448] sm:$0xff]
        %v499 = vld [vmem:[%s222 + $0x450] sm:$0xff]
        %v500 = vld [vmem:[%s222 + $0x458] sm:$0x3]
        %v501 = vld [vmem:[%s222 + $0x460] sm:$0xff]
        %v502 = vld [vmem:[%s222 + $0x468] sm:$0xff]
        %v503 = vld [vmem:[%s222 + $0x470] sm:$0xff]
        %v504 = vld [vmem:[%s222 + $0x478] sm:$0xff]
        %v505 = vld [vmem:[%s222 + $0x480] sm:$0x3]
        %v506 = vld [vmem:[%s222 + $0x488] sm:$0xff]
        %v507 = vld [vmem:[%s222 + $0x490] sm:$0xff]
        %v508 = vld [vmem:[%s222 + $0x498] sm:$0xff]
        %v509 = vld [vmem:[%s222 + $0x4a0] sm:$0xff]
        %v510 = vld [vmem:[%s222 + $0x4a8] sm:$0x3]
        %v511 = vld [vmem:[%s222 + $0x4b0] sm:$0xff]
        %v512 = vld [vmem:[%s222 + $0x4b8] sm:$0xff]
        %v513 = vld [vmem:[%s222 + $0x4c0] sm:$0xff]
        %v514 = vld [vmem:[%s222 + $0x4c8] sm:$0xff]
        %v515 = vld [vmem:[%s222 + $0x4d0] sm:$0x3]
        %v516 = vld [vmem:[%s222 + $0x4d8] sm:$0xff]
        %v517 = vld [vmem:[%s222 + $0x4e0] sm:$0xff]
        %v518 = vld [vmem:[%s222 + $0x4e8] sm:$0xff]
        %v519 = vld [vmem:[%s222 + $0x4f0] sm:$0xff]
        %v520 = vld [vmem:[%s222 + $0x4f8] sm:$0x3]
        %v521 = vld [vmem:[%s222 + $0x500] sm:$0xff]
        %v522 = vld [vmem:[%s222 + $0x508] sm:$0xff]
        %v523 = vld [vmem:[%s222 + $0x510] sm:$0xff]
        %v524 = vld [vmem:[%s222 + $0x518] sm:$0xff]
        %v525 = vld [vmem:[%s222 + $0x520] sm:$0x3]
        %v526 = vld [vmem:[%s222 + $0x528] sm:$0xff]
        %v527 = vld [vmem:[%s222 + $0x530] sm:$0xff]
        %v528 = vld [vmem:[%s222 + $0x538] sm:$0xff]
        %v529 = vld [vmem:[%s222 + $0x540] sm:$0xff]
        %v530 = vld [vmem:[%s222 + $0x548] sm:$0x3]
        %v531 = vld [vmem:[#allocation2] sm:$0xff]
        %v532 = vld [vmem:[#allocation2 + $0x8] sm:$0xff]
        %v533 = vld [vmem:[#allocation2 + $0x10] sm:$0xff]
        %v534 = vld [vmem:[#allocation2 + $0x18] sm:$0xff]
        %v535 = vld [vmem:[#allocation2 + $0x20] sm:$0xff]
        %v536 = vld [vmem:[#allocation2 + $0x28] sm:$0xff]
        %v537 = vld [vmem:[#allocation2 + $0x30] sm:$0xff]
        %v538 = vld [vmem:[#allocation2 + $0x38] sm:$0xff]
        %v539 = vld [vmem:[#allocation2 + $0x40] sm:$0xff]
        %v540 = vld [vmem:[#allocation2 + $0x48] sm:$0xff]
        %v541 = vld [vmem:[#allocation2 + $0x50] sm:$0xff]
        %v542 = vld [vmem:[#allocation2 + $0x58] sm:$0xff]
        %v543 = vld [vmem:[#allocation2 + $0x60] sm:$0xff]
        %v544 = vld [vmem:[#allocation2 + $0x68] sm:$0xff]
        %v545 = vld [vmem:[#allocation2 + $0x70] sm:$0xff]
        %v546 = vld [vmem:[#allocation2 + $0x78] sm:$0xff]
        %v547 = vld [vmem:[#allocation2 + $0x80] sm:$0xff]
        %v548 = vld [vmem:[#allocation2 + $0x88] sm:$0xff]
        %v549 = vld [vmem:[#allocation2 + $0x90] sm:$0xff]
        %v550 = vld [vmem:[#allocation2 + $0x98] sm:$0xff]
        %v551 = vld [vmem:[#allocation2 + $0xa0] sm:$0xff]
        %v552 = vld [vmem:[#allocation2 + $0xa8] sm:$0xff]
        %v553 = vld [vmem:[#allocation2 + $0xb0] sm:$0xff]
        %v554 = vld [vmem:[#allocation2 + $0xb8] sm:$0xff]
        %v555 = vld [vmem:[#allocation2 + $0xc0] sm:$0xff]
        %v556 = vld [vmem:[#allocation2 + $0xc8] sm:$0xff]
        %v557 = vld [vmem:[#allocation2 + $0xd0] sm:$0xff]
        %v558 = vld [vmem:[#allocation2 + $0xd8] sm:$0xff]
        %v559 = vld [vmem:[#allocation2 + $0xe0] sm:$0xff]
        %v560 = vld [vmem:[#allocation2 + $0xe8] sm:$0xff]
        %v561 = vld [vmem:[#allocation2 + $0xf0] sm:$0xff]
        %v562 = vld [vmem:[#allocation2 + $0xf8] sm:$0xff]
        %v563 = vld [vmem:[#allocation2 + $0x100] sm:$0xff]
        %v564 = vld [vmem:[#allocation2 + $0x108] sm:$0xff]
        %v565 = vld [vmem:[#allocation2 + $0x110] sm:$0xff]
        %v566 = vld [vmem:[#allocation2 + $0x118] sm:$0xff]
        %v567 = vld [vmem:[#allocation2 + $0x120] sm:$0xff]
        %v568 = vld [vmem:[#allocation2 + $0x128] sm:$0xff]
        %v569 = vld [vmem:[#allocation2 + $0x130] sm:$0xff]
        %v570 = vld [vmem:[#allocation2 + $0x138] sm:$0xff]
        %v571 = vld [vmem:[#allocation2 + $0x140] sm:$0xff]
        %v572 = vld [vmem:[#allocation2 + $0x148] sm:$0xff]
        %v573 = vld [vmem:[#allocation2 + $0x150] sm:$0xff]
        %v574 = vld [vmem:[#allocation2 + $0x158] sm:$0xff]
        %v575 = vld [vmem:[#allocation2 + $0x160] sm:$0xff]
        %v576 = vld [vmem:[#allocation2 + $0x168] sm:$0xff]
        %v577 = vld [vmem:[#allocation2 + $0x170] sm:$0xff]
        %v578 = vld [vmem:[#allocation2 + $0x178] sm:$0xff]
        %v579 = vld [vmem:[#allocation2 + $0x180] sm:$0xff]
        %v580 = vld [vmem:[#allocation2 + $0x188] sm:$0xff]
        %v581 = vld [vmem:[#allocation2 + $0x190] sm:$0xff]
        %v582 = vld [vmem:[#allocation2 + $0x198] sm:$0xff]
        %v583 = vld [vmem:[#allocation2 + $0x1a0] sm:$0xff]
        %v584 = vld [vmem:[#allocation2 + $0x1a8] sm:$0xff]
        %v585 = vld [vmem:[#allocation2 + $0x1b0] sm:$0xff]
        %v586 = vld [vmem:[#allocation2 + $0x1b8] sm:$0xff]
        %v587 = vld [vmem:[#allocation2 + $0x1c0] sm:$0xff]
        %v588 = vld [vmem:[#allocation2 + $0x1c8] sm:$0xff]
        %v589 = vld [vmem:[#allocation2 + $0x1d0] sm:$0xff]
        %v590 = vld [vmem:[#allocation2 + $0x1d8] sm:$0xff]
        %v591 = vld [vmem:[#allocation2 + $0x1e0] sm:$0xff]
        %v592 = vld [vmem:[#allocation2 + $0x1e8] sm:$0xff]
        %v593 = vld [vmem:[#allocation2 + $0x1f0] sm:$0xff]
        %v594 = vld [vmem:[#allocation2 + $0x1f8] sm:$0xff]
        %v595 = vld [vmem:[#allocation2 + $0x200] sm:$0xff]
        %v596 = vld [vmem:[#allocation2 + $0x208] sm:$0xff]
        %v597 = vld [vmem:[#allocation2 + $0x210] sm:$0xff]
        %v598 = vld [vmem:[#allocation2 + $0x218] sm:$0xff]
        %v599 = vld [vmem:[#allocation2 + $0x220] sm:$0xff]
        %v600 = vld [vmem:[#allocation2 + $0x228] sm:$0xff]
        %v601 = vld [vmem:[#allocation2 + $0x230] sm:$0xff]
        %v602 = vld [vmem:[#allocation2 + $0x238] sm:$0xff]
        %v603 = vld [vmem:[#allocation2 + $0x240] sm:$0xff]
        %v604 = vld [vmem:[#allocation2 + $0x248] sm:$0xff]
        %v605 = vld [vmem:[#allocation2 + $0x250] sm:$0xff]
        %v606 = vld [vmem:[#allocation2 + $0x258] sm:$0xff]
        %v607 = vld [vmem:[#allocation2 + $0x260] sm:$0xff]
        %v608 = vld [vmem:[#allocation2 + $0x268] sm:$0xff]
        %v609 = vld [vmem:[#allocation2 + $0x270] sm:$0xff]
        %v610 = vld [vmem:[#allocation2 + $0x278] sm:$0xff]
        %v611 = vld [vmem:[#allocation2 + $0x280] sm:$0xff]
        %v612 = vld [vmem:[#allocation2 + $0x288] sm:$0xff]
        %v613 = vld [vmem:[#allocation2 + $0x290] sm:$0xff]
        %v614 = vld [vmem:[#allocation2 + $0x298] sm:$0xff]
        %v615 = vld [vmem:[#allocation2 + $0x2a0] sm:$0xff]
        %v616 = vld [vmem:[#allocation2 + $0x2a8] sm:$0xff]
        %v617 = vld [vmem:[#allocation2 + $0x2b0] sm:$0xff]
        %v618 = vld [vmem:[#allocation2 + $0x2b8] sm:$0xff]
        %v619 = vld [vmem:[#allocation2 + $0x2c0] sm:$0xff]
        %v620 = vld [vmem:[#allocation2 + $0x2c8] sm:$0xff]
        %v621 = vld [vmem:[#allocation2 + $0x2d0] sm:$0xff]
        %v622 = vld [vmem:[#allocation2 + $0x2d8] sm:$0xff]
        %v623 = vld [vmem:[#allocation2 + $0x2e0] sm:$0xff]
        %v624 = vld [vmem:[#allocation2 + $0x2e8] sm:$0xff]
        %v625 = vld [vmem:[#allocation2 + $0x2f0] sm:$0xff]
        %v626 = vld [vmem:[#allocation2 + $0x2f8] sm:$0xff]
        %v627 = vld [vmem:[#allocation2 + $0x300] sm:$0xff]
        %v628 = vld [vmem:[#allocation2 + $0x308] sm:$0xff]
        %v629 = vld [vmem:[#allocation2 + $0x310] sm:$0xff]
        %v630 = vld [vmem:[#allocation2 + $0x318] sm:$0xff]
        %v631 = vld [vmem:[#allocation2 + $0x320] sm:$0xff]
        %v632 = vld [vmem:[#allocation2 + $0x328] sm:$0xff]
        %v633 = vld [vmem:[#allocation2 + $0x330] sm:$0xff]
        %v634 = vld [vmem:[#allocation2 + $0x338] sm:$0xff]
        %v635 = vld [vmem:[#allocation2 + $0x340] sm:$0xff]
        %v636 = vld [vmem:[#allocation2 + $0x348] sm:$0xff]
        %v637 = vld [vmem:[#allocation2 + $0x350] sm:$0xff]
        %v638 = vld [vmem:[#allocation2 + $0x358] sm:$0xff]
        %v639 = vld [vmem:[#allocation2 + $0x360] sm:$0xff]
        %v640 = vld [vmem:[#allocation2 + $0x368] sm:$0xff]
        %v641 = vld [vmem:[#allocation2 + $0x370] sm:$0xff]
        %v642 = vld [vmem:[#allocation2 + $0x378] sm:$0xff]
        %v643 = vld [vmem:[#allocation2 + $0x380] sm:$0xff]
        %v644 = vld [vmem:[#allocation2 + $0x388] sm:$0xff]
        %v645 = vld [vmem:[#allocation2 + $0x390] sm:$0xff]
        %v646 = vld [vmem:[#allocation2 + $0x398] sm:$0xff]
        %v647 = vld [vmem:[#allocation2 + $0x3a0] sm:$0xff]
        %v648 = vld [vmem:[#allocation2 + $0x3a8] sm:$0xff]
        %v649 = vld [vmem:[#allocation2 + $0x3b0] sm:$0xff]
        %v650 = vld [vmem:[#allocation2 + $0x3b8] sm:$0xff]
        %v651 = vld [vmem:[#allocation2 + $0x3c0] sm:$0xff]
        %v652 = vld [vmem:[#allocation2 + $0x3c8] sm:$0xff]
        %v653 = vld [vmem:[#allocation2 + $0x3d0] sm:$0xff]
        %v654 = vld [vmem:[#allocation2 + $0x3d8] sm:$0xff]
        %v655 = vld [vmem:[#allocation2 + $0x3e0] sm:$0xff]
        %v656 = vld [vmem:[#allocation2 + $0x3e8] sm:$0xff]
        %v657 = vld [vmem:[#allocation2 + $0x3f0] sm:$0xff]
        %v658 = vld [vmem:[#allocation2 + $0x3f8] sm:$0xff]
        %v659 = vld [vmem:[%s227] sm:$0x1]
        %661 = vset.pattern.permute.xlu0 0
        %662 = vperm.xlu0 %661, %v361
        %v663 = vpop.permute.xlu0 %662
        %666 = vset.pattern.permute.xlu0 0
        %667 = vperm.xlu0 %666, %v362
        %v668 = vpop.permute.xlu0 %667
        %671 = vset.pattern.permute.xlu0 0
        %672 = vperm.xlu0 %671, %v363
        %v673 = vpop.permute.xlu0 %672
        %676 = vset.pattern.permute.xlu0 0
        %677 = vperm.xlu0 %676, %v364
        %v678 = vpop.permute.xlu0 %677
        %681 = vset.pattern.permute.xlu0 0
        %682 = vperm.xlu0 %681, %v366
        %v683 = vpop.permute.xlu0 %682
        %686 = vset.pattern.permute.xlu0 0
        %687 = vperm.xlu0 %686, %v367
        %v688 = vpop.permute.xlu0 %687
        %691 = vset.pattern.permute.xlu0 0
        %692 = vperm.xlu0 %691, %v368
        %v693 = vpop.permute.xlu0 %692
        %696 = vset.pattern.permute.xlu0 0
        %697 = vperm.xlu0 %696, %v369
        %v698 = vpop.permute.xlu0 %697
        %701 = vset.pattern.permute.xlu0 0
        %702 = vperm.xlu0 %701, %v371
        %v703 = vpop.permute.xlu0 %702
        %706 = vset.pattern.permute.xlu0 0
        %707 = vperm.xlu0 %706, %v372
        %v708 = vpop.permute.xlu0 %707
        %711 = vset.pattern.permute.xlu0 0
        %712 = vperm.xlu0 %711, %v373
        %v713 = vpop.permute.xlu0 %712
        %716 = vset.pattern.permute.xlu0 0
        %717 = vperm.xlu0 %716, %v374
        %v718 = vpop.permute.xlu0 %717
        %721 = vset.pattern.permute.xlu0 0
        %722 = vperm.xlu0 %721, %v376
        %v723 = vpop.permute.xlu0 %722
        %726 = vset.pattern.permute.xlu0 0
        %727 = vperm.xlu0 %726, %v377
        %v728 = vpop.permute.xlu0 %727
        %731 = vset.pattern.permute.xlu0 0
        %732 = vperm.xlu0 %731, %v378
        %v733 = vpop.permute.xlu0 %732
        %736 = vset.pattern.permute.xlu0 0
        %737 = vperm.xlu0 %736, %v379
        %v738 = vpop.permute.xlu0 %737
        %741 = vset.pattern.permute.xlu0 0
        %742 = vperm.xlu0 %741, %v381
        %v743 = vpop.permute.xlu0 %742
        %746 = vset.pattern.permute.xlu0 0
        %747 = vperm.xlu0 %746, %v382
        %v748 = vpop.permute.xlu0 %747
        %751 = vset.pattern.permute.xlu0 0
        %752 = vperm.xlu0 %751, %v383
        %v753 = vpop.permute.xlu0 %752
        %756 = vset.pattern.permute.xlu0 0
        %757 = vperm.xlu0 %756, %v384
        %v758 = vpop.permute.xlu0 %757
        %761 = vset.pattern.permute.xlu0 0
        %762 = vperm.xlu0 %761, %v386
        %v763 = vpop.permute.xlu0 %762
        %766 = vset.pattern.permute.xlu0 0
        %767 = vperm.xlu0 %766, %v387
        %v768 = vpop.permute.xlu0 %767
        %771 = vset.pattern.permute.xlu0 0
        %772 = vperm.xlu0 %771, %v388
        %v773 = vpop.permute.xlu0 %772
        %776 = vset.pattern.permute.xlu0 0
        %777 = vperm.xlu0 %776, %v389
        %v778 = vpop.permute.xlu0 %777
        %781 = vset.pattern.permute.xlu0 0
        %782 = vperm.xlu0 %781, %v391
        %v783 = vpop.permute.xlu0 %782
        %786 = vset.pattern.permute.xlu0 0
        %787 = vperm.xlu0 %786, %v392
        %v788 = vpop.permute.xlu0 %787
        %791 = vset.pattern.permute.xlu0 0
        %792 = vperm.xlu0 %791, %v393
        %v793 = vpop.permute.xlu0 %792
        %796 = vset.pattern.permute.xlu0 0
        %797 = vperm.xlu0 %796, %v394
        %v798 = vpop.permute.xlu0 %797
        %801 = vset.pattern.permute.xlu0 0
        %802 = vperm.xlu0 %801, %v396
        %v803 = vpop.permute.xlu0 %802
        %806 = vset.pattern.permute.xlu0 0
        %807 = vperm.xlu0 %806, %v397
        %v808 = vpop.permute.xlu0 %807
        %811 = vset.pattern.permute.xlu0 0
        %812 = vperm.xlu0 %811, %v398
        %v813 = vpop.permute.xlu0 %812
        %816 = vset.pattern.permute.xlu0 0
        %817 = vperm.xlu0 %816, %v399
        %v818 = vpop.permute.xlu0 %817
        %821 = vset.pattern.permute.xlu0 0
        %822 = vperm.xlu0 %821, %v401
        %v823 = vpop.permute.xlu0 %822
        %826 = vset.pattern.permute.xlu0 0
        %827 = vperm.xlu0 %826, %v402
        %v828 = vpop.permute.xlu0 %827
        %831 = vset.pattern.permute.xlu0 0
        %832 = vperm.xlu0 %831, %v403
        %v833 = vpop.permute.xlu0 %832
        %836 = vset.pattern.permute.xlu0 0
        %837 = vperm.xlu0 %836, %v404
        %v838 = vpop.permute.xlu0 %837
        %841 = vset.pattern.permute.xlu0 0
        %842 = vperm.xlu0 %841, %v406
        %v843 = vpop.permute.xlu0 %842
        %846 = vset.pattern.permute.xlu0 0
        %847 = vperm.xlu0 %846, %v407
        %v848 = vpop.permute.xlu0 %847
        %851 = vset.pattern.permute.xlu0 0
        %852 = vperm.xlu0 %851, %v408
        %v853 = vpop.permute.xlu0 %852
        %856 = vset.pattern.permute.xlu0 0
        %857 = vperm.xlu0 %856, %v409
        %v858 = vpop.permute.xlu0 %857
        %861 = vset.pattern.permute.xlu0 0
        %862 = vperm.xlu0 %861, %v411
        %v863 = vpop.permute.xlu0 %862
        %866 = vset.pattern.permute.xlu0 0
        %867 = vperm.xlu0 %866, %v412
        %v868 = vpop.permute.xlu0 %867
        %871 = vset.pattern.permute.xlu0 0
        %872 = vperm.xlu0 %871, %v413
        %v873 = vpop.permute.xlu0 %872
        %876 = vset.pattern.permute.xlu0 0
        %877 = vperm.xlu0 %876, %v414
        %v878 = vpop.permute.xlu0 %877
        %881 = vset.pattern.permute.xlu0 0
        %882 = vperm.xlu0 %881, %v416
        %v883 = vpop.permute.xlu0 %882
        %886 = vset.pattern.permute.xlu0 0
        %887 = vperm.xlu0 %886, %v417
        %v888 = vpop.permute.xlu0 %887
        %891 = vset.pattern.permute.xlu0 0
        %892 = vperm.xlu0 %891, %v418
        %v893 = vpop.permute.xlu0 %892
        %896 = vset.pattern.permute.xlu0 0
        %897 = vperm.xlu0 %896, %v419
        %v898 = vpop.permute.xlu0 %897
        %901 = vset.pattern.permute.xlu0 0
        %902 = vperm.xlu0 %901, %v421
        %v903 = vpop.permute.xlu0 %902
        %906 = vset.pattern.permute.xlu0 0
        %907 = vperm.xlu0 %906, %v422
        %v908 = vpop.permute.xlu0 %907
        %911 = vset.pattern.permute.xlu0 0
        %912 = vperm.xlu0 %911, %v423
        %v913 = vpop.permute.xlu0 %912
        %916 = vset.pattern.permute.xlu0 0
        %917 = vperm.xlu0 %916, %v424
        %v918 = vpop.permute.xlu0 %917
        %921 = vset.pattern.permute.xlu0 0
        %922 = vperm.xlu0 %921, %v426
        %v923 = vpop.permute.xlu0 %922
        %926 = vset.pattern.permute.xlu0 0
        %927 = vperm.xlu0 %926, %v427
        %v928 = vpop.permute.xlu0 %927
        %931 = vset.pattern.permute.xlu0 0
        %932 = vperm.xlu0 %931, %v428
        %v933 = vpop.permute.xlu0 %932
        %936 = vset.pattern.permute.xlu0 0
        %937 = vperm.xlu0 %936, %v429
        %v938 = vpop.permute.xlu0 %937
        %941 = vset.pattern.permute.xlu0 0
        %942 = vperm.xlu0 %941, %v431
        %v943 = vpop.permute.xlu0 %942
        %946 = vset.pattern.permute.xlu0 0
        %947 = vperm.xlu0 %946, %v432
        %v948 = vpop.permute.xlu0 %947
        %951 = vset.pattern.permute.xlu0 0
        %952 = vperm.xlu0 %951, %v433
        %v953 = vpop.permute.xlu0 %952
        %956 = vset.pattern.permute.xlu0 0
        %957 = vperm.xlu0 %956, %v434
        %v958 = vpop.permute.xlu0 %957
        %961 = vset.pattern.permute.xlu0 0
        %962 = vperm.xlu0 %961, %v436
        %v963 = vpop.permute.xlu0 %962
        %966 = vset.pattern.permute.xlu0 0
        %967 = vperm.xlu0 %966, %v437
        %v968 = vpop.permute.xlu0 %967
        %971 = vset.pattern.permute.xlu0 0
        %972 = vperm.xlu0 %971, %v438
        %v973 = vpop.permute.xlu0 %972
        %976 = vset.pattern.permute.xlu0 0
        %977 = vperm.xlu0 %976, %v439
        %v978 = vpop.permute.xlu0 %977
        %981 = vset.pattern.permute.xlu0 0
        %982 = vperm.xlu0 %981, %v441
        %v983 = vpop.permute.xlu0 %982
        %986 = vset.pattern.permute.xlu0 0
        %987 = vperm.xlu0 %986, %v442
        %v988 = vpop.permute.xlu0 %987
        %991 = vset.pattern.permute.xlu0 0
        %992 = vperm.xlu0 %991, %v443
        %v993 = vpop.permute.xlu0 %992
        %996 = vset.pattern.permute.xlu0 0
        %997 = vperm.xlu0 %996, %v444
        %v998 = vpop.permute.xlu0 %997
        %1001 = vset.pattern.permute.xlu0 0
        %1002 = vperm.xlu0 %1001, %v446
        %v1003 = vpop.permute.xlu0 %1002
        %1006 = vset.pattern.permute.xlu0 0
        %1007 = vperm.xlu0 %1006, %v447
        %v1008 = vpop.permute.xlu0 %1007
        %1011 = vset.pattern.permute.xlu0 0
        %1012 = vperm.xlu0 %1011, %v448
        %v1013 = vpop.permute.xlu0 %1012
        %1016 = vset.pattern.permute.xlu0 0
        %1017 = vperm.xlu0 %1016, %v449
        %v1018 = vpop.permute.xlu0 %1017
        %1021 = vset.pattern.permute.xlu0 0
        %1022 = vperm.xlu0 %1021, %v451
        %v1023 = vpop.permute.xlu0 %1022
        %1026 = vset.pattern.permute.xlu0 0
        %1027 = vperm.xlu0 %1026, %v452
        %v1028 = vpop.permute.xlu0 %1027
        %1031 = vset.pattern.permute.xlu0 0
        %1032 = vperm.xlu0 %1031, %v453
        %v1033 = vpop.permute.xlu0 %1032
        %1036 = vset.pattern.permute.xlu0 0
        %1037 = vperm.xlu0 %1036, %v454
        %v1038 = vpop.permute.xlu0 %1037
        %1041 = vset.pattern.permute.xlu0 0
        %1042 = vperm.xlu0 %1041, %v456
        %v1043 = vpop.permute.xlu0 %1042
        %1046 = vset.pattern.permute.xlu0 0
        %1047 = vperm.xlu0 %1046, %v457
        %v1048 = vpop.permute.xlu0 %1047
        %1051 = vset.pattern.permute.xlu0 0
        %1052 = vperm.xlu0 %1051, %v458
        %v1053 = vpop.permute.xlu0 %1052
        %1056 = vset.pattern.permute.xlu0 0
        %1057 = vperm.xlu0 %1056, %v459
        %v1058 = vpop.permute.xlu0 %1057
        %1061 = vset.pattern.permute.xlu0 0
        %1062 = vperm.xlu0 %1061, %v461
        %v1063 = vpop.permute.xlu0 %1062
        %1066 = vset.pattern.permute.xlu0 0
        %1067 = vperm.xlu0 %1066, %v462
        %v1068 = vpop.permute.xlu0 %1067
        %1071 = vset.pattern.permute.xlu0 0
        %1072 = vperm.xlu0 %1071, %v463
        %v1073 = vpop.permute.xlu0 %1072
        %1076 = vset.pattern.permute.xlu0 0
        %1077 = vperm.xlu0 %1076, %v464
        %v1078 = vpop.permute.xlu0 %1077
        %1081 = vset.pattern.permute.xlu0 0
        %1082 = vperm.xlu0 %1081, %v466
        %v1083 = vpop.permute.xlu0 %1082
        %1086 = vset.pattern.permute.xlu0 0
        %1087 = vperm.xlu0 %1086, %v467
        %v1088 = vpop.permute.xlu0 %1087
        %1091 = vset.pattern.permute.xlu0 0
        %1092 = vperm.xlu0 %1091, %v468
        %v1093 = vpop.permute.xlu0 %1092
        %1096 = vset.pattern.permute.xlu0 0
        %1097 = vperm.xlu0 %1096, %v469
        %v1098 = vpop.permute.xlu0 %1097
        %1101 = vset.pattern.permute.xlu0 0
        %1102 = vperm.xlu0 %1101, %v471
        %v1103 = vpop.permute.xlu0 %1102
        %1106 = vset.pattern.permute.xlu0 0
        %1107 = vperm.xlu0 %1106, %v472
        %v1108 = vpop.permute.xlu0 %1107
        %1111 = vset.pattern.permute.xlu0 0
        %1112 = vperm.xlu0 %1111, %v473
        %v1113 = vpop.permute.xlu0 %1112
        %1116 = vset.pattern.permute.xlu0 0
        %1117 = vperm.xlu0 %1116, %v474
        %v1118 = vpop.permute.xlu0 %1117
        %1121 = vset.pattern.permute.xlu0 0
        %1122 = vperm.xlu0 %1121, %v476
        %v1123 = vpop.permute.xlu0 %1122
        %1126 = vset.pattern.permute.xlu0 0
        %1127 = vperm.xlu0 %1126, %v477
        %v1128 = vpop.permute.xlu0 %1127
        %1131 = vset.pattern.permute.xlu0 0
        %1132 = vperm.xlu0 %1131, %v478
        %v1133 = vpop.permute.xlu0 %1132
        %1136 = vset.pattern.permute.xlu0 0
        %1137 = vperm.xlu0 %1136, %v479
        %v1138 = vpop.permute.xlu0 %1137
        %1141 = vset.pattern.permute.xlu0 0
        %1142 = vperm.xlu0 %1141, %v481
        %v1143 = vpop.permute.xlu0 %1142
        %1146 = vset.pattern.permute.xlu0 0
        %1147 = vperm.xlu0 %1146, %v482
        %v1148 = vpop.permute.xlu0 %1147
        %1151 = vset.pattern.permute.xlu0 0
        %1152 = vperm.xlu0 %1151, %v483
        %v1153 = vpop.permute.xlu0 %1152
        %1156 = vset.pattern.permute.xlu0 0
        %1157 = vperm.xlu0 %1156, %v484
        %v1158 = vpop.permute.xlu0 %1157
        %1161 = vset.pattern.permute.xlu0 0
        %1162 = vperm.xlu0 %1161, %v486
        %v1163 = vpop.permute.xlu0 %1162
        %1166 = vset.pattern.permute.xlu0 0
        %1167 = vperm.xlu0 %1166, %v487
        %v1168 = vpop.permute.xlu0 %1167
        %1171 = vset.pattern.permute.xlu0 0
        %1172 = vperm.xlu0 %1171, %v488
        %v1173 = vpop.permute.xlu0 %1172
        %1176 = vset.pattern.permute.xlu0 0
        %1177 = vperm.xlu0 %1176, %v489
        %v1178 = vpop.permute.xlu0 %1177
        %1181 = vset.pattern.permute.xlu0 0
        %1182 = vperm.xlu0 %1181, %v491
        %v1183 = vpop.permute.xlu0 %1182
        %1186 = vset.pattern.permute.xlu0 0
        %1187 = vperm.xlu0 %1186, %v492
        %v1188 = vpop.permute.xlu0 %1187
        %1191 = vset.pattern.permute.xlu0 0
        %1192 = vperm.xlu0 %1191, %v493
        %v1193 = vpop.permute.xlu0 %1192
        %1196 = vset.pattern.permute.xlu0 0
        %1197 = vperm.xlu0 %1196, %v494
        %v1198 = vpop.permute.xlu0 %1197
        %1201 = vset.pattern.permute.xlu0 0
        %1202 = vperm.xlu0 %1201, %v496
        %v1203 = vpop.permute.xlu0 %1202
        %1206 = vset.pattern.permute.xlu0 0
        %1207 = vperm.xlu0 %1206, %v497
        %v1208 = vpop.permute.xlu0 %1207
        %1211 = vset.pattern.permute.xlu0 0
        %1212 = vperm.xlu0 %1211, %v498
        %v1213 = vpop.permute.xlu0 %1212
        %1216 = vset.pattern.permute.xlu0 0
        %1217 = vperm.xlu0 %1216, %v499
        %v1218 = vpop.permute.xlu0 %1217
        %1221 = vset.pattern.permute.xlu0 0
        %1222 = vperm.xlu0 %1221, %v501
        %v1223 = vpop.permute.xlu0 %1222
        %1226 = vset.pattern.permute.xlu0 0
        %1227 = vperm.xlu0 %1226, %v502
        %v1228 = vpop.permute.xlu0 %1227
        %1231 = vset.pattern.permute.xlu0 0
        %1232 = vperm.xlu0 %1231, %v503
        %v1233 = vpop.permute.xlu0 %1232
        %1236 = vset.pattern.permute.xlu0 0
        %1237 = vperm.xlu0 %1236, %v504
        %v1238 = vpop.permute.xlu0 %1237
        %1241 = vset.pattern.permute.xlu0 0
        %1242 = vperm.xlu0 %1241, %v506
        %v1243 = vpop.permute.xlu0 %1242
        %1246 = vset.pattern.permute.xlu0 0
        %1247 = vperm.xlu0 %1246, %v507
        %v1248 = vpop.permute.xlu0 %1247
        %1251 = vset.pattern.permute.xlu0 0
        %1252 = vperm.xlu0 %1251, %v508
        %v1253 = vpop.permute.xlu0 %1252
        %1256 = vset.pattern.permute.xlu0 0
        %1257 = vperm.xlu0 %1256, %v509
        %v1258 = vpop.permute.xlu0 %1257
        %1261 = vset.pattern.permute.xlu0 0
        %1262 = vperm.xlu0 %1261, %v511
        %v1263 = vpop.permute.xlu0 %1262
        %1266 = vset.pattern.permute.xlu0 0
        %1267 = vperm.xlu0 %1266, %v512
        %v1268 = vpop.permute.xlu0 %1267
        %1271 = vset.pattern.permute.xlu0 0
        %1272 = vperm.xlu0 %1271, %v513
        %v1273 = vpop.permute.xlu0 %1272
        %1276 = vset.pattern.permute.xlu0 0
        %1277 = vperm.xlu0 %1276, %v514
        %v1278 = vpop.permute.xlu0 %1277
        %1281 = vset.pattern.permute.xlu0 0
        %1282 = vperm.xlu0 %1281, %v516
        %v1283 = vpop.permute.xlu0 %1282
        %1286 = vset.pattern.permute.xlu0 0
        %1287 = vperm.xlu0 %1286, %v517
        %v1288 = vpop.permute.xlu0 %1287
        %1291 = vset.pattern.permute.xlu0 0
        %1292 = vperm.xlu0 %1291, %v518
        %v1293 = vpop.permute.xlu0 %1292
        %1296 = vset.pattern.permute.xlu0 0
        %1297 = vperm.xlu0 %1296, %v519
        %v1298 = vpop.permute.xlu0 %1297
        %v1301 = vlaneseq
        %v1302 = vshrl.u32 %v1301, 7
        %v1303 = vsub.s32 0, %v1302
        %v1304 = vrot.slane %v659, %v1303
        %v1306 = vmul.f32 %v663, %v1304
        %v1307 = vmul.f32 %v668, %v1304
        %v1308 = vmul.f32 %v673, %v1304
        %v1309 = vmul.f32 %v678, %v1304
        %v1310 = vmul.f32 %v683, %v1304
        %v1311 = vmul.f32 %v688, %v1304
        %v1312 = vmul.f32 %v693, %v1304
        %v1313 = vmul.f32 %v698, %v1304
        %v1314 = vmul.f32 %v703, %v1304
        %v1315 = vmul.f32 %v708, %v1304
        %v1316 = vmul.f32 %v713, %v1304
        %v1317 = vmul.f32 %v718, %v1304
        %v1318 = vmul.f32 %v723, %v1304
        %v1319 = vmul.f32 %v728, %v1304
        %v1320 = vmul.f32 %v733, %v1304
        %v1321 = vmul.f32 %v738, %v1304
        %v1322 = vmul.f32 %v743, %v1304
        %v1323 = vmul.f32 %v748, %v1304
        %v1324 = vmul.f32 %v753, %v1304
        %v1325 = vmul.f32 %v758, %v1304
        %v1326 = vmul.f32 %v763, %v1304
        %v1327 = vmul.f32 %v768, %v1304
        %v1328 = vmul.f32 %v773, %v1304
        %v1329 = vmul.f32 %v778, %v1304
        %v1330 = vmul.f32 %v783, %v1304
        %v1331 = vmul.f32 %v788, %v1304
        %v1332 = vmul.f32 %v793, %v1304
        %v1333 = vmul.f32 %v798, %v1304
        %v1334 = vmul.f32 %v803, %v1304
        %v1335 = vmul.f32 %v808, %v1304
        %v1336 = vmul.f32 %v813, %v1304
        %v1337 = vmul.f32 %v818, %v1304
        %v1338 = vmul.f32 %v823, %v1304
        %v1339 = vmul.f32 %v828, %v1304
        %v1340 = vmul.f32 %v833, %v1304
        %v1341 = vmul.f32 %v838, %v1304
        %v1342 = vmul.f32 %v843, %v1304
        %v1343 = vmul.f32 %v848, %v1304
        %v1344 = vmul.f32 %v853, %v1304
        %v1345 = vmul.f32 %v858, %v1304
        %v1346 = vmul.f32 %v863, %v1304
        %v1347 = vmul.f32 %v868, %v1304
        %v1348 = vmul.f32 %v873, %v1304
        %v1349 = vmul.f32 %v878, %v1304
        %v1350 = vmul.f32 %v883, %v1304
        %v1351 = vmul.f32 %v888, %v1304
        %v1352 = vmul.f32 %v893, %v1304
        %v1353 = vmul.f32 %v898, %v1304
        %v1354 = vmul.f32 %v903, %v1304
        %v1355 = vmul.f32 %v908, %v1304
        %v1356 = vmul.f32 %v913, %v1304
        %v1357 = vmul.f32 %v918, %v1304
        %v1358 = vmul.f32 %v923, %v1304
        %v1359 = vmul.f32 %v928, %v1304
        %v1360 = vmul.f32 %v933, %v1304
        %v1361 = vmul.f32 %v938, %v1304
        %v1362 = vmul.f32 %v943, %v1304
        %v1363 = vmul.f32 %v948, %v1304
        %v1364 = vmul.f32 %v953, %v1304
        %v1365 = vmul.f32 %v958, %v1304
        %v1366 = vmul.f32 %v963, %v1304
        %v1367 = vmul.f32 %v968, %v1304
        %v1368 = vmul.f32 %v973, %v1304
        %v1369 = vmul.f32 %v978, %v1304
        %v1370 = vmul.f32 %v983, %v1304
        %v1371 = vmul.f32 %v988, %v1304
        %v1372 = vmul.f32 %v993, %v1304
        %v1373 = vmul.f32 %v998, %v1304
        %v1374 = vmul.f32 %v1003, %v1304
        %v1375 = vmul.f32 %v1008, %v1304
        %v1376 = vmul.f32 %v1013, %v1304
        %v1377 = vmul.f32 %v1018, %v1304
        %v1378 = vmul.f32 %v1023, %v1304
        %v1379 = vmul.f32 %v1028, %v1304
        %v1380 = vmul.f32 %v1033, %v1304
        %v1381 = vmul.f32 %v1038, %v1304
        %v1382 = vmul.f32 %v1043, %v1304
        %v1383 = vmul.f32 %v1048, %v1304
        %v1384 = vmul.f32 %v1053, %v1304
        %v1385 = vmul.f32 %v1058, %v1304
        %v1386 = vmul.f32 %v1063, %v1304
        %v1387 = vmul.f32 %v1068, %v1304
        %v1388 = vmul.f32 %v1073, %v1304
        %v1389 = vmul.f32 %v1078, %v1304
        %v1390 = vmul.f32 %v1083, %v1304
        %v1391 = vmul.f32 %v1088, %v1304
        %v1392 = vmul.f32 %v1093, %v1304
        %v1393 = vmul.f32 %v1098, %v1304
        %v1394 = vmul.f32 %v1103, %v1304
        %v1395 = vmul.f32 %v1108, %v1304
        %v1396 = vmul.f32 %v1113, %v1304
        %v1397 = vmul.f32 %v1118, %v1304
        %v1398 = vmul.f32 %v1123, %v1304
        %v1399 = vmul.f32 %v1128, %v1304
        %v1400 = vmul.f32 %v1133, %v1304
        %v1401 = vmul.f32 %v1138, %v1304
        %v1402 = vmul.f32 %v1143, %v1304
        %v1403 = vmul.f32 %v1148, %v1304
        %v1404 = vmul.f32 %v1153, %v1304
        %v1405 = vmul.f32 %v1158, %v1304
        %v1406 = vmul.f32 %v1163, %v1304
        %v1407 = vmul.f32 %v1168, %v1304
        %v1408 = vmul.f32 %v1173, %v1304
        %v1409 = vmul.f32 %v1178, %v1304
        %v1410 = vmul.f32 %v1183, %v1304
        %v1411 = vmul.f32 %v1188, %v1304
        %v1412 = vmul.f32 %v1193, %v1304
        %v1413 = vmul.f32 %v1198, %v1304
        %v1414 = vmul.f32 %v1203, %v1304
        %v1415 = vmul.f32 %v1208, %v1304
        %v1416 = vmul.f32 %v1213, %v1304
        %v1417 = vmul.f32 %v1218, %v1304
        %v1418 = vmul.f32 %v1223, %v1304
        %v1419 = vmul.f32 %v1228, %v1304
        %v1420 = vmul.f32 %v1233, %v1304
        %v1421 = vmul.f32 %v1238, %v1304
        %v1422 = vmul.f32 %v1243, %v1304
        %v1423 = vmul.f32 %v1248, %v1304
        %v1424 = vmul.f32 %v1253, %v1304
        %v1425 = vmul.f32 %v1258, %v1304
        %v1426 = vmul.f32 %v1263, %v1304
        %v1427 = vmul.f32 %v1268, %v1304
        %v1428 = vmul.f32 %v1273, %v1304
        %v1429 = vmul.f32 %v1278, %v1304
        %v1430 = vmul.f32 %v1283, %v1304
        %v1431 = vmul.f32 %v1288, %v1304
        %v1432 = vmul.f32 %v1293, %v1304
        %v1433 = vmul.f32 %v1298, %v1304
        %v1434 = vadd.f32 %v531, %v1306
        %v1435 = vadd.f32 %v532, %v1307
        %v1436 = vadd.f32 %v533, %v1308
        %v1437 = vadd.f32 %v534, %v1309
        %v1438 = vadd.f32 %v535, %v1310
        %v1439 = vadd.f32 %v536, %v1311
        %v1440 = vadd.f32 %v537, %v1312
        %v1441 = vadd.f32 %v538, %v1313
        %v1442 = vadd.f32 %v539, %v1314
        %v1443 = vadd.f32 %v540, %v1315
        %v1444 = vadd.f32 %v541, %v1316
        %v1445 = vadd.f32 %v542, %v1317
        %v1446 = vadd.f32 %v543, %v1318
        %v1447 = vadd.f32 %v544, %v1319
        %v1448 = vadd.f32 %v545, %v1320
        %v1449 = vadd.f32 %v546, %v1321
        %v1450 = vadd.f32 %v547, %v1322
        %v1451 = vadd.f32 %v548, %v1323
        %v1452 = vadd.f32 %v549, %v1324
        %v1453 = vadd.f32 %v550, %v1325
        %v1454 = vadd.f32 %v551, %v1326
        %v1455 = vadd.f32 %v552, %v1327
        %v1456 = vadd.f32 %v553, %v1328
        %v1457 = vadd.f32 %v554, %v1329
        %v1458 = vadd.f32 %v555, %v1330
        %v1459 = vadd.f32 %v556, %v1331
        %v1460 = vadd.f32 %v557, %v1332
        %v1461 = vadd.f32 %v558, %v1333
        %v1462 = vadd.f32 %v559, %v1334
        %v1463 = vadd.f32 %v560, %v1335
        %v1464 = vadd.f32 %v561, %v1336
        %v1465 = vadd.f32 %v562, %v1337
        %v1466 = vadd.f32 %v563, %v1338
        %v1467 = vadd.f32 %v564, %v1339
        %v1468 = vadd.f32 %v565, %v1340
        %v1469 = vadd.f32 %v566, %v1341
        %v1470 = vadd.f32 %v567, %v1342
        %v1471 = vadd.f32 %v568, %v1343
        %v1472 = vadd.f32 %v569, %v1344
        %v1473 = vadd.f32 %v570, %v1345
        %v1474 = vadd.f32 %v571, %v1346
        %v1475 = vadd.f32 %v572, %v1347
        %v1476 = vadd.f32 %v573, %v1348
        %v1477 = vadd.f32 %v574, %v1349
        %v1478 = vadd.f32 %v575, %v1350
        %v1479 = vadd.f32 %v576, %v1351
        %v1480 = vadd.f32 %v577, %v1352
        %v1481 = vadd.f32 %v578, %v1353
        %v1482 = vadd.f32 %v579, %v1354
        %v1483 = vadd.f32 %v580, %v1355
        %v1484 = vadd.f32 %v581, %v1356
        %v1485 = vadd.f32 %v582, %v1357
        %v1486 = vadd.f32 %v583, %v1358
        %v1487 = vadd.f32 %v584, %v1359
        %v1488 = vadd.f32 %v585, %v1360
        %v1489 = vadd.f32 %v586, %v1361
        %v1490 = vadd.f32 %v587, %v1362
        %v1491 = vadd.f32 %v588, %v1363
        %v1492 = vadd.f32 %v589, %v1364
        %v1493 = vadd.f32 %v590, %v1365
        %v1494 = vadd.f32 %v591, %v1366
        %v1495 = vadd.f32 %v592, %v1367
        %v1496 = vadd.f32 %v593, %v1368
        %v1497 = vadd.f32 %v594, %v1369
        %v1498 = vadd.f32 %v595, %v1370
        %v1499 = vadd.f32 %v596, %v1371
        %v1500 = vadd.f32 %v597, %v1372
        %v1501 = vadd.f32 %v598, %v1373
        %v1502 = vadd.f32 %v599, %v1374
        %v1503 = vadd.f32 %v600, %v1375
        %v1504 = vadd.f32 %v601, %v1376
        %v1505 = vadd.f32 %v602, %v1377
        %v1506 = vadd.f32 %v603, %v1378
        %v1507 = vadd.f32 %v604, %v1379
        %v1508 = vadd.f32 %v605, %v1380
        %v1509 = vadd.f32 %v606, %v1381
        %v1510 = vadd.f32 %v607, %v1382
        %v1511 = vadd.f32 %v608, %v1383
        %v1512 = vadd.f32 %v609, %v1384
        %v1513 = vadd.f32 %v610, %v1385
        %v1514 = vadd.f32 %v611, %v1386
        %v1515 = vadd.f32 %v612, %v1387
        %v1516 = vadd.f32 %v613, %v1388
        %v1517 = vadd.f32 %v614, %v1389
        %v1518 = vadd.f32 %v615, %v1390
        %v1519 = vadd.f32 %v616, %v1391
        %v1520 = vadd.f32 %v617, %v1392
        %v1521 = vadd.f32 %v618, %v1393
        %v1522 = vadd.f32 %v619, %v1394
        %v1523 = vadd.f32 %v620, %v1395
        %v1524 = vadd.f32 %v621, %v1396
        %v1525 = vadd.f32 %v622, %v1397
        %v1526 = vadd.f32 %v623, %v1398
        %v1527 = vadd.f32 %v624, %v1399
        %v1528 = vadd.f32 %v625, %v1400
        %v1529 = vadd.f32 %v626, %v1401
        %v1530 = vadd.f32 %v627, %v1402
        %v1531 = vadd.f32 %v628, %v1403
        %v1532 = vadd.f32 %v629, %v1404
        %v1533 = vadd.f32 %v630, %v1405
        %v1534 = vadd.f32 %v631, %v1406
        %v1535 = vadd.f32 %v632, %v1407
        %v1536 = vadd.f32 %v633, %v1408
        %v1537 = vadd.f32 %v634, %v1409
        %v1538 = vadd.f32 %v635, %v1410
        %v1539 = vadd.f32 %v636, %v1411
        %v1540 = vadd.f32 %v637, %v1412
        %v1541 = vadd.f32 %v638, %v1413
        %v1542 = vadd.f32 %v639, %v1414
        %v1543 = vadd.f32 %v640, %v1415
        %v1544 = vadd.f32 %v641, %v1416
        %v1545 = vadd.f32 %v642, %v1417
        %v1546 = vadd.f32 %v643, %v1418
        %v1547 = vadd.f32 %v644, %v1419
        %v1548 = vadd.f32 %v645, %v1420
        %v1549 = vadd.f32 %v646, %v1421
        %v1550 = vadd.f32 %v647, %v1422
        %v1551 = vadd.f32 %v648, %v1423
        %v1552 = vadd.f32 %v649, %v1424
        %v1553 = vadd.f32 %v650, %v1425
        %v1554 = vadd.f32 %v651, %v1426
        %v1555 = vadd.f32 %v652, %v1427
        %v1556 = vadd.f32 %v653, %v1428
        %v1557 = vadd.f32 %v654, %v1429
        %v1558 = vadd.f32 %v655, %v1430
        %v1559 = vadd.f32 %v656, %v1431
        %v1560 = vadd.f32 %v657, %v1432
        %v1561 = vadd.f32 %v658, %v1433
        %vm1594 = vcmask 1046528
        %v1595 = vrot.slane %v361, 1
        %v1596 = vrot.slane %v362, 1
        %v1597 = vsel %vm1594, %v1595, %v1596
        %v1598 = vrot.slane %v363, 1
        %v1599 = vsel %vm1594, %v1596, %v1598
        %v1600 = vrot.slane %v364, 1
        %v1601 = vsel %vm1594, %v1598, %v1600
        %v1602 = vrot.slane %v365, 1
        %v1603 = vsel %vm1594, %v1600, %v1602
        %v1604 = vrot.slane %v366, 1
        %v1605 = vrot.slane %v367, 1
        %v1606 = vsel %vm1594, %v1604, %v1605
        %v1607 = vrot.slane %v368, 1
        %v1608 = vsel %vm1594, %v1605, %v1607
        %v1609 = vrot.slane %v369, 1
        %v1610 = vsel %vm1594, %v1607, %v1609
        %v1611 = vrot.slane %v370, 1
        %v1612 = vsel %vm1594, %v1609, %v1611
        %v1613 = vrot.slane %v371, 1
        %v1614 = vrot.slane %v372, 1
        %v1615 = vsel %vm1594, %v1613, %v1614
        %v1616 = vrot.slane %v373, 1
        %v1617 = vsel %vm1594, %v1614, %v1616
        %v1618 = vrot.slane %v374, 1
        %v1619 = vsel %vm1594, %v1616, %v1618
        %v1620 = vrot.slane %v375, 1
        %v1621 = vsel %vm1594, %v1618, %v1620
        %v1622 = vrot.slane %v376, 1
        %v1623 = vrot.slane %v377, 1
        %v1624 = vsel %vm1594, %v1622, %v1623
        %v1625 = vrot.slane %v378, 1
        %v1626 = vsel %vm1594, %v1623, %v1625
        %v1627 = vrot.slane %v379, 1
        %v1628 = vsel %vm1594, %v1625, %v1627
        %v1629 = vrot.slane %v380, 1
        %v1630 = vsel %vm1594, %v1627, %v1629
        %v1631 = vrot.slane %v381, 1
        %v1632 = vrot.slane %v382, 1
        %v1633 = vsel %vm1594, %v1631, %v1632
        %v1634 = vrot.slane %v383, 1
        %v1635 = vsel %vm1594, %v1632, %v1634
        %v1636 = vrot.slane %v384, 1
        %v1637 = vsel %vm1594, %v1634, %v1636
        %v1638 = vrot.slane %v385, 1
        %v1639 = vsel %vm1594, %v1636, %v1638
        %v1640 = vrot.slane %v386, 1
        %v1641 = vrot.slane %v387, 1
        %v1642 = vsel %vm1594, %v1640, %v1641
        %v1643 = vrot.slane %v388, 1
        %v1644 = vsel %vm1594, %v1641, %v1643
        %v1645 = vrot.slane %v389, 1
        %v1646 = vsel %vm1594, %v1643, %v1645
        %v1647 = vrot.slane %v390, 1
        %v1648 = vsel %vm1594, %v1645, %v1647
        %v1649 = vrot.slane %v391, 1
        %v1650 = vrot.slane %v392, 1
        %v1651 = vsel %vm1594, %v1649, %v1650
        %v1652 = vrot.slane %v393, 1
        %v1653 = vsel %vm1594, %v1650, %v1652
        %v1654 = vrot.slane %v394, 1
        %v1655 = vsel %vm1594, %v1652, %v1654
        %v1656 = vrot.slane %v395, 1
        %v1657 = vsel %vm1594, %v1654, %v1656
        %v1658 = vrot.slane %v396, 1
        %v1659 = vrot.slane %v397, 1
        %v1660 = vsel %vm1594, %v1658, %v1659
        %v1661 = vrot.slane %v398, 1
        %v1662 = vsel %vm1594, %v1659, %v1661
        %v1663 = vrot.slane %v399, 1
        %v1664 = vsel %vm1594, %v1661, %v1663
        %v1665 = vrot.slane %v400, 1
        %v1666 = vsel %vm1594, %v1663, %v1665
        %v1667 = vrot.slane %v401, 1
        %v1668 = vrot.slane %v402, 1
        %v1669 = vsel %vm1594, %v1667, %v1668
        %v1670 = vrot.slane %v403, 1
        %v1671 = vsel %vm1594, %v1668, %v1670
        %v1672 = vrot.slane %v404, 1
        %v1673 = vsel %vm1594, %v1670, %v1672
        %v1674 = vrot.slane %v405, 1
        %v1675 = vsel %vm1594, %v1672, %v1674
        %v1676 = vrot.slane %v406, 1
        %v1677 = vrot.slane %v407, 1
        %v1678 = vsel %vm1594, %v1676, %v1677
        %v1679 = vrot.slane %v408, 1
        %v1680 = vsel %vm1594, %v1677, %v1679
        %v1681 = vrot.slane %v409, 1
        %v1682 = vsel %vm1594, %v1679, %v1681
        %v1683 = vrot.slane %v410, 1
        %v1684 = vsel %vm1594, %v1681, %v1683
        %v1685 = vrot.slane %v411, 1
        %v1686 = vrot.slane %v412, 1
        %v1687 = vsel %vm1594, %v1685, %v1686
        %v1688 = vrot.slane %v413, 1
        %v1689 = vsel %vm1594, %v1686, %v1688
        %v1690 = vrot.slane %v414, 1
        %v1691 = vsel %vm1594, %v1688, %v1690
        %v1692 = vrot.slane %v415, 1
        %v1693 = vsel %vm1594, %v1690, %v1692
        %v1694 = vrot.slane %v416, 1
        %v1695 = vrot.slane %v417, 1
        %v1696 = vsel %vm1594, %v1694, %v1695
        %v1697 = vrot.slane %v418, 1
        %v1698 = vsel %vm1594, %v1695, %v1697
        %v1699 = vrot.slane %v419, 1
        %v1700 = vsel %vm1594, %v1697, %v1699
        %v1701 = vrot.slane %v420, 1
        %v1702 = vsel %vm1594, %v1699, %v1701
        %v1703 = vrot.slane %v421, 1
        %v1704 = vrot.slane %v422, 1
        %v1705 = vsel %vm1594, %v1703, %v1704
        %v1706 = vrot.slane %v423, 1
        %v1707 = vsel %vm1594, %v1704, %v1706
        %v1708 = vrot.slane %v424, 1
        %v1709 = vsel %vm1594, %v1706, %v1708
        %v1710 = vrot.slane %v425, 1
        %v1711 = vsel %vm1594, %v1708, %v1710
        %v1712 = vrot.slane %v426, 1
        %v1713 = vrot.slane %v427, 1
        %v1714 = vsel %vm1594, %v1712, %v1713
        %v1715 = vrot.slane %v428, 1
        %v1716 = vsel %vm1594, %v1713, %v1715
        %v1717 = vrot.slane %v429, 1
        %v1718 = vsel %vm1594, %v1715, %v1717
        %v1719 = vrot.slane %v430, 1
        %v1720 = vsel %vm1594, %v1717, %v1719
        %v1721 = vrot.slane %v431, 1
        %v1722 = vrot.slane %v432, 1
        %v1723 = vsel %vm1594, %v1721, %v1722
        %v1724 = vrot.slane %v433, 1
        %v1725 = vsel %vm1594, %v1722, %v1724
        %v1726 = vrot.slane %v434, 1
        %v1727 = vsel %vm1594, %v1724, %v1726
        %v1728 = vrot.slane %v435, 1
        %v1729 = vsel %vm1594, %v1726, %v1728
        %v1730 = vrot.slane %v436, 1
        %v1731 = vrot.slane %v437, 1
        %v1732 = vsel %vm1594, %v1730, %v1731
        %v1733 = vrot.slane %v438, 1
        %v1734 = vsel %vm1594, %v1731, %v1733
        %v1735 = vrot.slane %v439, 1
        %v1736 = vsel %vm1594, %v1733, %v1735
        %v1737 = vrot.slane %v440, 1
        %v1738 = vsel %vm1594, %v1735, %v1737
        %v1739 = vrot.slane %v441, 1
        %v1740 = vrot.slane %v442, 1
        %v1741 = vsel %vm1594, %v1739, %v1740
        %v1742 = vrot.slane %v443, 1
        %v1743 = vsel %vm1594, %v1740, %v1742
        %v1744 = vrot.slane %v444, 1
        %v1745 = vsel %vm1594, %v1742, %v1744
        %v1746 = vrot.slane %v445, 1
        %v1747 = vsel %vm1594, %v1744, %v1746
        %v1748 = vrot.slane %v446, 1
        %v1749 = vrot.slane %v447, 1
        %v1750 = vsel %vm1594, %v1748, %v1749
        %v1751 = vrot.slane %v448, 1
        %v1752 = vsel %vm1594, %v1749, %v1751
        %v1753 = vrot.slane %v449, 1
        %v1754 = vsel %vm1594, %v1751, %v1753
        %v1755 = vrot.slane %v450, 1
        %v1756 = vsel %vm1594, %v1753, %v1755
        %v1757 = vrot.slane %v451, 1
        %v1758 = vrot.slane %v452, 1
        %v1759 = vsel %vm1594, %v1757, %v1758
        %v1760 = vrot.slane %v453, 1
        %v1761 = vsel %vm1594, %v1758, %v1760
        %v1762 = vrot.slane %v454, 1
        %v1763 = vsel %vm1594, %v1760, %v1762
        %v1764 = vrot.slane %v455, 1
        %v1765 = vsel %vm1594, %v1762, %v1764
        %v1766 = vrot.slane %v456, 1
        %v1767 = vrot.slane %v457, 1
        %v1768 = vsel %vm1594, %v1766, %v1767
        %v1769 = vrot.slane %v458, 1
        %v1770 = vsel %vm1594, %v1767, %v1769
        %v1771 = vrot.slane %v459, 1
        %v1772 = vsel %vm1594, %v1769, %v1771
        %v1773 = vrot.slane %v460, 1
        %v1774 = vsel %vm1594, %v1771, %v1773
        %v1775 = vrot.slane %v461, 1
        %v1776 = vrot.slane %v462, 1
        %v1777 = vsel %vm1594, %v1775, %v1776
        %v1778 = vrot.slane %v463, 1
        %v1779 = vsel %vm1594, %v1776, %v1778
        %v1780 = vrot.slane %v464, 1
        %v1781 = vsel %vm1594, %v1778, %v1780
        %v1782 = vrot.slane %v465, 1
        %v1783 = vsel %vm1594, %v1780, %v1782
        %v1784 = vrot.slane %v466, 1
        %v1785 = vrot.slane %v467, 1
        %v1786 = vsel %vm1594, %v1784, %v1785
        %v1787 = vrot.slane %v468, 1
        %v1788 = vsel %vm1594, %v1785, %v1787
        %v1789 = vrot.slane %v469, 1
        %v1790 = vsel %vm1594, %v1787, %v1789
        %v1791 = vrot.slane %v470, 1
        %v1792 = vsel %vm1594, %v1789, %v1791
        %v1793 = vrot.slane %v471, 1
        %v1794 = vrot.slane %v472, 1
        %v1795 = vsel %vm1594, %v1793, %v1794
        %v1796 = vrot.slane %v473, 1
        %v1797 = vsel %vm1594, %v1794, %v1796
        %v1798 = vrot.slane %v474, 1
        %v1799 = vsel %vm1594, %v1796, %v1798
        %v1800 = vrot.slane %v475, 1
        %v1801 = vsel %vm1594, %v1798, %v1800
        %v1802 = vrot.slane %v476, 1
        %v1803 = vrot.slane %v477, 1
        %v1804 = vsel %vm1594, %v1802, %v1803
        %v1805 = vrot.slane %v478, 1
        %v1806 = vsel %vm1594, %v1803, %v1805
        %v1807 = vrot.slane %v479, 1
        %v1808 = vsel %vm1594, %v1805, %v1807
        %v1809 = vrot.slane %v480, 1
        %v1810 = vsel %vm1594, %v1807, %v1809
        %v1811 = vrot.slane %v481, 1
        %v1812 = vrot.slane %v482, 1
        %v1813 = vsel %vm1594, %v1811, %v1812
        %v1814 = vrot.slane %v483, 1
        %v1815 = vsel %vm1594, %v1812, %v1814
        %v1816 = vrot.slane %v484, 1
        %v1817 = vsel %vm1594, %v1814, %v1816
        %v1818 = vrot.slane %v485, 1
        %v1819 = vsel %vm1594, %v1816, %v1818
        %v1820 = vrot.slane %v486, 1
        %v1821 = vrot.slane %v487, 1
        %v1822 = vsel %vm1594, %v1820, %v1821
        %v1823 = vrot.slane %v488, 1
        %v1824 = vsel %vm1594, %v1821, %v1823
        %v1825 = vrot.slane %v489, 1
        %v1826 = vsel %vm1594, %v1823, %v1825
        %v1827 = vrot.slane %v490, 1
        %v1828 = vsel %vm1594, %v1825, %v1827
        %v1829 = vrot.slane %v491, 1
        %v1830 = vrot.slane %v492, 1
        %v1831 = vsel %vm1594, %v1829, %v1830
        %v1832 = vrot.slane %v493, 1
        %v1833 = vsel %vm1594, %v1830, %v1832
        %v1834 = vrot.slane %v494, 1
        %v1835 = vsel %vm1594, %v1832, %v1834
        %v1836 = vrot.slane %v495, 1
        %v1837 = vsel %vm1594, %v1834, %v1836
        %v1838 = vrot.slane %v496, 1
        %v1839 = vrot.slane %v497, 1
        %v1840 = vsel %vm1594, %v1838, %v1839
        %v1841 = vrot.slane %v498, 1
        %v1842 = vsel %vm1594, %v1839, %v1841
        %v1843 = vrot.slane %v499, 1
        %v1844 = vsel %vm1594, %v1841, %v1843
        %v1845 = vrot.slane %v500, 1
        %v1846 = vsel %vm1594, %v1843, %v1845
        %v1847 = vrot.slane %v501, 1
        %v1848 = vrot.slane %v502, 1
        %v1849 = vsel %vm1594, %v1847, %v1848
        %v1850 = vrot.slane %v503, 1
        %v1851 = vsel %vm1594, %v1848, %v1850
        %v1852 = vrot.slane %v504, 1
        %v1853 = vsel %vm1594, %v1850, %v1852
        %v1854 = vrot.slane %v505, 1
        %v1855 = vsel %vm1594, %v1852, %v1854
        %v1856 = vrot.slane %v506, 1
        %v1857 = vrot.slane %v507, 1
        %v1858 = vsel %vm1594, %v1856, %v1857
        %v1859 = vrot.slane %v508, 1
        %v1860 = vsel %vm1594, %v1857, %v1859
        %v1861 = vrot.slane %v509, 1
        %v1862 = vsel %vm1594, %v1859, %v1861
        %v1863 = vrot.slane %v510, 1
        %v1864 = vsel %vm1594, %v1861, %v1863
        %v1865 = vrot.slane %v511, 1
        %v1866 = vrot.slane %v512, 1
        %v1867 = vsel %vm1594, %v1865, %v1866
        %v1868 = vrot.slane %v513, 1
        %v1869 = vsel %vm1594, %v1866, %v1868
        %v1870 = vrot.slane %v514, 1
        %v1871 = vsel %vm1594, %v1868, %v1870
        %v1872 = vrot.slane %v515, 1
        %v1873 = vsel %vm1594, %v1870, %v1872
        %v1874 = vrot.slane %v516, 1
        %v1875 = vrot.slane %v517, 1
        %v1876 = vsel %vm1594, %v1874, %v1875
        %v1877 = vrot.slane %v518, 1
        %v1878 = vsel %vm1594, %v1875, %v1877
        %v1879 = vrot.slane %v519, 1
        %v1880 = vsel %vm1594, %v1877, %v1879
        %v1881 = vrot.slane %v520, 1
        %v1882 = vsel %vm1594, %v1879, %v1881
        %s1883 = scalar_lea.vmem %s227, 1
        %v1884 = vld [vmem:[%s1883] sm:$0x1]
        %1885 = vset.pattern.permute.xlu0 0
        %1886 = vperm.xlu0 %1885, %v1597
        %v1887 = vpop.permute.xlu0 %1886
        %1889 = vset.pattern.permute.xlu0 0
        %1890 = vperm.xlu0 %1889, %v1599
        %v1891 = vpop.permute.xlu0 %1890
        %1893 = vset.pattern.permute.xlu0 0
        %1894 = vperm.xlu0 %1893, %v1601
        %v1895 = vpop.permute.xlu0 %1894
        %1897 = vset.pattern.permute.xlu0 0
        %1898 = vperm.xlu0 %1897, %v1603
        %v1899 = vpop.permute.xlu0 %1898
        %1901 = vset.pattern.permute.xlu0 0
        %1902 = vperm.xlu0 %1901, %v1606
        %v1903 = vpop.permute.xlu0 %1902
        %1905 = vset.pattern.permute.xlu0 0
        %1906 = vperm.xlu0 %1905, %v1608
        %v1907 = vpop.permute.xlu0 %1906
        %1909 = vset.pattern.permute.xlu0 0
        %1910 = vperm.xlu0 %1909, %v1610
        %v1911 = vpop.permute.xlu0 %1910
        %1913 = vset.pattern.permute.xlu0 0
        %1914 = vperm.xlu0 %1913, %v1612
        %v1915 = vpop.permute.xlu0 %1914
        %1917 = vset.pattern.permute.xlu0 0
        %1918 = vperm.xlu0 %1917, %v1615
        %v1919 = vpop.permute.xlu0 %1918
        %1921 = vset.pattern.permute.xlu0 0
        %1922 = vperm.xlu0 %1921, %v1617
        %v1923 = vpop.permute.xlu0 %1922
        %1925 = vset.pattern.permute.xlu0 0
        %1926 = vperm.xlu0 %1925, %v1619
        %v1927 = vpop.permute.xlu0 %1926
        %1929 = vset.pattern.permute.xlu0 0
        %1930 = vperm.xlu0 %1929, %v1621
        %v1931 = vpop.permute.xlu0 %1930
        %1933 = vset.pattern.permute.xlu0 0
        %1934 = vperm.xlu0 %1933, %v1624
        %v1935 = vpop.permute.xlu0 %1934
        %1937 = vset.pattern.permute.xlu0 0
        %1938 = vperm.xlu0 %1937, %v1626
        %v1939 = vpop.permute.xlu0 %1938
        %1941 = vset.pattern.permute.xlu0 0
        %1942 = vperm.xlu0 %1941, %v1628
        %v1943 = vpop.permute.xlu0 %1942
        %1945 = vset.pattern.permute.xlu0 0
        %1946 = vperm.xlu0 %1945, %v1630
        %v1947 = vpop.permute.xlu0 %1946
        %1949 = vset.pattern.permute.xlu0 0
        %1950 = vperm.xlu0 %1949, %v1633
        %v1951 = vpop.permute.xlu0 %1950
        %1953 = vset.pattern.permute.xlu0 0
        %1954 = vperm.xlu0 %1953, %v1635
        %v1955 = vpop.permute.xlu0 %1954
        %1957 = vset.pattern.permute.xlu0 0
        %1958 = vperm.xlu0 %1957, %v1637
        %v1959 = vpop.permute.xlu0 %1958
        %1961 = vset.pattern.permute.xlu0 0
        %1962 = vperm.xlu0 %1961, %v1639
        %v1963 = vpop.permute.xlu0 %1962
        %1965 = vset.pattern.permute.xlu0 0
        %1966 = vperm.xlu0 %1965, %v1642
        %v1967 = vpop.permute.xlu0 %1966
        %1969 = vset.pattern.permute.xlu0 0
        %1970 = vperm.xlu0 %1969, %v1644
        %v1971 = vpop.permute.xlu0 %1970
        %1973 = vset.pattern.permute.xlu0 0
        %1974 = vperm.xlu0 %1973, %v1646
        %v1975 = vpop.permute.xlu0 %1974
        %1977 = vset.pattern.permute.xlu0 0
        %1978 = vperm.xlu0 %1977, %v1648
        %v1979 = vpop.permute.xlu0 %1978
        %1981 = vset.pattern.permute.xlu0 0
        %1982 = vperm.xlu0 %1981, %v1651
        %v1983 = vpop.permute.xlu0 %1982
        %1985 = vset.pattern.permute.xlu0 0
        %1986 = vperm.xlu0 %1985, %v1653
        %v1987 = vpop.permute.xlu0 %1986
        %1989 = vset.pattern.permute.xlu0 0
        %1990 = vperm.xlu0 %1989, %v1655
        %v1991 = vpop.permute.xlu0 %1990
        %1993 = vset.pattern.permute.xlu0 0
        %1994 = vperm.xlu0 %1993, %v1657
        %v1995 = vpop.permute.xlu0 %1994
        %1997 = vset.pattern.permute.xlu0 0
        %1998 = vperm.xlu0 %1997, %v1660
        %v1999 = vpop.permute.xlu0 %1998
        %2001 = vset.pattern.permute.xlu0 0
        %2002 = vperm.xlu0 %2001, %v1662
        %v2003 = vpop.permute.xlu0 %2002
        %2005 = vset.pattern.permute.xlu0 0
        %2006 = vperm.xlu0 %2005, %v1664
        %v2007 = vpop.permute.xlu0 %2006
        %2009 = vset.pattern.permute.xlu0 0
        %2010 = vperm.xlu0 %2009, %v1666
        %v2011 = vpop.permute.xlu0 %2010
        %2013 = vset.pattern.permute.xlu0 0
        %2014 = vperm.xlu0 %2013, %v1669
        %v2015 = vpop.permute.xlu0 %2014
        %2017 = vset.pattern.permute.xlu0 0
        %2018 = vperm.xlu0 %2017, %v1671
        %v2019 = vpop.permute.xlu0 %2018
        %2021 = vset.pattern.permute.xlu0 0
        %2022 = vperm.xlu0 %2021, %v1673
        %v2023 = vpop.permute.xlu0 %2022
        %2025 = vset.pattern.permute.xlu0 0
        %2026 = vperm.xlu0 %2025, %v1675
        %v2027 = vpop.permute.xlu0 %2026
        %2029 = vset.pattern.permute.xlu0 0
        %2030 = vperm.xlu0 %2029, %v1678
        %v2031 = vpop.permute.xlu0 %2030
        %2033 = vset.pattern.permute.xlu0 0
        %2034 = vperm.xlu0 %2033, %v1680
        %v2035 = vpop.permute.xlu0 %2034
        %2037 = vset.pattern.permute.xlu0 0
        %2038 = vperm.xlu0 %2037, %v1682
        %v2039 = vpop.permute.xlu0 %2038
        %2041 = vset.pattern.permute.xlu0 0
        %2042 = vperm.xlu0 %2041, %v1684
        %v2043 = vpop.permute.xlu0 %2042
        %2045 = vset.pattern.permute.xlu0 0
        %2046 = vperm.xlu0 %2045, %v1687
        %v2047 = vpop.permute.xlu0 %2046
        %2049 = vset.pattern.permute.xlu0 0
        %2050 = vperm.xlu0 %2049, %v1689
        %v2051 = vpop.permute.xlu0 %2050
        %2053 = vset.pattern.permute.xlu0 0
        %2054 = vperm.xlu0 %2053, %v1691
        %v2055 = vpop.permute.xlu0 %2054
        %2057 = vset.pattern.permute.xlu0 0
        %2058 = vperm.xlu0 %2057, %v1693
        %v2059 = vpop.permute.xlu0 %2058
        %2061 = vset.pattern.permute.xlu0 0
        %2062 = vperm.xlu0 %2061, %v1696
        %v2063 = vpop.permute.xlu0 %2062
        %2065 = vset.pattern.permute.xlu0 0
        %2066 = vperm.xlu0 %2065, %v1698
        %v2067 = vpop.permute.xlu0 %2066
        %2069 = vset.pattern.permute.xlu0 0
        %2070 = vperm.xlu0 %2069, %v1700
        %v2071 = vpop.permute.xlu0 %2070
        %2073 = vset.pattern.permute.xlu0 0
        %2074 = vperm.xlu0 %2073, %v1702
        %v2075 = vpop.permute.xlu0 %2074
        %2077 = vset.pattern.permute.xlu0 0
        %2078 = vperm.xlu0 %2077, %v1705
        %v2079 = vpop.permute.xlu0 %2078
        %2081 = vset.pattern.permute.xlu0 0
        %2082 = vperm.xlu0 %2081, %v1707
        %v2083 = vpop.permute.xlu0 %2082
        %2085 = vset.pattern.permute.xlu0 0
        %2086 = vperm.xlu0 %2085, %v1709
        %v2087 = vpop.permute.xlu0 %2086
        %2089 = vset.pattern.permute.xlu0 0
        %2090 = vperm.xlu0 %2089, %v1711
        %v2091 = vpop.permute.xlu0 %2090
        %2093 = vset.pattern.permute.xlu0 0
        %2094 = vperm.xlu0 %2093, %v1714
        %v2095 = vpop.permute.xlu0 %2094
        %2097 = vset.pattern.permute.xlu0 0
        %2098 = vperm.xlu0 %2097, %v1716
        %v2099 = vpop.permute.xlu0 %2098
        %2101 = vset.pattern.permute.xlu0 0
        %2102 = vperm.xlu0 %2101, %v1718
        %v2103 = vpop.permute.xlu0 %2102
        %2105 = vset.pattern.permute.xlu0 0
        %2106 = vperm.xlu0 %2105, %v1720
        %v2107 = vpop.permute.xlu0 %2106
        %2109 = vset.pattern.permute.xlu0 0
        %2110 = vperm.xlu0 %2109, %v1723
        %v2111 = vpop.permute.xlu0 %2110
        %2113 = vset.pattern.permute.xlu0 0
        %2114 = vperm.xlu0 %2113, %v1725
        %v2115 = vpop.permute.xlu0 %2114
        %2117 = vset.pattern.permute.xlu0 0
        %2118 = vperm.xlu0 %2117, %v1727
        %v2119 = vpop.permute.xlu0 %2118
        %2121 = vset.pattern.permute.xlu0 0
        %2122 = vperm.xlu0 %2121, %v1729
        %v2123 = vpop.permute.xlu0 %2122
        %2125 = vset.pattern.permute.xlu0 0
        %2126 = vperm.xlu0 %2125, %v1732
        %v2127 = vpop.permute.xlu0 %2126
        %2129 = vset.pattern.permute.xlu0 0
        %2130 = vperm.xlu0 %2129, %v1734
        %v2131 = vpop.permute.xlu0 %2130
        %2133 = vset.pattern.permute.xlu0 0
        %2134 = vperm.xlu0 %2133, %v1736
        %v2135 = vpop.permute.xlu0 %2134
        %2137 = vset.pattern.permute.xlu0 0
        %2138 = vperm.xlu0 %2137, %v1738
        %v2139 = vpop.permute.xlu0 %2138
        %2141 = vset.pattern.permute.xlu0 0
        %2142 = vperm.xlu0 %2141, %v1741
        %v2143 = vpop.permute.xlu0 %2142
        %2145 = vset.pattern.permute.xlu0 0
        %2146 = vperm.xlu0 %2145, %v1743
        %v2147 = vpop.permute.xlu0 %2146
        %2149 = vset.pattern.permute.xlu0 0
        %2150 = vperm.xlu0 %2149, %v1745
        %v2151 = vpop.permute.xlu0 %2150
        %2153 = vset.pattern.permute.xlu0 0
        %2154 = vperm.xlu0 %2153, %v1747
        %v2155 = vpop.permute.xlu0 %2154
        %2157 = vset.pattern.permute.xlu0 0
        %2158 = vperm.xlu0 %2157, %v1750
        %v2159 = vpop.permute.xlu0 %2158
        %2161 = vset.pattern.permute.xlu0 0
        %2162 = vperm.xlu0 %2161, %v1752
        %v2163 = vpop.permute.xlu0 %2162
        %2165 = vset.pattern.permute.xlu0 0
        %2166 = vperm.xlu0 %2165, %v1754
        %v2167 = vpop.permute.xlu0 %2166
        %2169 = vset.pattern.permute.xlu0 0
        %2170 = vperm.xlu0 %2169, %v1756
        %v2171 = vpop.permute.xlu0 %2170
        %2173 = vset.pattern.permute.xlu0 0
        %2174 = vperm.xlu0 %2173, %v1759
        %v2175 = vpop.permute.xlu0 %2174
        %2177 = vset.pattern.permute.xlu0 0
        %2178 = vperm.xlu0 %2177, %v1761
        %v2179 = vpop.permute.xlu0 %2178
        %2181 = vset.pattern.permute.xlu0 0
        %2182 = vperm.xlu0 %2181, %v1763
        %v2183 = vpop.permute.xlu0 %2182
        %2185 = vset.pattern.permute.xlu0 0
        %2186 = vperm.xlu0 %2185, %v1765
        %v2187 = vpop.permute.xlu0 %2186
        %2189 = vset.pattern.permute.xlu0 0
        %2190 = vperm.xlu0 %2189, %v1768
        %v2191 = vpop.permute.xlu0 %2190
        %2193 = vset.pattern.permute.xlu0 0
        %2194 = vperm.xlu0 %2193, %v1770
        %v2195 = vpop.permute.xlu0 %2194
        %2197 = vset.pattern.permute.xlu0 0
        %2198 = vperm.xlu0 %2197, %v1772
        %v2199 = vpop.permute.xlu0 %2198
        %2201 = vset.pattern.permute.xlu0 0
        %2202 = vperm.xlu0 %2201, %v1774
        %v2203 = vpop.permute.xlu0 %2202
        %2205 = vset.pattern.permute.xlu0 0
        %2206 = vperm.xlu0 %2205, %v1777
        %v2207 = vpop.permute.xlu0 %2206
        %2209 = vset.pattern.permute.xlu0 0
        %2210 = vperm.xlu0 %2209, %v1779
        %v2211 = vpop.permute.xlu0 %2210
        %2213 = vset.pattern.permute.xlu0 0
        %2214 = vperm.xlu0 %2213, %v1781
        %v2215 = vpop.permute.xlu0 %2214
        %2217 = vset.pattern.permute.xlu0 0
        %2218 = vperm.xlu0 %2217, %v1783
        %v2219 = vpop.permute.xlu0 %2218
        %2221 = vset.pattern.permute.xlu0 0
        %2222 = vperm.xlu0 %2221, %v1786
        %v2223 = vpop.permute.xlu0 %2222
        %2225 = vset.pattern.permute.xlu0 0
        %2226 = vperm.xlu0 %2225, %v1788
        %v2227 = vpop.permute.xlu0 %2226
        %2229 = vset.pattern.permute.xlu0 0
        %2230 = vperm.xlu0 %2229, %v1790
        %v2231 = vpop.permute.xlu0 %2230
        %2233 = vset.pattern.permute.xlu0 0
        %2234 = vperm.xlu0 %2233, %v1792
        %v2235 = vpop.permute.xlu0 %2234
        %2237 = vset.pattern.permute.xlu0 0
        %2238 = vperm.xlu0 %2237, %v1795
        %v2239 = vpop.permute.xlu0 %2238
        %2241 = vset.pattern.permute.xlu0 0
        %2242 = vperm.xlu0 %2241, %v1797
        %v2243 = vpop.permute.xlu0 %2242
        %2245 = vset.pattern.permute.xlu0 0
        %2246 = vperm.xlu0 %2245, %v1799
        %v2247 = vpop.permute.xlu0 %2246
        %2249 = vset.pattern.permute.xlu0 0
        %2250 = vperm.xlu0 %2249, %v1801
        %v2251 = vpop.permute.xlu0 %2250
        %2253 = vset.pattern.permute.xlu0 0
        %2254 = vperm.xlu0 %2253, %v1804
        %v2255 = vpop.permute.xlu0 %2254
        %2257 = vset.pattern.permute.xlu0 0
        %2258 = vperm.xlu0 %2257, %v1806
        %v2259 = vpop.permute.xlu0 %2258
        %2261 = vset.pattern.permute.xlu0 0
        %2262 = vperm.xlu0 %2261, %v1808
        %v2263 = vpop.permute.xlu0 %2262
        %2265 = vset.pattern.permute.xlu0 0
        %2266 = vperm.xlu0 %2265, %v1810
        %v2267 = vpop.permute.xlu0 %2266
        %2269 = vset.pattern.permute.xlu0 0
        %2270 = vperm.xlu0 %2269, %v1813
        %v2271 = vpop.permute.xlu0 %2270
        %2273 = vset.pattern.permute.xlu0 0
        %2274 = vperm.xlu0 %2273, %v1815
        %v2275 = vpop.permute.xlu0 %2274
        %2277 = vset.pattern.permute.xlu0 0
        %2278 = vperm.xlu0 %2277, %v1817
        %v2279 = vpop.permute.xlu0 %2278
        %2281 = vset.pattern.permute.xlu0 0
        %2282 = vperm.xlu0 %2281, %v1819
        %v2283 = vpop.permute.xlu0 %2282
        %2285 = vset.pattern.permute.xlu0 0
        %2286 = vperm.xlu0 %2285, %v1822
        %v2287 = vpop.permute.xlu0 %2286
        %2289 = vset.pattern.permute.xlu0 0
        %2290 = vperm.xlu0 %2289, %v1824
        %v2291 = vpop.permute.xlu0 %2290
        %2293 = vset.pattern.permute.xlu0 0
        %2294 = vperm.xlu0 %2293, %v1826
        %v2295 = vpop.permute.xlu0 %2294
        %2297 = vset.pattern.permute.xlu0 0
        %2298 = vperm.xlu0 %2297, %v1828
        %v2299 = vpop.permute.xlu0 %2298
        %2301 = vset.pattern.permute.xlu0 0
        %2302 = vperm.xlu0 %2301, %v1831
        %v2303 = vpop.permute.xlu0 %2302
        %2305 = vset.pattern.permute.xlu0 0
        %2306 = vperm.xlu0 %2305, %v1833
        %v2307 = vpop.permute.xlu0 %2306
        %2309 = vset.pattern.permute.xlu0 0
        %2310 = vperm.xlu0 %2309, %v1835
        %v2311 = vpop.permute.xlu0 %2310
        %2313 = vset.pattern.permute.xlu0 0
        %2314 = vperm.xlu0 %2313, %v1837
        %v2315 = vpop.permute.xlu0 %2314
        %2317 = vset.pattern.permute.xlu0 0
        %2318 = vperm.xlu0 %2317, %v1840
        %v2319 = vpop.permute.xlu0 %2318
        %2321 = vset.pattern.permute.xlu0 0
        %2322 = vperm.xlu0 %2321, %v1842
        %v2323 = vpop.permute.xlu0 %2322
        %2325 = vset.pattern.permute.xlu0 0
        %2326 = vperm.xlu0 %2325, %v1844
        %v2327 = vpop.permute.xlu0 %2326
        %2329 = vset.pattern.permute.xlu0 0
        %2330 = vperm.xlu0 %2329, %v1846
        %v2331 = vpop.permute.xlu0 %2330
        %2333 = vset.pattern.permute.xlu0 0
        %2334 = vperm.xlu0 %2333, %v1849
        %v2335 = vpop.permute.xlu0 %2334
        %2337 = vset.pattern.permute.xlu0 0
        %2338 = vperm.xlu0 %2337, %v1851
        %v2339 = vpop.permute.xlu0 %2338
        %2341 = vset.pattern.permute.xlu0 0
        %2342 = vperm.xlu0 %2341, %v1853
        %v2343 = vpop.permute.xlu0 %2342
        %2345 = vset.pattern.permute.xlu0 0
        %2346 = vperm.xlu0 %2345, %v1855
        %v2347 = vpop.permute.xlu0 %2346
        %2349 = vset.pattern.permute.xlu0 0
        %2350 = vperm.xlu0 %2349, %v1858
        %v2351 = vpop.permute.xlu0 %2350
        %2353 = vset.pattern.permute.xlu0 0
        %2354 = vperm.xlu0 %2353, %v1860
        %v2355 = vpop.permute.xlu0 %2354
        %2357 = vset.pattern.permute.xlu0 0
        %2358 = vperm.xlu0 %2357, %v1862
        %v2359 = vpop.permute.xlu0 %2358
        %2361 = vset.pattern.permute.xlu0 0
        %2362 = vperm.xlu0 %2361, %v1864
        %v2363 = vpop.permute.xlu0 %2362
        %2365 = vset.pattern.permute.xlu0 0
        %2366 = vperm.xlu0 %2365, %v1867
        %v2367 = vpop.permute.xlu0 %2366
        %2369 = vset.pattern.permute.xlu0 0
        %2370 = vperm.xlu0 %2369, %v1869
        %v2371 = vpop.permute.xlu0 %2370
        %2373 = vset.pattern.permute.xlu0 0
        %2374 = vperm.xlu0 %2373, %v1871
        %v2375 = vpop.permute.xlu0 %2374
        %2377 = vset.pattern.permute.xlu0 0
        %2378 = vperm.xlu0 %2377, %v1873
        %v2379 = vpop.permute.xlu0 %2378
        %2381 = vset.pattern.permute.xlu0 0
        %2382 = vperm.xlu0 %2381, %v1876
        %v2383 = vpop.permute.xlu0 %2382
        %2385 = vset.pattern.permute.xlu0 0
        %2386 = vperm.xlu0 %2385, %v1878
        %v2387 = vpop.permute.xlu0 %2386
        %2389 = vset.pattern.permute.xlu0 0
        %2390 = vperm.xlu0 %2389, %v1880
        %v2391 = vpop.permute.xlu0 %2390
        %2393 = vset.pattern.permute.xlu0 0
        %2394 = vperm.xlu0 %2393, %v1882
        %v2395 = vpop.permute.xlu0 %2394
        %v2398 = vlaneseq
        %v2399 = vshrl.u32 %v2398, 7
        %v2400 = vsub.s32 0, %v2399
        %v2401 = vrot.slane %v1884, %v2400
        %v2403 = vmul.f32 %v1887, %v2401
        %v2404 = vmul.f32 %v1891, %v2401
        %v2405 = vmul.f32 %v1895, %v2401
        %v2406 = vmul.f32 %v1899, %v2401
        %v2407 = vmul.f32 %v1903, %v2401
        %v2408 = vmul.f32 %v1907, %v2401
        %v2409 = vmul.f32 %v1911, %v2401
        %v2410 = vmul.f32 %v1915, %v2401
        %v2411 = vmul.f32 %v1919, %v2401
        %v2412 = vmul.f32 %v1923, %v2401
        %v2413 = vmul.f32 %v1927, %v2401
        %v2414 = vmul.f32 %v1931, %v2401
        %v2415 = vmul.f32 %v1935, %v2401
        %v2416 = vmul.f32 %v1939, %v2401
        %v2417 = vmul.f32 %v1943, %v2401
        %v2418 = vmul.f32 %v1947, %v2401
        %v2419 = vmul.f32 %v1951, %v2401
        %v2420 = vmul.f32 %v1955, %v2401
        %v2421 = vmul.f32 %v1959, %v2401
        %v2422 = vmul.f32 %v1963, %v2401
        %v2423 = vmul.f32 %v1967, %v2401
        %v2424 = vmul.f32 %v1971, %v2401
        %v2425 = vmul.f32 %v1975, %v2401
        %v2426 = vmul.f32 %v1979, %v2401
        %v2427 = vmul.f32 %v1983, %v2401
        %v2428 = vmul.f32 %v1987, %v2401
        %v2429 = vmul.f32 %v1991, %v2401
        %v2430 = vmul.f32 %v1995, %v2401
        %v2431 = vmul.f32 %v1999, %v2401
        %v2432 = vmul.f32 %v2003, %v2401
        %v2433 = vmul.f32 %v2007, %v2401
        %v2434 = vmul.f32 %v2011, %v2401
        %v2435 = vmul.f32 %v2015, %v2401
        %v2436 = vmul.f32 %v2019, %v2401
        %v2437 = vmul.f32 %v2023, %v2401
        %v2438 = vmul.f32 %v2027, %v2401
        %v2439 = vmul.f32 %v2031, %v2401
        %v2440 = vmul.f32 %v2035, %v2401
        %v2441 = vmul.f32 %v2039, %v2401
        %v2442 = vmul.f32 %v2043, %v2401
        %v2443 = vmul.f32 %v2047, %v2401
        %v2444 = vmul.f32 %v2051, %v2401
        %v2445 = vmul.f32 %v2055, %v2401
        %v2446 = vmul.f32 %v2059, %v2401
        %v2447 = vmul.f32 %v2063, %v2401
        %v2448 = vmul.f32 %v2067, %v2401
        %v2449 = vmul.f32 %v2071, %v2401
        %v2450 = vmul.f32 %v2075, %v2401
        %v2451 = vmul.f32 %v2079, %v2401
        %v2452 = vmul.f32 %v2083, %v2401
        %v2453 = vmul.f32 %v2087, %v2401
        %v2454 = vmul.f32 %v2091, %v2401
        %v2455 = vmul.f32 %v2095, %v2401
        %v2456 = vmul.f32 %v2099, %v2401
        %v2457 = vmul.f32 %v2103, %v2401
        %v2458 = vmul.f32 %v2107, %v2401
        %v2459 = vmul.f32 %v2111, %v2401
        %v2460 = vmul.f32 %v2115, %v2401
        %v2461 = vmul.f32 %v2119, %v2401
        %v2462 = vmul.f32 %v2123, %v2401
        %v2463 = vmul.f32 %v2127, %v2401
        %v2464 = vmul.f32 %v2131, %v2401
        %v2465 = vmul.f32 %v2135, %v2401
        %v2466 = vmul.f32 %v2139, %v2401
        %v2467 = vmul.f32 %v2143, %v2401
        %v2468 = vmul.f32 %v2147, %v2401
        %v2469 = vmul.f32 %v2151, %v2401
        %v2470 = vmul.f32 %v2155, %v2401
        %v2471 = vmul.f32 %v2159, %v2401
        %v2472 = vmul.f32 %v2163, %v2401
        %v2473 = vmul.f32 %v2167, %v2401
        %v2474 = vmul.f32 %v2171, %v2401
        %v2475 = vmul.f32 %v2175, %v2401
        %v2476 = vmul.f32 %v2179, %v2401
        %v2477 = vmul.f32 %v2183, %v2401
        %v2478 = vmul.f32 %v2187, %v2401
        %v2479 = vmul.f32 %v2191, %v2401
        %v2480 = vmul.f32 %v2195, %v2401
        %v2481 = vmul.f32 %v2199, %v2401
        %v2482 = vmul.f32 %v2203, %v2401
        %v2483 = vmul.f32 %v2207, %v2401
        %v2484 = vmul.f32 %v2211, %v2401
        %v2485 = vmul.f32 %v2215, %v2401
        %v2486 = vmul.f32 %v2219, %v2401
        %v2487 = vmul.f32 %v2223, %v2401
        %v2488 = vmul.f32 %v2227, %v2401
        %v2489 = vmul.f32 %v2231, %v2401
        %v2490 = vmul.f32 %v2235, %v2401
        %v2491 = vmul.f32 %v2239, %v2401
        %v2492 = vmul.f32 %v2243, %v2401
        %v2493 = vmul.f32 %v2247, %v2401
        %v2494 = vmul.f32 %v2251, %v2401
        %v2495 = vmul.f32 %v2255, %v2401
        %v2496 = vmul.f32 %v2259, %v2401
        %v2497 = vmul.f32 %v2263, %v2401
        %v2498 = vmul.f32 %v2267, %v2401
        %v2499 = vmul.f32 %v2271, %v2401
        %v2500 = vmul.f32 %v2275, %v2401
        %v2501 = vmul.f32 %v2279, %v2401
        %v2502 = vmul.f32 %v2283, %v2401
        %v2503 = vmul.f32 %v2287, %v2401
        %v2504 = vmul.f32 %v2291, %v2401
        %v2505 = vmul.f32 %v2295, %v2401
        %v2506 = vmul.f32 %v2299, %v2401
        %v2507 = vmul.f32 %v2303, %v2401
        %v2508 = vmul.f32 %v2307, %v2401
        %v2509 = vmul.f32 %v2311, %v2401
        %v2510 = vmul.f32 %v2315, %v2401
        %v2511 = vmul.f32 %v2319, %v2401
        %v2512 = vmul.f32 %v2323, %v2401
        %v2513 = vmul.f32 %v2327, %v2401
        %v2514 = vmul.f32 %v2331, %v2401
        %v2515 = vmul.f32 %v2335, %v2401
        %v2516 = vmul.f32 %v2339, %v2401
        %v2517 = vmul.f32 %v2343, %v2401
        %v2518 = vmul.f32 %v2347, %v2401
        %v2519 = vmul.f32 %v2351, %v2401
        %v2520 = vmul.f32 %v2355, %v2401
        %v2521 = vmul.f32 %v2359, %v2401
        %v2522 = vmul.f32 %v2363, %v2401
        %v2523 = vmul.f32 %v2367, %v2401
        %v2524 = vmul.f32 %v2371, %v2401
        %v2525 = vmul.f32 %v2375, %v2401
        %v2526 = vmul.f32 %v2379, %v2401
        %v2527 = vmul.f32 %v2383, %v2401
        %v2528 = vmul.f32 %v2387, %v2401
        %v2529 = vmul.f32 %v2391, %v2401
        %v2530 = vmul.f32 %v2395, %v2401
        %v2531 = vadd.f32 %v1434, %v2403
        %v2532 = vadd.f32 %v1435, %v2404
        %v2533 = vadd.f32 %v1436, %v2405
        %v2534 = vadd.f32 %v1437, %v2406
        %v2535 = vadd.f32 %v1438, %v2407
        %v2536 = vadd.f32 %v1439, %v2408
        %v2537 = vadd.f32 %v1440, %v2409
        %v2538 = vadd.f32 %v1441, %v2410
        %v2539 = vadd.f32 %v1442, %v2411
        %v2540 = vadd.f32 %v1443, %v2412
        %v2541 = vadd.f32 %v1444, %v2413
        %v2542 = vadd.f32 %v1445, %v2414
        %v2543 = vadd.f32 %v1446, %v2415
        %v2544 = vadd.f32 %v1447, %v2416
        %v2545 = vadd.f32 %v1448, %v2417
        %v2546 = vadd.f32 %v1449, %v2418
        %v2547 = vadd.f32 %v1450, %v2419
        %v2548 = vadd.f32 %v1451, %v2420
        %v2549 = vadd.f32 %v1452, %v2421
        %v2550 = vadd.f32 %v1453, %v2422
        %v2551 = vadd.f32 %v1454, %v2423
        %v2552 = vadd.f32 %v1455, %v2424
        %v2553 = vadd.f32 %v1456, %v2425
        %v2554 = vadd.f32 %v1457, %v2426
        %v2555 = vadd.f32 %v1458, %v2427
        %v2556 = vadd.f32 %v1459, %v2428
        %v2557 = vadd.f32 %v1460, %v2429
        %v2558 = vadd.f32 %v1461, %v2430
        %v2559 = vadd.f32 %v1462, %v2431
        %v2560 = vadd.f32 %v1463, %v2432
        %v2561 = vadd.f32 %v1464, %v2433
        %v2562 = vadd.f32 %v1465, %v2434
        %v2563 = vadd.f32 %v1466, %v2435
        %v2564 = vadd.f32 %v1467, %v2436
        %v2565 = vadd.f32 %v1468, %v2437
        %v2566 = vadd.f32 %v1469, %v2438
        %v2567 = vadd.f32 %v1470, %v2439
        %v2568 = vadd.f32 %v1471, %v2440
        %v2569 = vadd.f32 %v1472, %v2441
        %v2570 = vadd.f32 %v1473, %v2442
        %v2571 = vadd.f32 %v1474, %v2443
        %v2572 = vadd.f32 %v1475, %v2444
        %v2573 = vadd.f32 %v1476, %v2445
        %v2574 = vadd.f32 %v1477, %v2446
        %v2575 = vadd.f32 %v1478, %v2447
        %v2576 = vadd.f32 %v1479, %v2448
        %v2577 = vadd.f32 %v1480, %v2449
        %v2578 = vadd.f32 %v1481, %v2450
        %v2579 = vadd.f32 %v1482, %v2451
        %v2580 = vadd.f32 %v1483, %v2452
        %v2581 = vadd.f32 %v1484, %v2453
        %v2582 = vadd.f32 %v1485, %v2454
        %v2583 = vadd.f32 %v1486, %v2455
        %v2584 = vadd.f32 %v1487, %v2456
        %v2585 = vadd.f32 %v1488, %v2457
        %v2586 = vadd.f32 %v1489, %v2458
        %v2587 = vadd.f32 %v1490, %v2459
        %v2588 = vadd.f32 %v1491, %v2460
        %v2589 = vadd.f32 %v1492, %v2461
        %v2590 = vadd.f32 %v1493, %v2462
        %v2591 = vadd.f32 %v1494, %v2463
        %v2592 = vadd.f32 %v1495, %v2464
        %v2593 = vadd.f32 %v1496, %v2465
        %v2594 = vadd.f32 %v1497, %v2466
        %v2595 = vadd.f32 %v1498, %v2467
        %v2596 = vadd.f32 %v1499, %v2468
        %v2597 = vadd.f32 %v1500, %v2469
        %v2598 = vadd.f32 %v1501, %v2470
        %v2599 = vadd.f32 %v1502, %v2471
        %v2600 = vadd.f32 %v1503, %v2472
        %v2601 = vadd.f32 %v1504, %v2473
        %v2602 = vadd.f32 %v1505, %v2474
        %v2603 = vadd.f32 %v1506, %v2475
        %v2604 = vadd.f32 %v1507, %v2476
        %v2605 = vadd.f32 %v1508, %v2477
        %v2606 = vadd.f32 %v1509, %v2478
        %v2607 = vadd.f32 %v1510, %v2479
        %v2608 = vadd.f32 %v1511, %v2480
        %v2609 = vadd.f32 %v1512, %v2481
        %v2610 = vadd.f32 %v1513, %v2482
        %v2611 = vadd.f32 %v1514, %v2483
        %v2612 = vadd.f32 %v1515, %v2484
        %v2613 = vadd.f32 %v1516, %v2485
        %v2614 = vadd.f32 %v1517, %v2486
        %v2615 = vadd.f32 %v1518, %v2487
        %v2616 = vadd.f32 %v1519, %v2488
        %v2617 = vadd.f32 %v1520, %v2489
        %v2618 = vadd.f32 %v1521, %v2490
        %v2619 = vadd.f32 %v1522, %v2491
        %v2620 = vadd.f32 %v1523, %v2492
        %v2621 = vadd.f32 %v1524, %v2493
        %v2622 = vadd.f32 %v1525, %v2494
        %v2623 = vadd.f32 %v1526, %v2495
        %v2624 = vadd.f32 %v1527, %v2496
        %v2625 = vadd.f32 %v1528, %v2497
        %v2626 = vadd.f32 %v1529, %v2498
        %v2627 = vadd.f32 %v1530, %v2499
        %v2628 = vadd.f32 %v1531, %v2500
        %v2629 = vadd.f32 %v1532, %v2501
        %v2630 = vadd.f32 %v1533, %v2502
        %v2631 = vadd.f32 %v1534, %v2503
        %v2632 = vadd.f32 %v1535, %v2504
        %v2633 = vadd.f32 %v1536, %v2505
        %v2634 = vadd.f32 %v1537, %v2506
        %v2635 = vadd.f32 %v1538, %v2507
        %v2636 = vadd.f32 %v1539, %v2508
        %v2637 = vadd.f32 %v1540, %v2509
        %v2638 = vadd.f32 %v1541, %v2510
        %v2639 = vadd.f32 %v1542, %v2511
        %v2640 = vadd.f32 %v1543, %v2512
        %v2641 = vadd.f32 %v1544, %v2513
        %v2642 = vadd.f32 %v1545, %v2514
        %v2643 = vadd.f32 %v1546, %v2515
        %v2644 = vadd.f32 %v1547, %v2516
        %v2645 = vadd.f32 %v1548, %v2517
        %v2646 = vadd.f32 %v1549, %v2518
        %v2647 = vadd.f32 %v1550, %v2519
        %v2648 = vadd.f32 %v1551, %v2520
        %v2649 = vadd.f32 %v1552, %v2521
        %v2650 = vadd.f32 %v1553, %v2522
        %v2651 = vadd.f32 %v1554, %v2523
        %v2652 = vadd.f32 %v1555, %v2524
        %v2653 = vadd.f32 %v1556, %v2525
        %v2654 = vadd.f32 %v1557, %v2526
        %v2655 = vadd.f32 %v1558, %v2527
        %v2656 = vadd.f32 %v1559, %v2528
        %v2657 = vadd.f32 %v1560, %v2529
        %v2658 = vadd.f32 %v1561, %v2530
        %vm2659 = vcmask 1045504
        %v2660 = vrot.slane %v361, 2
        %v2661 = vrot.slane %v362, 2
        %v2662 = vsel %vm2659, %v2660, %v2661
        %v2663 = vrot.slane %v363, 2
        %v2664 = vsel %vm2659, %v2661, %v2663
        %v2665 = vrot.slane %v364, 2
        %v2666 = vsel %vm2659, %v2663, %v2665
        %v2667 = vrot.slane %v365, 2
        %v2668 = vsel %vm2659, %v2665, %v2667
        %v2669 = vrot.slane %v366, 2
        %v2670 = vrot.slane %v367, 2
        %v2671 = vsel %vm2659, %v2669, %v2670
        %v2672 = vrot.slane %v368, 2
        %v2673 = vsel %vm2659, %v2670, %v2672
        %v2674 = vrot.slane %v369, 2
        %v2675 = vsel %vm2659, %v2672, %v2674
        %v2676 = vrot.slane %v370, 2
        %v2677 = vsel %vm2659, %v2674, %v2676
        %v2678 = vrot.slane %v371, 2
        %v2679 = vrot.slane %v372, 2
        %v2680 = vsel %vm2659, %v2678, %v2679
        %v2681 = vrot.slane %v373, 2
        %v2682 = vsel %vm2659, %v2679, %v2681
        %v2683 = vrot.slane %v374, 2
        %v2684 = vsel %vm2659, %v2681, %v2683
        %v2685 = vrot.slane %v375, 2
        %v2686 = vsel %vm2659, %v2683, %v2685
        %v2687 = vrot.slane %v376, 2
        %v2688 = vrot.slane %v377, 2
        %v2689 = vsel %vm2659, %v2687, %v2688
        %v2690 = vrot.slane %v378, 2
        %v2691 = vsel %vm2659, %v2688, %v2690
        %v2692 = vrot.slane %v379, 2
        %v2693 = vsel %vm2659, %v2690, %v2692
        %v2694 = vrot.slane %v380, 2
        %v2695 = vsel %vm2659, %v2692, %v2694
        %v2696 = vrot.slane %v381, 2
        %v2697 = vrot.slane %v382, 2
        %v2698 = vsel %vm2659, %v2696, %v2697
        %v2699 = vrot.slane %v383, 2
        %v2700 = vsel %vm2659, %v2697, %v2699
        %v2701 = vrot.slane %v384, 2
        %v2702 = vsel %vm2659, %v2699, %v2701
        %v2703 = vrot.slane %v385, 2
        %v2704 = vsel %vm2659, %v2701, %v2703
        %v2705 = vrot.slane %v386, 2
        %v2706 = vrot.slane %v387, 2
        %v2707 = vsel %vm2659, %v2705, %v2706
        %v2708 = vrot.slane %v388, 2
        %v2709 = vsel %vm2659, %v2706, %v2708
        %v2710 = vrot.slane %v389, 2
        %v2711 = vsel %vm2659, %v2708, %v2710
        %v2712 = vrot.slane %v390, 2
        %v2713 = vsel %vm2659, %v2710, %v2712
        %v2714 = vrot.slane %v391, 2
        %v2715 = vrot.slane %v392, 2
        %v2716 = vsel %vm2659, %v2714, %v2715
        %v2717 = vrot.slane %v393, 2
        %v2718 = vsel %vm2659, %v2715, %v2717
        %v2719 = vrot.slane %v394, 2
        %v2720 = vsel %vm2659, %v2717, %v2719
        %v2721 = vrot.slane %v395, 2
        %v2722 = vsel %vm2659, %v2719, %v2721
        %v2723 = vrot.slane %v396, 2
        %v2724 = vrot.slane %v397, 2
        %v2725 = vsel %vm2659, %v2723, %v2724
        %v2726 = vrot.slane %v398, 2
        %v2727 = vsel %vm2659, %v2724, %v2726
        %v2728 = vrot.slane %v399, 2
        %v2729 = vsel %vm2659, %v2726, %v2728
        %v2730 = vrot.slane %v400, 2
        %v2731 = vsel %vm2659, %v2728, %v2730
        %v2732 = vrot.slane %v401, 2
        %v2733 = vrot.slane %v402, 2
        %v2734 = vsel %vm2659, %v2732, %v2733
        %v2735 = vrot.slane %v403, 2
        %v2736 = vsel %vm2659, %v2733, %v2735
        %v2737 = vrot.slane %v404, 2
        %v2738 = vsel %vm2659, %v2735, %v2737
        %v2739 = vrot.slane %v405, 2
        %v2740 = vsel %vm2659, %v2737, %v2739
        %v2741 = vrot.slane %v406, 2
        %v2742 = vrot.slane %v407, 2
        %v2743 = vsel %vm2659, %v2741, %v2742
        %v2744 = vrot.slane %v408, 2
        %v2745 = vsel %vm2659, %v2742, %v2744
        %v2746 = vrot.slane %v409, 2
        %v2747 = vsel %vm2659, %v2744, %v2746
        %v2748 = vrot.slane %v410, 2
        %v2749 = vsel %vm2659, %v2746, %v2748
        %v2750 = vrot.slane %v411, 2
        %v2751 = vrot.slane %v412, 2
        %v2752 = vsel %vm2659, %v2750, %v2751
        %v2753 = vrot.slane %v413, 2
        %v2754 = vsel %vm2659, %v2751, %v2753
        %v2755 = vrot.slane %v414, 2
        %v2756 = vsel %vm2659, %v2753, %v2755
        %v2757 = vrot.slane %v415, 2
        %v2758 = vsel %vm2659, %v2755, %v2757
        %v2759 = vrot.slane %v416, 2
        %v2760 = vrot.slane %v417, 2
        %v2761 = vsel %vm2659, %v2759, %v2760
        %v2762 = vrot.slane %v418, 2
        %v2763 = vsel %vm2659, %v2760, %v2762
        %v2764 = vrot.slane %v419, 2
        %v2765 = vsel %vm2659, %v2762, %v2764
        %v2766 = vrot.slane %v420, 2
        %v2767 = vsel %vm2659, %v2764, %v2766
        %v2768 = vrot.slane %v421, 2
        %v2769 = vrot.slane %v422, 2
        %v2770 = vsel %vm2659, %v2768, %v2769
        %v2771 = vrot.slane %v423, 2
        %v2772 = vsel %vm2659, %v2769, %v2771
        %v2773 = vrot.slane %v424, 2
        %v2774 = vsel %vm2659, %v2771, %v2773
        %v2775 = vrot.slane %v425, 2
        %v2776 = vsel %vm2659, %v2773, %v2775
        %v2777 = vrot.slane %v426, 2
        %v2778 = vrot.slane %v427, 2
        %v2779 = vsel %vm2659, %v2777, %v2778
        %v2780 = vrot.slane %v428, 2
        %v2781 = vsel %vm2659, %v2778, %v2780
        %v2782 = vrot.slane %v429, 2
        %v2783 = vsel %vm2659, %v2780, %v2782
        %v2784 = vrot.slane %v430, 2
        %v2785 = vsel %vm2659, %v2782, %v2784
        %v2786 = vrot.slane %v431, 2
        %v2787 = vrot.slane %v432, 2
        %v2788 = vsel %vm2659, %v2786, %v2787
        %v2789 = vrot.slane %v433, 2
        %v2790 = vsel %vm2659, %v2787, %v2789
        %v2791 = vrot.slane %v434, 2
        %v2792 = vsel %vm2659, %v2789, %v2791
        %v2793 = vrot.slane %v435, 2
        %v2794 = vsel %vm2659, %v2791, %v2793
        %v2795 = vrot.slane %v436, 2
        %v2796 = vrot.slane %v437, 2
        %v2797 = vsel %vm2659, %v2795, %v2796
        %v2798 = vrot.slane %v438, 2
        %v2799 = vsel %vm2659, %v2796, %v2798
        %v2800 = vrot.slane %v439, 2
        %v2801 = vsel %vm2659, %v2798, %v2800
        %v2802 = vrot.slane %v440, 2
        %v2803 = vsel %vm2659, %v2800, %v2802
        %v2804 = vrot.slane %v441, 2
        %v2805 = vrot.slane %v442, 2
        %v2806 = vsel %vm2659, %v2804, %v2805
        %v2807 = vrot.slane %v443, 2
        %v2808 = vsel %vm2659, %v2805, %v2807
        %v2809 = vrot.slane %v444, 2
        %v2810 = vsel %vm2659, %v2807, %v2809
        %v2811 = vrot.slane %v445, 2
        %v2812 = vsel %vm2659, %v2809, %v2811
        %v2813 = vrot.slane %v446, 2
        %v2814 = vrot.slane %v447, 2
        %v2815 = vsel %vm2659, %v2813, %v2814
        %v2816 = vrot.slane %v448, 2
        %v2817 = vsel %vm2659, %v2814, %v2816
        %v2818 = vrot.slane %v449, 2
        %v2819 = vsel %vm2659, %v2816, %v2818
        %v2820 = vrot.slane %v450, 2
        %v2821 = vsel %vm2659, %v2818, %v2820
        %v2822 = vrot.slane %v451, 2
        %v2823 = vrot.slane %v452, 2
        %v2824 = vsel %vm2659, %v2822, %v2823
        %v2825 = vrot.slane %v453, 2
        %v2826 = vsel %vm2659, %v2823, %v2825
        %v2827 = vrot.slane %v454, 2
        %v2828 = vsel %vm2659, %v2825, %v2827
        %v2829 = vrot.slane %v455, 2
        %v2830 = vsel %vm2659, %v2827, %v2829
        %v2831 = vrot.slane %v456, 2
        %v2832 = vrot.slane %v457, 2
        %v2833 = vsel %vm2659, %v2831, %v2832
        %v2834 = vrot.slane %v458, 2
        %v2835 = vsel %vm2659, %v2832, %v2834
        %v2836 = vrot.slane %v459, 2
        %v2837 = vsel %vm2659, %v2834, %v2836
        %v2838 = vrot.slane %v460, 2
        %v2839 = vsel %vm2659, %v2836, %v2838
        %v2840 = vrot.slane %v461, 2
        %v2841 = vrot.slane %v462, 2
        %v2842 = vsel %vm2659, %v2840, %v2841
        %v2843 = vrot.slane %v463, 2
        %v2844 = vsel %vm2659, %v2841, %v2843
        %v2845 = vrot.slane %v464, 2
        %v2846 = vsel %vm2659, %v2843, %v2845
        %v2847 = vrot.slane %v465, 2
        %v2848 = vsel %vm2659, %v2845, %v2847
        %v2849 = vrot.slane %v466, 2
        %v2850 = vrot.slane %v467, 2
        %v2851 = vsel %vm2659, %v2849, %v2850
        %v2852 = vrot.slane %v468, 2
        %v2853 = vsel %vm2659, %v2850, %v2852
        %v2854 = vrot.slane %v469, 2
        %v2855 = vsel %vm2659, %v2852, %v2854
        %v2856 = vrot.slane %v470, 2
        %v2857 = vsel %vm2659, %v2854, %v2856
        %v2858 = vrot.slane %v471, 2
        %v2859 = vrot.slane %v472, 2
        %v2860 = vsel %vm2659, %v2858, %v2859
        %v2861 = vrot.slane %v473, 2
        %v2862 = vsel %vm2659, %v2859, %v2861
        %v2863 = vrot.slane %v474, 2
        %v2864 = vsel %vm2659, %v2861, %v2863
        %v2865 = vrot.slane %v475, 2
        %v2866 = vsel %vm2659, %v2863, %v2865
        %v2867 = vrot.slane %v476, 2
        %v2868 = vrot.slane %v477, 2
        %v2869 = vsel %vm2659, %v2867, %v2868
        %v2870 = vrot.slane %v478, 2
        %v2871 = vsel %vm2659, %v2868, %v2870
        %v2872 = vrot.slane %v479, 2
        %v2873 = vsel %vm2659, %v2870, %v2872
        %v2874 = vrot.slane %v480, 2
        %v2875 = vsel %vm2659, %v2872, %v2874
        %v2876 = vrot.slane %v481, 2
        %v2877 = vrot.slane %v482, 2
        %v2878 = vsel %vm2659, %v2876, %v2877
        %v2879 = vrot.slane %v483, 2
        %v2880 = vsel %vm2659, %v2877, %v2879
        %v2881 = vrot.slane %v484, 2
        %v2882 = vsel %vm2659, %v2879, %v2881
        %v2883 = vrot.slane %v485, 2
        %v2884 = vsel %vm2659, %v2881, %v2883
        %v2885 = vrot.slane %v486, 2
        %v2886 = vrot.slane %v487, 2
        %v2887 = vsel %vm2659, %v2885, %v2886
        %v2888 = vrot.slane %v488, 2
        %v2889 = vsel %vm2659, %v2886, %v2888
        %v2890 = vrot.slane %v489, 2
        %v2891 = vsel %vm2659, %v2888, %v2890
        %v2892 = vrot.slane %v490, 2
        %v2893 = vsel %vm2659, %v2890, %v2892
        %v2894 = vrot.slane %v491, 2
        %v2895 = vrot.slane %v492, 2
        %v2896 = vsel %vm2659, %v2894, %v2895
        %v2897 = vrot.slane %v493, 2
        %v2898 = vsel %vm2659, %v2895, %v2897
        %v2899 = vrot.slane %v494, 2
        %v2900 = vsel %vm2659, %v2897, %v2899
        %v2901 = vrot.slane %v495, 2
        %v2902 = vsel %vm2659, %v2899, %v2901
        %v2903 = vrot.slane %v496, 2
        %v2904 = vrot.slane %v497, 2
        %v2905 = vsel %vm2659, %v2903, %v2904
        %v2906 = vrot.slane %v498, 2
        %v2907 = vsel %vm2659, %v2904, %v2906
        %v2908 = vrot.slane %v499, 2
        %v2909 = vsel %vm2659, %v2906, %v2908
        %v2910 = vrot.slane %v500, 2
        %v2911 = vsel %vm2659, %v2908, %v2910
        %v2912 = vrot.slane %v501, 2
        %v2913 = vrot.slane %v502, 2
        %v2914 = vsel %vm2659, %v2912, %v2913
        %v2915 = vrot.slane %v503, 2
        %v2916 = vsel %vm2659, %v2913, %v2915
        %v2917 = vrot.slane %v504, 2
        %v2918 = vsel %vm2659, %v2915, %v2917
        %v2919 = vrot.slane %v505, 2
        %v2920 = vsel %vm2659, %v2917, %v2919
        %v2921 = vrot.slane %v506, 2
        %v2922 = vrot.slane %v507, 2
        %v2923 = vsel %vm2659, %v2921, %v2922
        %v2924 = vrot.slane %v508, 2
        %v2925 = vsel %vm2659, %v2922, %v2924
        %v2926 = vrot.slane %v509, 2
        %v2927 = vsel %vm2659, %v2924, %v2926
        %v2928 = vrot.slane %v510, 2
        %v2929 = vsel %vm2659, %v2926, %v2928
        %v2930 = vrot.slane %v511, 2
        %v2931 = vrot.slane %v512, 2
        %v2932 = vsel %vm2659, %v2930, %v2931
        %v2933 = vrot.slane %v513, 2
        %v2934 = vsel %vm2659, %v2931, %v2933
        %v2935 = vrot.slane %v514, 2
        %v2936 = vsel %vm2659, %v2933, %v2935
        %v2937 = vrot.slane %v515, 2
        %v2938 = vsel %vm2659, %v2935, %v2937
        %v2939 = vrot.slane %v516, 2
        %v2940 = vrot.slane %v517, 2
        %v2941 = vsel %vm2659, %v2939, %v2940
        %v2942 = vrot.slane %v518, 2
        %v2943 = vsel %vm2659, %v2940, %v2942
        %v2944 = vrot.slane %v519, 2
        %v2945 = vsel %vm2659, %v2942, %v2944
        %v2946 = vrot.slane %v520, 2
        %v2947 = vsel %vm2659, %v2944, %v2946
        %s2948 = scalar_lea.vmem %s227, 2
        %v2949 = vld [vmem:[%s2948] sm:$0x1]
        %2950 = vset.pattern.permute.xlu0 0
        %2951 = vperm.xlu0 %2950, %v2662
        %v2952 = vpop.permute.xlu0 %2951
        %2954 = vset.pattern.permute.xlu0 0
        %2955 = vperm.xlu0 %2954, %v2664
        %v2956 = vpop.permute.xlu0 %2955
        %2958 = vset.pattern.permute.xlu0 0
        %2959 = vperm.xlu0 %2958, %v2666
        %v2960 = vpop.permute.xlu0 %2959
        %2962 = vset.pattern.permute.xlu0 0
        %2963 = vperm.xlu0 %2962, %v2668
        %v2964 = vpop.permute.xlu0 %2963
        %2966 = vset.pattern.permute.xlu0 0
        %2967 = vperm.xlu0 %2966, %v2671
        %v2968 = vpop.permute.xlu0 %2967
        %2970 = vset.pattern.permute.xlu0 0
        %2971 = vperm.xlu0 %2970, %v2673
        %v2972 = vpop.permute.xlu0 %2971
        %2974 = vset.pattern.permute.xlu0 0
        %2975 = vperm.xlu0 %2974, %v2675
        %v2976 = vpop.permute.xlu0 %2975
        %2978 = vset.pattern.permute.xlu0 0
        %2979 = vperm.xlu0 %2978, %v2677
        %v2980 = vpop.permute.xlu0 %2979
        %2982 = vset.pattern.permute.xlu0 0
        %2983 = vperm.xlu0 %2982, %v2680
        %v2984 = vpop.permute.xlu0 %2983
        %2986 = vset.pattern.permute.xlu0 0
        %2987 = vperm.xlu0 %2986, %v2682
        %v2988 = vpop.permute.xlu0 %2987
        %2990 = vset.pattern.permute.xlu0 0
        %2991 = vperm.xlu0 %2990, %v2684
        %v2992 = vpop.permute.xlu0 %2991
        %2994 = vset.pattern.permute.xlu0 0
        %2995 = vperm.xlu0 %2994, %v2686
        %v2996 = vpop.permute.xlu0 %2995
        %2998 = vset.pattern.permute.xlu0 0
        %2999 = vperm.xlu0 %2998, %v2689
        %v3000 = vpop.permute.xlu0 %2999
        %3002 = vset.pattern.permute.xlu0 0
        %3003 = vperm.xlu0 %3002, %v2691
        %v3004 = vpop.permute.xlu0 %3003
        %3006 = vset.pattern.permute.xlu0 0
        %3007 = vperm.xlu0 %3006, %v2693
        %v3008 = vpop.permute.xlu0 %3007
        %3010 = vset.pattern.permute.xlu0 0
        %3011 = vperm.xlu0 %3010, %v2695
        %v3012 = vpop.permute.xlu0 %3011
        %3014 = vset.pattern.permute.xlu0 0
        %3015 = vperm.xlu0 %3014, %v2698
        %v3016 = vpop.permute.xlu0 %3015
        %3018 = vset.pattern.permute.xlu0 0
        %3019 = vperm.xlu0 %3018, %v2700
        %v3020 = vpop.permute.xlu0 %3019
        %3022 = vset.pattern.permute.xlu0 0
        %3023 = vperm.xlu0 %3022, %v2702
        %v3024 = vpop.permute.xlu0 %3023
        %3026 = vset.pattern.permute.xlu0 0
        %3027 = vperm.xlu0 %3026, %v2704
        %v3028 = vpop.permute.xlu0 %3027
        %3030 = vset.pattern.permute.xlu0 0
        %3031 = vperm.xlu0 %3030, %v2707
        %v3032 = vpop.permute.xlu0 %3031
        %3034 = vset.pattern.permute.xlu0 0
        %3035 = vperm.xlu0 %3034, %v2709
        %v3036 = vpop.permute.xlu0 %3035
        %3038 = vset.pattern.permute.xlu0 0
        %3039 = vperm.xlu0 %3038, %v2711
        %v3040 = vpop.permute.xlu0 %3039
        %3042 = vset.pattern.permute.xlu0 0
        %3043 = vperm.xlu0 %3042, %v2713
        %v3044 = vpop.permute.xlu0 %3043
        %3046 = vset.pattern.permute.xlu0 0
        %3047 = vperm.xlu0 %3046, %v2716
        %v3048 = vpop.permute.xlu0 %3047
        %3050 = vset.pattern.permute.xlu0 0
        %3051 = vperm.xlu0 %3050, %v2718
        %v3052 = vpop.permute.xlu0 %3051
        %3054 = vset.pattern.permute.xlu0 0
        %3055 = vperm.xlu0 %3054, %v2720
        %v3056 = vpop.permute.xlu0 %3055
        %3058 = vset.pattern.permute.xlu0 0
        %3059 = vperm.xlu0 %3058, %v2722
        %v3060 = vpop.permute.xlu0 %3059
        %3062 = vset.pattern.permute.xlu0 0
        %3063 = vperm.xlu0 %3062, %v2725
        %v3064 = vpop.permute.xlu0 %3063
        %3066 = vset.pattern.permute.xlu0 0
        %3067 = vperm.xlu0 %3066, %v2727
        %v3068 = vpop.permute.xlu0 %3067
        %3070 = vset.pattern.permute.xlu0 0
        %3071 = vperm.xlu0 %3070, %v2729
        %v3072 = vpop.permute.xlu0 %3071
        %3074 = vset.pattern.permute.xlu0 0
        %3075 = vperm.xlu0 %3074, %v2731
        %v3076 = vpop.permute.xlu0 %3075
        %3078 = vset.pattern.permute.xlu0 0
        %3079 = vperm.xlu0 %3078, %v2734
        %v3080 = vpop.permute.xlu0 %3079
        %3082 = vset.pattern.permute.xlu0 0
        %3083 = vperm.xlu0 %3082, %v2736
        %v3084 = vpop.permute.xlu0 %3083
        %3086 = vset.pattern.permute.xlu0 0
        %3087 = vperm.xlu0 %3086, %v2738
        %v3088 = vpop.permute.xlu0 %3087
        %3090 = vset.pattern.permute.xlu0 0
        %3091 = vperm.xlu0 %3090, %v2740
        %v3092 = vpop.permute.xlu0 %3091
        %3094 = vset.pattern.permute.xlu0 0
        %3095 = vperm.xlu0 %3094, %v2743
        %v3096 = vpop.permute.xlu0 %3095
        %3098 = vset.pattern.permute.xlu0 0
        %3099 = vperm.xlu0 %3098, %v2745
        %v3100 = vpop.permute.xlu0 %3099
        %3102 = vset.pattern.permute.xlu0 0
        %3103 = vperm.xlu0 %3102, %v2747
        %v3104 = vpop.permute.xlu0 %3103
        %3106 = vset.pattern.permute.xlu0 0
        %3107 = vperm.xlu0 %3106, %v2749
        %v3108 = vpop.permute.xlu0 %3107
        %3110 = vset.pattern.permute.xlu0 0
        %3111 = vperm.xlu0 %3110, %v2752
        %v3112 = vpop.permute.xlu0 %3111
        %3114 = vset.pattern.permute.xlu0 0
        %3115 = vperm.xlu0 %3114, %v2754
        %v3116 = vpop.permute.xlu0 %3115
        %3118 = vset.pattern.permute.xlu0 0
        %3119 = vperm.xlu0 %3118, %v2756
        %v3120 = vpop.permute.xlu0 %3119
        %3122 = vset.pattern.permute.xlu0 0
        %3123 = vperm.xlu0 %3122, %v2758
        %v3124 = vpop.permute.xlu0 %3123
        %3126 = vset.pattern.permute.xlu0 0
        %3127 = vperm.xlu0 %3126, %v2761
        %v3128 = vpop.permute.xlu0 %3127
        %3130 = vset.pattern.permute.xlu0 0
        %3131 = vperm.xlu0 %3130, %v2763
        %v3132 = vpop.permute.xlu0 %3131
        %3134 = vset.pattern.permute.xlu0 0
        %3135 = vperm.xlu0 %3134, %v2765
        %v3136 = vpop.permute.xlu0 %3135
        %3138 = vset.pattern.permute.xlu0 0
        %3139 = vperm.xlu0 %3138, %v2767
        %v3140 = vpop.permute.xlu0 %3139
        %3142 = vset.pattern.permute.xlu0 0
        %3143 = vperm.xlu0 %3142, %v2770
        %v3144 = vpop.permute.xlu0 %3143
        %3146 = vset.pattern.permute.xlu0 0
        %3147 = vperm.xlu0 %3146, %v2772
        %v3148 = vpop.permute.xlu0 %3147
        %3150 = vset.pattern.permute.xlu0 0
        %3151 = vperm.xlu0 %3150, %v2774
        %v3152 = vpop.permute.xlu0 %3151
        %3154 = vset.pattern.permute.xlu0 0
        %3155 = vperm.xlu0 %3154, %v2776
        %v3156 = vpop.permute.xlu0 %3155
        %3158 = vset.pattern.permute.xlu0 0
        %3159 = vperm.xlu0 %3158, %v2779
        %v3160 = vpop.permute.xlu0 %3159
        %3162 = vset.pattern.permute.xlu0 0
        %3163 = vperm.xlu0 %3162, %v2781
        %v3164 = vpop.permute.xlu0 %3163
        %3166 = vset.pattern.permute.xlu0 0
        %3167 = vperm.xlu0 %3166, %v2783
        %v3168 = vpop.permute.xlu0 %3167
        %3170 = vset.pattern.permute.xlu0 0
        %3171 = vperm.xlu0 %3170, %v2785
        %v3172 = vpop.permute.xlu0 %3171
        %3174 = vset.pattern.permute.xlu0 0
        %3175 = vperm.xlu0 %3174, %v2788
        %v3176 = vpop.permute.xlu0 %3175
        %3178 = vset.pattern.permute.xlu0 0
        %3179 = vperm.xlu0 %3178, %v2790
        %v3180 = vpop.permute.xlu0 %3179
        %3182 = vset.pattern.permute.xlu0 0
        %3183 = vperm.xlu0 %3182, %v2792
        %v3184 = vpop.permute.xlu0 %3183
        %3186 = vset.pattern.permute.xlu0 0
        %3187 = vperm.xlu0 %3186, %v2794
        %v3188 = vpop.permute.xlu0 %3187
        %3190 = vset.pattern.permute.xlu0 0
        %3191 = vperm.xlu0 %3190, %v2797
        %v3192 = vpop.permute.xlu0 %3191
        %3194 = vset.pattern.permute.xlu0 0
        %3195 = vperm.xlu0 %3194, %v2799
        %v3196 = vpop.permute.xlu0 %3195
        %3198 = vset.pattern.permute.xlu0 0
        %3199 = vperm.xlu0 %3198, %v2801
        %v3200 = vpop.permute.xlu0 %3199
        %3202 = vset.pattern.permute.xlu0 0
        %3203 = vperm.xlu0 %3202, %v2803
        %v3204 = vpop.permute.xlu0 %3203
        %3206 = vset.pattern.permute.xlu0 0
        %3207 = vperm.xlu0 %3206, %v2806
        %v3208 = vpop.permute.xlu0 %3207
        %3210 = vset.pattern.permute.xlu0 0
        %3211 = vperm.xlu0 %3210, %v2808
        %v3212 = vpop.permute.xlu0 %3211
        %3214 = vset.pattern.permute.xlu0 0
        %3215 = vperm.xlu0 %3214, %v2810
        %v3216 = vpop.permute.xlu0 %3215
        %3218 = vset.pattern.permute.xlu0 0
        %3219 = vperm.xlu0 %3218, %v2812
        %v3220 = vpop.permute.xlu0 %3219
        %3222 = vset.pattern.permute.xlu0 0
        %3223 = vperm.xlu0 %3222, %v2815
        %v3224 = vpop.permute.xlu0 %3223
        %3226 = vset.pattern.permute.xlu0 0
        %3227 = vperm.xlu0 %3226, %v2817
        %v3228 = vpop.permute.xlu0 %3227
        %3230 = vset.pattern.permute.xlu0 0
        %3231 = vperm.xlu0 %3230, %v2819
        %v3232 = vpop.permute.xlu0 %3231
        %3234 = vset.pattern.permute.xlu0 0
        %3235 = vperm.xlu0 %3234, %v2821
        %v3236 = vpop.permute.xlu0 %3235
        %3238 = vset.pattern.permute.xlu0 0
        %3239 = vperm.xlu0 %3238, %v2824
        %v3240 = vpop.permute.xlu0 %3239
        %3242 = vset.pattern.permute.xlu0 0
        %3243 = vperm.xlu0 %3242, %v2826
        %v3244 = vpop.permute.xlu0 %3243
        %3246 = vset.pattern.permute.xlu0 0
        %3247 = vperm.xlu0 %3246, %v2828
        %v3248 = vpop.permute.xlu0 %3247
        %3250 = vset.pattern.permute.xlu0 0
        %3251 = vperm.xlu0 %3250, %v2830
        %v3252 = vpop.permute.xlu0 %3251
        %3254 = vset.pattern.permute.xlu0 0
        %3255 = vperm.xlu0 %3254, %v2833
        %v3256 = vpop.permute.xlu0 %3255
        %3258 = vset.pattern.permute.xlu0 0
        %3259 = vperm.xlu0 %3258, %v2835
        %v3260 = vpop.permute.xlu0 %3259
        %3262 = vset.pattern.permute.xlu0 0
        %3263 = vperm.xlu0 %3262, %v2837
        %v3264 = vpop.permute.xlu0 %3263
        %3266 = vset.pattern.permute.xlu0 0
        %3267 = vperm.xlu0 %3266, %v2839
        %v3268 = vpop.permute.xlu0 %3267
        %3270 = vset.pattern.permute.xlu0 0
        %3271 = vperm.xlu0 %3270, %v2842
        %v3272 = vpop.permute.xlu0 %3271
        %3274 = vset.pattern.permute.xlu0 0
        %3275 = vperm.xlu0 %3274, %v2844
        %v3276 = vpop.permute.xlu0 %3275
        %3278 = vset.pattern.permute.xlu0 0
        %3279 = vperm.xlu0 %3278, %v2846
        %v3280 = vpop.permute.xlu0 %3279
        %3282 = vset.pattern.permute.xlu0 0
        %3283 = vperm.xlu0 %3282, %v2848
        %v3284 = vpop.permute.xlu0 %3283
        %3286 = vset.pattern.permute.xlu0 0
        %3287 = vperm.xlu0 %3286, %v2851
        %v3288 = vpop.permute.xlu0 %3287
        %3290 = vset.pattern.permute.xlu0 0
        %3291 = vperm.xlu0 %3290, %v2853
        %v3292 = vpop.permute.xlu0 %3291
        %3294 = vset.pattern.permute.xlu0 0
        %3295 = vperm.xlu0 %3294, %v2855
        %v3296 = vpop.permute.xlu0 %3295
        %3298 = vset.pattern.permute.xlu0 0
        %3299 = vperm.xlu0 %3298, %v2857
        %v3300 = vpop.permute.xlu0 %3299
        %3302 = vset.pattern.permute.xlu0 0
        %3303 = vperm.xlu0 %3302, %v2860
        %v3304 = vpop.permute.xlu0 %3303
        %3306 = vset.pattern.permute.xlu0 0
        %3307 = vperm.xlu0 %3306, %v2862
        %v3308 = vpop.permute.xlu0 %3307
        %3310 = vset.pattern.permute.xlu0 0
        %3311 = vperm.xlu0 %3310, %v2864
        %v3312 = vpop.permute.xlu0 %3311
        %3314 = vset.pattern.permute.xlu0 0
        %3315 = vperm.xlu0 %3314, %v2866
        %v3316 = vpop.permute.xlu0 %3315
        %3318 = vset.pattern.permute.xlu0 0
        %3319 = vperm.xlu0 %3318, %v2869
        %v3320 = vpop.permute.xlu0 %3319
        %3322 = vset.pattern.permute.xlu0 0
        %3323 = vperm.xlu0 %3322, %v2871
        %v3324 = vpop.permute.xlu0 %3323
        %3326 = vset.pattern.permute.xlu0 0
        %3327 = vperm.xlu0 %3326, %v2873
        %v3328 = vpop.permute.xlu0 %3327
        %3330 = vset.pattern.permute.xlu0 0
        %3331 = vperm.xlu0 %3330, %v2875
        %v3332 = vpop.permute.xlu0 %3331
        %3334 = vset.pattern.permute.xlu0 0
        %3335 = vperm.xlu0 %3334, %v2878
        %v3336 = vpop.permute.xlu0 %3335
        %3338 = vset.pattern.permute.xlu0 0
        %3339 = vperm.xlu0 %3338, %v2880
        %v3340 = vpop.permute.xlu0 %3339
        %3342 = vset.pattern.permute.xlu0 0
        %3343 = vperm.xlu0 %3342, %v2882
        %v3344 = vpop.permute.xlu0 %3343
        %3346 = vset.pattern.permute.xlu0 0
        %3347 = vperm.xlu0 %3346, %v2884
        %v3348 = vpop.permute.xlu0 %3347
        %3350 = vset.pattern.permute.xlu0 0
        %3351 = vperm.xlu0 %3350, %v2887
        %v3352 = vpop.permute.xlu0 %3351
        %3354 = vset.pattern.permute.xlu0 0
        %3355 = vperm.xlu0 %3354, %v2889
        %v3356 = vpop.permute.xlu0 %3355
        %3358 = vset.pattern.permute.xlu0 0
        %3359 = vperm.xlu0 %3358, %v2891
        %v3360 = vpop.permute.xlu0 %3359
        %3362 = vset.pattern.permute.xlu0 0
        %3363 = vperm.xlu0 %3362, %v2893
        %v3364 = vpop.permute.xlu0 %3363
        %3366 = vset.pattern.permute.xlu0 0
        %3367 = vperm.xlu0 %3366, %v2896
        %v3368 = vpop.permute.xlu0 %3367
        %3370 = vset.pattern.permute.xlu0 0
        %3371 = vperm.xlu0 %3370, %v2898
        %v3372 = vpop.permute.xlu0 %3371
        %3374 = vset.pattern.permute.xlu0 0
        %3375 = vperm.xlu0 %3374, %v2900
        %v3376 = vpop.permute.xlu0 %3375
        %3378 = vset.pattern.permute.xlu0 0
        %3379 = vperm.xlu0 %3378, %v2902
        %v3380 = vpop.permute.xlu0 %3379
        %3382 = vset.pattern.permute.xlu0 0
        %3383 = vperm.xlu0 %3382, %v2905
        %v3384 = vpop.permute.xlu0 %3383
        %3386 = vset.pattern.permute.xlu0 0
        %3387 = vperm.xlu0 %3386, %v2907
        %v3388 = vpop.permute.xlu0 %3387
        %3390 = vset.pattern.permute.xlu0 0
        %3391 = vperm.xlu0 %3390, %v2909
        %v3392 = vpop.permute.xlu0 %3391
        %3394 = vset.pattern.permute.xlu0 0
        %3395 = vperm.xlu0 %3394, %v2911
        %v3396 = vpop.permute.xlu0 %3395
        %3398 = vset.pattern.permute.xlu0 0
        %3399 = vperm.xlu0 %3398, %v2914
        %v3400 = vpop.permute.xlu0 %3399
        %3402 = vset.pattern.permute.xlu0 0
        %3403 = vperm.xlu0 %3402, %v2916
        %v3404 = vpop.permute.xlu0 %3403
        %3406 = vset.pattern.permute.xlu0 0
        %3407 = vperm.xlu0 %3406, %v2918
        %v3408 = vpop.permute.xlu0 %3407
        %3410 = vset.pattern.permute.xlu0 0
        %3411 = vperm.xlu0 %3410, %v2920
        %v3412 = vpop.permute.xlu0 %3411
        %3414 = vset.pattern.permute.xlu0 0
        %3415 = vperm.xlu0 %3414, %v2923
        %v3416 = vpop.permute.xlu0 %3415
        %3418 = vset.pattern.permute.xlu0 0
        %3419 = vperm.xlu0 %3418, %v2925
        %v3420 = vpop.permute.xlu0 %3419
        %3422 = vset.pattern.permute.xlu0 0
        %3423 = vperm.xlu0 %3422, %v2927
        %v3424 = vpop.permute.xlu0 %3423
        %3426 = vset.pattern.permute.xlu0 0
        %3427 = vperm.xlu0 %3426, %v2929
        %v3428 = vpop.permute.xlu0 %3427
        %3430 = vset.pattern.permute.xlu0 0
        %3431 = vperm.xlu0 %3430, %v2932
        %v3432 = vpop.permute.xlu0 %3431
        %3434 = vset.pattern.permute.xlu0 0
        %3435 = vperm.xlu0 %3434, %v2934
        %v3436 = vpop.permute.xlu0 %3435
        %3438 = vset.pattern.permute.xlu0 0
        %3439 = vperm.xlu0 %3438, %v2936
        %v3440 = vpop.permute.xlu0 %3439
        %3442 = vset.pattern.permute.xlu0 0
        %3443 = vperm.xlu0 %3442, %v2938
        %v3444 = vpop.permute.xlu0 %3443
        %3446 = vset.pattern.permute.xlu0 0
        %3447 = vperm.xlu0 %3446, %v2941
        %v3448 = vpop.permute.xlu0 %3447
        %3450 = vset.pattern.permute.xlu0 0
        %3451 = vperm.xlu0 %3450, %v2943
        %v3452 = vpop.permute.xlu0 %3451
        %3454 = vset.pattern.permute.xlu0 0
        %3455 = vperm.xlu0 %3454, %v2945
        %v3456 = vpop.permute.xlu0 %3455
        %3458 = vset.pattern.permute.xlu0 0
        %3459 = vperm.xlu0 %3458, %v2947
        %v3460 = vpop.permute.xlu0 %3459
        %v3463 = vlaneseq
        %v3464 = vshrl.u32 %v3463, 7
        %v3465 = vsub.s32 0, %v3464
        %v3466 = vrot.slane %v2949, %v3465
        %v3468 = vmul.f32 %v2952, %v3466
        %v3469 = vmul.f32 %v2956, %v3466
        %v3470 = vmul.f32 %v2960, %v3466
        %v3471 = vmul.f32 %v2964, %v3466
        %v3472 = vmul.f32 %v2968, %v3466
        %v3473 = vmul.f32 %v2972, %v3466
        %v3474 = vmul.f32 %v2976, %v3466
        %v3475 = vmul.f32 %v2980, %v3466
        %v3476 = vmul.f32 %v2984, %v3466
        %v3477 = vmul.f32 %v2988, %v3466
        %v3478 = vmul.f32 %v2992, %v3466
        %v3479 = vmul.f32 %v2996, %v3466
        %v3480 = vmul.f32 %v3000, %v3466
        %v3481 = vmul.f32 %v3004, %v3466
        %v3482 = vmul.f32 %v3008, %v3466
        %v3483 = vmul.f32 %v3012, %v3466
        %v3484 = vmul.f32 %v3016, %v3466
        %v3485 = vmul.f32 %v3020, %v3466
        %v3486 = vmul.f32 %v3024, %v3466
        %v3487 = vmul.f32 %v3028, %v3466
        %v3488 = vmul.f32 %v3032, %v3466
        %v3489 = vmul.f32 %v3036, %v3466
        %v3490 = vmul.f32 %v3040, %v3466
        %v3491 = vmul.f32 %v3044, %v3466
        %v3492 = vmul.f32 %v3048, %v3466
        %v3493 = vmul.f32 %v3052, %v3466
        %v3494 = vmul.f32 %v3056, %v3466
        %v3495 = vmul.f32 %v3060, %v3466
        %v3496 = vmul.f32 %v3064, %v3466
        %v3497 = vmul.f32 %v3068, %v3466
        %v3498 = vmul.f32 %v3072, %v3466
        %v3499 = vmul.f32 %v3076, %v3466
        %v3500 = vmul.f32 %v3080, %v3466
        %v3501 = vmul.f32 %v3084, %v3466
        %v3502 = vmul.f32 %v3088, %v3466
        %v3503 = vmul.f32 %v3092, %v3466
        %v3504 = vmul.f32 %v3096, %v3466
        %v3505 = vmul.f32 %v3100, %v3466
        %v3506 = vmul.f32 %v3104, %v3466
        %v3507 = vmul.f32 %v3108, %v3466
        %v3508 = vmul.f32 %v3112, %v3466
        %v3509 = vmul.f32 %v3116, %v3466
        %v3510 = vmul.f32 %v3120, %v3466
        %v3511 = vmul.f32 %v3124, %v3466
        %v3512 = vmul.f32 %v3128, %v3466
        %v3513 = vmul.f32 %v3132, %v3466
        %v3514 = vmul.f32 %v3136, %v3466
        %v3515 = vmul.f32 %v3140, %v3466
        %v3516 = vmul.f32 %v3144, %v3466
        %v3517 = vmul.f32 %v3148, %v3466
        %v3518 = vmul.f32 %v3152, %v3466
        %v3519 = vmul.f32 %v3156, %v3466
        %v3520 = vmul.f32 %v3160, %v3466
        %v3521 = vmul.f32 %v3164, %v3466
        %v3522 = vmul.f32 %v3168, %v3466
        %v3523 = vmul.f32 %v3172, %v3466
        %v3524 = vmul.f32 %v3176, %v3466
        %v3525 = vmul.f32 %v3180, %v3466
        %v3526 = vmul.f32 %v3184, %v3466
        %v3527 = vmul.f32 %v3188, %v3466
        %v3528 = vmul.f32 %v3192, %v3466
        %v3529 = vmul.f32 %v3196, %v3466
        %v3530 = vmul.f32 %v3200, %v3466
        %v3531 = vmul.f32 %v3204, %v3466
        %v3532 = vmul.f32 %v3208, %v3466
        %v3533 = vmul.f32 %v3212, %v3466
        %v3534 = vmul.f32 %v3216, %v3466
        %v3535 = vmul.f32 %v3220, %v3466
        %v3536 = vmul.f32 %v3224, %v3466
        %v3537 = vmul.f32 %v3228, %v3466
        %v3538 = vmul.f32 %v3232, %v3466
        %v3539 = vmul.f32 %v3236, %v3466
        %v3540 = vmul.f32 %v3240, %v3466
        %v3541 = vmul.f32 %v3244, %v3466
        %v3542 = vmul.f32 %v3248, %v3466
        %v3543 = vmul.f32 %v3252, %v3466
        %v3544 = vmul.f32 %v3256, %v3466
        %v3545 = vmul.f32 %v3260, %v3466
        %v3546 = vmul.f32 %v3264, %v3466
        %v3547 = vmul.f32 %v3268, %v3466
        %v3548 = vmul.f32 %v3272, %v3466
        %v3549 = vmul.f32 %v3276, %v3466
        %v3550 = vmul.f32 %v3280, %v3466
        %v3551 = vmul.f32 %v3284, %v3466
        %v3552 = vmul.f32 %v3288, %v3466
        %v3553 = vmul.f32 %v3292, %v3466
        %v3554 = vmul.f32 %v3296, %v3466
        %v3555 = vmul.f32 %v3300, %v3466
        %v3556 = vmul.f32 %v3304, %v3466
        %v3557 = vmul.f32 %v3308, %v3466
        %v3558 = vmul.f32 %v3312, %v3466
        %v3559 = vmul.f32 %v3316, %v3466
        %v3560 = vmul.f32 %v3320, %v3466
        %v3561 = vmul.f32 %v3324, %v3466
        %v3562 = vmul.f32 %v3328, %v3466
        %v3563 = vmul.f32 %v3332, %v3466
        %v3564 = vmul.f32 %v3336, %v3466
        %v3565 = vmul.f32 %v3340, %v3466
        %v3566 = vmul.f32 %v3344, %v3466
        %v3567 = vmul.f32 %v3348, %v3466
        %v3568 = vmul.f32 %v3352, %v3466
        %v3569 = vmul.f32 %v3356, %v3466
        %v3570 = vmul.f32 %v3360, %v3466
        %v3571 = vmul.f32 %v3364, %v3466
        %v3572 = vmul.f32 %v3368, %v3466
        %v3573 = vmul.f32 %v3372, %v3466
        %v3574 = vmul.f32 %v3376, %v3466
        %v3575 = vmul.f32 %v3380, %v3466
        %v3576 = vmul.f32 %v3384, %v3466
        %v3577 = vmul.f32 %v3388, %v3466
        %v3578 = vmul.f32 %v3392, %v3466
        %v3579 = vmul.f32 %v3396, %v3466
        %v3580 = vmul.f32 %v3400, %v3466
        %v3581 = vmul.f32 %v3404, %v3466
        %v3582 = vmul.f32 %v3408, %v3466
        %v3583 = vmul.f32 %v3412, %v3466
        %v3584 = vmul.f32 %v3416, %v3466
        %v3585 = vmul.f32 %v3420, %v3466
        %v3586 = vmul.f32 %v3424, %v3466
        %v3587 = vmul.f32 %v3428, %v3466
        %v3588 = vmul.f32 %v3432, %v3466
        %v3589 = vmul.f32 %v3436, %v3466
        %v3590 = vmul.f32 %v3440, %v3466
        %v3591 = vmul.f32 %v3444, %v3466
        %v3592 = vmul.f32 %v3448, %v3466
        %v3593 = vmul.f32 %v3452, %v3466
        %v3594 = vmul.f32 %v3456, %v3466
        %v3595 = vmul.f32 %v3460, %v3466
        %v3596 = vadd.f32 %v2531, %v3468
        %v3597 = vadd.f32 %v2532, %v3469
        %v3598 = vadd.f32 %v2533, %v3470
        %v3599 = vadd.f32 %v2534, %v3471
        %v3600 = vadd.f32 %v2535, %v3472
        %v3601 = vadd.f32 %v2536, %v3473
        %v3602 = vadd.f32 %v2537, %v3474
        %v3603 = vadd.f32 %v2538, %v3475
        %v3604 = vadd.f32 %v2539, %v3476
        %v3605 = vadd.f32 %v2540, %v3477
        %v3606 = vadd.f32 %v2541, %v3478
        %v3607 = vadd.f32 %v2542, %v3479
        %v3608 = vadd.f32 %v2543, %v3480
        %v3609 = vadd.f32 %v2544, %v3481
        %v3610 = vadd.f32 %v2545, %v3482
        %v3611 = vadd.f32 %v2546, %v3483
        %v3612 = vadd.f32 %v2547, %v3484
        %v3613 = vadd.f32 %v2548, %v3485
        %v3614 = vadd.f32 %v2549, %v3486
        %v3615 = vadd.f32 %v2550, %v3487
        %v3616 = vadd.f32 %v2551, %v3488
        %v3617 = vadd.f32 %v2552, %v3489
        %v3618 = vadd.f32 %v2553, %v3490
        %v3619 = vadd.f32 %v2554, %v3491
        %v3620 = vadd.f32 %v2555, %v3492
        %v3621 = vadd.f32 %v2556, %v3493
        %v3622 = vadd.f32 %v2557, %v3494
        %v3623 = vadd.f32 %v2558, %v3495
        %v3624 = vadd.f32 %v2559, %v3496
        %v3625 = vadd.f32 %v2560, %v3497
        %v3626 = vadd.f32 %v2561, %v3498
        %v3627 = vadd.f32 %v2562, %v3499
        %v3628 = vadd.f32 %v2563, %v3500
        %v3629 = vadd.f32 %v2564, %v3501
        %v3630 = vadd.f32 %v2565, %v3502
        %v3631 = vadd.f32 %v2566, %v3503
        %v3632 = vadd.f32 %v2567, %v3504
        %v3633 = vadd.f32 %v2568, %v3505
        %v3634 = vadd.f32 %v2569, %v3506
        %v3635 = vadd.f32 %v2570, %v3507
        %v3636 = vadd.f32 %v2571, %v3508
        %v3637 = vadd.f32 %v2572, %v3509
        %v3638 = vadd.f32 %v2573, %v3510
        %v3639 = vadd.f32 %v2574, %v3511
        %v3640 = vadd.f32 %v2575, %v3512
        %v3641 = vadd.f32 %v2576, %v3513
        %v3642 = vadd.f32 %v2577, %v3514
        %v3643 = vadd.f32 %v2578, %v3515
        %v3644 = vadd.f32 %v2579, %v3516
        %v3645 = vadd.f32 %v2580, %v3517
        %v3646 = vadd.f32 %v2581, %v3518
        %v3647 = vadd.f32 %v2582, %v3519
        %v3648 = vadd.f32 %v2583, %v3520
        %v3649 = vadd.f32 %v2584, %v3521
        %v3650 = vadd.f32 %v2585, %v3522
        %v3651 = vadd.f32 %v2586, %v3523
        %v3652 = vadd.f32 %v2587, %v3524
        %v3653 = vadd.f32 %v2588, %v3525
        %v3654 = vadd.f32 %v2589, %v3526
        %v3655 = vadd.f32 %v2590, %v3527
        %v3656 = vadd.f32 %v2591, %v3528
        %v3657 = vadd.f32 %v2592, %v3529
        %v3658 = vadd.f32 %v2593, %v3530
        %v3659 = vadd.f32 %v2594, %v3531
        %v3660 = vadd.f32 %v2595, %v3532
        %v3661 = vadd.f32 %v2596, %v3533
        %v3662 = vadd.f32 %v2597, %v3534
        %v3663 = vadd.f32 %v2598, %v3535
        %v3664 = vadd.f32 %v2599, %v3536
        %v3665 = vadd.f32 %v2600, %v3537
        %v3666 = vadd.f32 %v2601, %v3538
        %v3667 = vadd.f32 %v2602, %v3539
        %v3668 = vadd.f32 %v2603, %v3540
        %v3669 = vadd.f32 %v2604, %v3541
        %v3670 = vadd.f32 %v2605, %v3542
        %v3671 = vadd.f32 %v2606, %v3543
        %v3672 = vadd.f32 %v2607, %v3544
        %v3673 = vadd.f32 %v2608, %v3545
        %v3674 = vadd.f32 %v2609, %v3546
        %v3675 = vadd.f32 %v2610, %v3547
        %v3676 = vadd.f32 %v2611, %v3548
        %v3677 = vadd.f32 %v2612, %v3549
        %v3678 = vadd.f32 %v2613, %v3550
        %v3679 = vadd.f32 %v2614, %v3551
        %v3680 = vadd.f32 %v2615, %v3552
        %v3681 = vadd.f32 %v2616, %v3553
        %v3682 = vadd.f32 %v2617, %v3554
        %v3683 = vadd.f32 %v2618, %v3555
        %v3684 = vadd.f32 %v2619, %v3556
        %v3685 = vadd.f32 %v2620, %v3557
        %v3686 = vadd.f32 %v2621, %v3558
        %v3687 = vadd.f32 %v2622, %v3559
        %v3688 = vadd.f32 %v2623, %v3560
        %v3689 = vadd.f32 %v2624, %v3561
        %v3690 = vadd.f32 %v2625, %v3562
        %v3691 = vadd.f32 %v2626, %v3563
        %v3692 = vadd.f32 %v2627, %v3564
        %v3693 = vadd.f32 %v2628, %v3565
        %v3694 = vadd.f32 %v2629, %v3566
        %v3695 = vadd.f32 %v2630, %v3567
        %v3696 = vadd.f32 %v2631, %v3568
        %v3697 = vadd.f32 %v2632, %v3569
        %v3698 = vadd.f32 %v2633, %v3570
        %v3699 = vadd.f32 %v2634, %v3571
        %v3700 = vadd.f32 %v2635, %v3572
        %v3701 = vadd.f32 %v2636, %v3573
        %v3702 = vadd.f32 %v2637, %v3574
        %v3703 = vadd.f32 %v2638, %v3575
        %v3704 = vadd.f32 %v2639, %v3576
        %v3705 = vadd.f32 %v2640, %v3577
        %v3706 = vadd.f32 %v2641, %v3578
        %v3707 = vadd.f32 %v2642, %v3579
        %v3708 = vadd.f32 %v2643, %v3580
        %v3709 = vadd.f32 %v2644, %v3581
        %v3710 = vadd.f32 %v2645, %v3582
        %v3711 = vadd.f32 %v2646, %v3583
        %v3712 = vadd.f32 %v2647, %v3584
        %v3713 = vadd.f32 %v2648, %v3585
        %v3714 = vadd.f32 %v2649, %v3586
        %v3715 = vadd.f32 %v2650, %v3587
        %v3716 = vadd.f32 %v2651, %v3588
        %v3717 = vadd.f32 %v2652, %v3589
        %v3718 = vadd.f32 %v2653, %v3590
        %v3719 = vadd.f32 %v2654, %v3591
        %v3720 = vadd.f32 %v2655, %v3592
        %v3721 = vadd.f32 %v2656, %v3593
        %v3722 = vadd.f32 %v2657, %v3594
        %v3723 = vadd.f32 %v2658, %v3595
        %s3724 = scalar_lea.vmem %s227, 3
        %v3725 = vld [vmem:[%s3724] sm:$0x1]
        %3727 = vset.pattern.permute.xlu0 0
        %3728 = vperm.xlu0 %3727, %v521
        %v3729 = vpop.permute.xlu0 %3728
        %3732 = vset.pattern.permute.xlu0 0
        %3733 = vperm.xlu0 %3732, %v522
        %v3734 = vpop.permute.xlu0 %3733
        %3737 = vset.pattern.permute.xlu0 0
        %3738 = vperm.xlu0 %3737, %v523
        %v3739 = vpop.permute.xlu0 %3738
        %3742 = vset.pattern.permute.xlu0 0
        %3743 = vperm.xlu0 %3742, %v524
        %v3744 = vpop.permute.xlu0 %3743
        %v3747 = vlaneseq
        %v3748 = vshrl.u32 %v3747, 7
        %v3749 = vsub.s32 0, %v3748
        %v3750 = vrot.slane %v3725, %v3749
        %v3752 = vmul.f32 %v683, %v3750
        %v3753 = vmul.f32 %v688, %v3750
        %v3754 = vmul.f32 %v693, %v3750
        %v3755 = vmul.f32 %v698, %v3750
        %v3756 = vmul.f32 %v703, %v3750
        %v3757 = vmul.f32 %v708, %v3750
        %v3758 = vmul.f32 %v713, %v3750
        %v3759 = vmul.f32 %v718, %v3750
        %v3760 = vmul.f32 %v723, %v3750
        %v3761 = vmul.f32 %v728, %v3750
        %v3762 = vmul.f32 %v733, %v3750
        %v3763 = vmul.f32 %v738, %v3750
        %v3764 = vmul.f32 %v743, %v3750
        %v3765 = vmul.f32 %v748, %v3750
        %v3766 = vmul.f32 %v753, %v3750
        %v3767 = vmul.f32 %v758, %v3750
        %v3768 = vmul.f32 %v763, %v3750
        %v3769 = vmul.f32 %v768, %v3750
        %v3770 = vmul.f32 %v773, %v3750
        %v3771 = vmul.f32 %v778, %v3750
        %v3772 = vmul.f32 %v783, %v3750
        %v3773 = vmul.f32 %v788, %v3750
        %v3774 = vmul.f32 %v793, %v3750
        %v3775 = vmul.f32 %v798, %v3750
        %v3776 = vmul.f32 %v803, %v3750
        %v3777 = vmul.f32 %v808, %v3750
        %v3778 = vmul.f32 %v813, %v3750
        %v3779 = vmul.f32 %v818, %v3750
        %v3780 = vmul.f32 %v823, %v3750
        %v3781 = vmul.f32 %v828, %v3750
        %v3782 = vmul.f32 %v833, %v3750
        %v3783 = vmul.f32 %v838, %v3750
        %v3784 = vmul.f32 %v843, %v3750
        %v3785 = vmul.f32 %v848, %v3750
        %v3786 = vmul.f32 %v853, %v3750
        %v3787 = vmul.f32 %v858, %v3750
        %v3788 = vmul.f32 %v863, %v3750
        %v3789 = vmul.f32 %v868, %v3750
        %v3790 = vmul.f32 %v873, %v3750
        %v3791 = vmul.f32 %v878, %v3750
        %v3792 = vmul.f32 %v883, %v3750
        %v3793 = vmul.f32 %v888, %v3750
        %v3794 = vmul.f32 %v893, %v3750
        %v3795 = vmul.f32 %v898, %v3750
        %v3796 = vmul.f32 %v903, %v3750
        %v3797 = vmul.f32 %v908, %v3750
        %v3798 = vmul.f32 %v913, %v3750
        %v3799 = vmul.f32 %v918, %v3750
        %v3800 = vmul.f32 %v923, %v3750
        %v3801 = vmul.f32 %v928, %v3750
        %v3802 = vmul.f32 %v933, %v3750
        %v3803 = vmul.f32 %v938, %v3750
        %v3804 = vmul.f32 %v943, %v3750
        %v3805 = vmul.f32 %v948, %v3750
        %v3806 = vmul.f32 %v953, %v3750
        %v3807 = vmul.f32 %v958, %v3750
        %v3808 = vmul.f32 %v963, %v3750
        %v3809 = vmul.f32 %v968, %v3750
        %v3810 = vmul.f32 %v973, %v3750
        %v3811 = vmul.f32 %v978, %v3750
        %v3812 = vmul.f32 %v983, %v3750
        %v3813 = vmul.f32 %v988, %v3750
        %v3814 = vmul.f32 %v993, %v3750
        %v3815 = vmul.f32 %v998, %v3750
        %v3816 = vmul.f32 %v1003, %v3750
        %v3817 = vmul.f32 %v1008, %v3750
        %v3818 = vmul.f32 %v1013, %v3750
        %v3819 = vmul.f32 %v1018, %v3750
        %v3820 = vmul.f32 %v1023, %v3750
        %v3821 = vmul.f32 %v1028, %v3750
        %v3822 = vmul.f32 %v1033, %v3750
        %v3823 = vmul.f32 %v1038, %v3750
        %v3824 = vmul.f32 %v1043, %v3750
        %v3825 = vmul.f32 %v1048, %v3750
        %v3826 = vmul.f32 %v1053, %v3750
        %v3827 = vmul.f32 %v1058, %v3750
        %v3828 = vmul.f32 %v1063, %v3750
        %v3829 = vmul.f32 %v1068, %v3750
        %v3830 = vmul.f32 %v1073, %v3750
        %v3831 = vmul.f32 %v1078, %v3750
        %v3832 = vmul.f32 %v1083, %v3750
        %v3833 = vmul.f32 %v1088, %v3750
        %v3834 = vmul.f32 %v1093, %v3750
        %v3835 = vmul.f32 %v1098, %v3750
        %v3836 = vmul.f32 %v1103, %v3750
        %v3837 = vmul.f32 %v1108, %v3750
        %v3838 = vmul.f32 %v1113, %v3750
        %v3839 = vmul.f32 %v1118, %v3750
        %v3840 = vmul.f32 %v1123, %v3750
        %v3841 = vmul.f32 %v1128, %v3750
        %v3842 = vmul.f32 %v1133, %v3750
        %v3843 = vmul.f32 %v1138, %v3750
        %v3844 = vmul.f32 %v1143, %v3750
        %v3845 = vmul.f32 %v1148, %v3750
        %v3846 = vmul.f32 %v1153, %v3750
        %v3847 = vmul.f32 %v1158, %v3750
        %v3848 = vmul.f32 %v1163, %v3750
        %v3849 = vmul.f32 %v1168, %v3750
        %v3850 = vmul.f32 %v1173, %v3750
        %v3851 = vmul.f32 %v1178, %v3750
        %v3852 = vmul.f32 %v1183, %v3750
        %v3853 = vmul.f32 %v1188, %v3750
        %v3854 = vmul.f32 %v1193, %v3750
        %v3855 = vmul.f32 %v1198, %v3750
        %v3856 = vmul.f32 %v1203, %v3750
        %v3857 = vmul.f32 %v1208, %v3750
        %v3858 = vmul.f32 %v1213, %v3750
        %v3859 = vmul.f32 %v1218, %v3750
        %v3860 = vmul.f32 %v1223, %v3750
        %v3861 = vmul.f32 %v1228, %v3750
        %v3862 = vmul.f32 %v1233, %v3750
        %v3863 = vmul.f32 %v1238, %v3750
        %v3864 = vmul.f32 %v1243, %v3750
        %v3865 = vmul.f32 %v1248, %v3750
        %v3866 = vmul.f32 %v1253, %v3750
        %v3867 = vmul.f32 %v1258, %v3750
        %v3868 = vmul.f32 %v1263, %v3750
        %v3869 = vmul.f32 %v1268, %v3750
        %v3870 = vmul.f32 %v1273, %v3750
        %v3871 = vmul.f32 %v1278, %v3750
        %v3872 = vmul.f32 %v1283, %v3750
        %v3873 = vmul.f32 %v1288, %v3750
        %v3874 = vmul.f32 %v1293, %v3750
        %v3875 = vmul.f32 %v1298, %v3750
        %v3876 = vmul.f32 %v3729, %v3750
        %v3877 = vmul.f32 %v3734, %v3750
        %v3878 = vmul.f32 %v3739, %v3750
        %v3879 = vmul.f32 %v3744, %v3750
        %v3880 = vadd.f32 %v3596, %v3752
        %v3881 = vadd.f32 %v3597, %v3753
        %v3882 = vadd.f32 %v3598, %v3754
        %v3883 = vadd.f32 %v3599, %v3755
        %v3884 = vadd.f32 %v3600, %v3756
        %v3885 = vadd.f32 %v3601, %v3757
        %v3886 = vadd.f32 %v3602, %v3758
        %v3887 = vadd.f32 %v3603, %v3759
        %v3888 = vadd.f32 %v3604, %v3760
        %v3889 = vadd.f32 %v3605, %v3761
        %v3890 = vadd.f32 %v3606, %v3762
        %v3891 = vadd.f32 %v3607, %v3763
        %v3892 = vadd.f32 %v3608, %v3764
        %v3893 = vadd.f32 %v3609, %v3765
        %v3894 = vadd.f32 %v3610, %v3766
        %v3895 = vadd.f32 %v3611, %v3767
        %v3896 = vadd.f32 %v3612, %v3768
        %v3897 = vadd.f32 %v3613, %v3769
        %v3898 = vadd.f32 %v3614, %v3770
        %v3899 = vadd.f32 %v3615, %v3771
        %v3900 = vadd.f32 %v3616, %v3772
        %v3901 = vadd.f32 %v3617, %v3773
        %v3902 = vadd.f32 %v3618, %v3774
        %v3903 = vadd.f32 %v3619, %v3775
        %v3904 = vadd.f32 %v3620, %v3776
        %v3905 = vadd.f32 %v3621, %v3777
        %v3906 = vadd.f32 %v3622, %v3778
        %v3907 = vadd.f32 %v3623, %v3779
        %v3908 = vadd.f32 %v3624, %v3780
        %v3909 = vadd.f32 %v3625, %v3781
        %v3910 = vadd.f32 %v3626, %v3782
        %v3911 = vadd.f32 %v3627, %v3783
        %v3912 = vadd.f32 %v3628, %v3784
        %v3913 = vadd.f32 %v3629, %v3785
        %v3914 = vadd.f32 %v3630, %v3786
        %v3915 = vadd.f32 %v3631, %v3787
        %v3916 = vadd.f32 %v3632, %v3788
        %v3917 = vadd.f32 %v3633, %v3789
        %v3918 = vadd.f32 %v3634, %v3790
        %v3919 = vadd.f32 %v3635, %v3791
        %v3920 = vadd.f32 %v3636, %v3792
        %v3921 = vadd.f32 %v3637, %v3793
        %v3922 = vadd.f32 %v3638, %v3794
        %v3923 = vadd.f32 %v3639, %v3795
        %v3924 = vadd.f32 %v3640, %v3796
        %v3925 = vadd.f32 %v3641, %v3797
        %v3926 = vadd.f32 %v3642, %v3798
        %v3927 = vadd.f32 %v3643, %v3799
        %v3928 = vadd.f32 %v3644, %v3800
        %v3929 = vadd.f32 %v3645, %v3801
        %v3930 = vadd.f32 %v3646, %v3802
        %v3931 = vadd.f32 %v3647, %v3803
        %v3932 = vadd.f32 %v3648, %v3804
        %v3933 = vadd.f32 %v3649, %v3805
        %v3934 = vadd.f32 %v3650, %v3806
        %v3935 = vadd.f32 %v3651, %v3807
        %v3936 = vadd.f32 %v3652, %v3808
        %v3937 = vadd.f32 %v3653, %v3809
        %v3938 = vadd.f32 %v3654, %v3810
        %v3939 = vadd.f32 %v3655, %v3811
        %v3940 = vadd.f32 %v3656, %v3812
        %v3941 = vadd.f32 %v3657, %v3813
        %v3942 = vadd.f32 %v3658, %v3814
        %v3943 = vadd.f32 %v3659, %v3815
        %v3944 = vadd.f32 %v3660, %v3816
        %v3945 = vadd.f32 %v3661, %v3817
        %v3946 = vadd.f32 %v3662, %v3818
        %v3947 = vadd.f32 %v3663, %v3819
        %v3948 = vadd.f32 %v3664, %v3820
        %v3949 = vadd.f32 %v3665, %v3821
        %v3950 = vadd.f32 %v3666, %v3822
        %v3951 = vadd.f32 %v3667, %v3823
        %v3952 = vadd.f32 %v3668, %v3824
        %v3953 = vadd.f32 %v3669, %v3825
        %v3954 = vadd.f32 %v3670, %v3826
        %v3955 = vadd.f32 %v3671, %v3827
        %v3956 = vadd.f32 %v3672, %v3828
        %v3957 = vadd.f32 %v3673, %v3829
        %v3958 = vadd.f32 %v3674, %v3830
        %v3959 = vadd.f32 %v3675, %v3831
        %v3960 = vadd.f32 %v3676, %v3832
        %v3961 = vadd.f32 %v3677, %v3833
        %v3962 = vadd.f32 %v3678, %v3834
        %v3963 = vadd.f32 %v3679, %v3835
        %v3964 = vadd.f32 %v3680, %v3836
        %v3965 = vadd.f32 %v3681, %v3837
        %v3966 = vadd.f32 %v3682, %v3838
        %v3967 = vadd.f32 %v3683, %v3839
        %v3968 = vadd.f32 %v3684, %v3840
        %v3969 = vadd.f32 %v3685, %v3841
        %v3970 = vadd.f32 %v3686, %v3842
        %v3971 = vadd.f32 %v3687, %v3843
        %v3972 = vadd.f32 %v3688, %v3844
        %v3973 = vadd.f32 %v3689, %v3845
        %v3974 = vadd.f32 %v3690, %v3846
        %v3975 = vadd.f32 %v3691, %v3847
        %v3976 = vadd.f32 %v3692, %v3848
        %v3977 = vadd.f32 %v3693, %v3849
        %v3978 = vadd.f32 %v3694, %v3850
        %v3979 = vadd.f32 %v3695, %v3851
        %v3980 = vadd.f32 %v3696, %v3852
        %v3981 = vadd.f32 %v3697, %v3853
        %v3982 = vadd.f32 %v3698, %v3854
        %v3983 = vadd.f32 %v3699, %v3855
        %v3984 = vadd.f32 %v3700, %v3856
        %v3985 = vadd.f32 %v3701, %v3857
        %v3986 = vadd.f32 %v3702, %v3858
        %v3987 = vadd.f32 %v3703, %v3859
        %v3988 = vadd.f32 %v3704, %v3860
        %v3989 = vadd.f32 %v3705, %v3861
        %v3990 = vadd.f32 %v3706, %v3862
        %v3991 = vadd.f32 %v3707, %v3863
        %v3992 = vadd.f32 %v3708, %v3864
        %v3993 = vadd.f32 %v3709, %v3865
        %v3994 = vadd.f32 %v3710, %v3866
        %v3995 = vadd.f32 %v3711, %v3867
        %v3996 = vadd.f32 %v3712, %v3868
        %v3997 = vadd.f32 %v3713, %v3869
        %v3998 = vadd.f32 %v3714, %v3870
        %v3999 = vadd.f32 %v3715, %v3871
        %v4000 = vadd.f32 %v3716, %v3872
        %v4001 = vadd.f32 %v3717, %v3873
        %v4002 = vadd.f32 %v3718, %v3874
        %v4003 = vadd.f32 %v3719, %v3875
        %v4004 = vadd.f32 %v3720, %v3876
        %v4005 = vadd.f32 %v3721, %v3877
        %v4006 = vadd.f32 %v3722, %v3878
        %v4007 = vadd.f32 %v3723, %v3879
        %v4009 = vrot.slane %v521, 1
        %v4010 = vrot.slane %v522, 1
        %v4011 = vsel %vm1594, %v4009, %v4010
        %v4012 = vrot.slane %v523, 1
        %v4013 = vsel %vm1594, %v4010, %v4012
        %v4014 = vrot.slane %v524, 1
        %v4015 = vsel %vm1594, %v4012, %v4014
        %v4016 = vrot.slane %v525, 1
        %v4017 = vsel %vm1594, %v4014, %v4016
        %s4018 = scalar_lea.vmem %s227, 4
        %v4019 = vld [vmem:[%s4018] sm:$0x1]
        %4020 = vset.pattern.permute.xlu0 0
        %4021 = vperm.xlu0 %4020, %v4011
        %v4022 = vpop.permute.xlu0 %4021
        %4024 = vset.pattern.permute.xlu0 0
        %4025 = vperm.xlu0 %4024, %v4013
        %v4026 = vpop.permute.xlu0 %4025
        %4028 = vset.pattern.permute.xlu0 0
        %4029 = vperm.xlu0 %4028, %v4015
        %v4030 = vpop.permute.xlu0 %4029
        %4032 = vset.pattern.permute.xlu0 0
        %4033 = vperm.xlu0 %4032, %v4017
        %v4034 = vpop.permute.xlu0 %4033
        %v4037 = vlaneseq
        %v4038 = vshrl.u32 %v4037, 7
        %v4039 = vsub.s32 0, %v4038
        %v4040 = vrot.slane %v4019, %v4039
        %v4042 = vmul.f32 %v1903, %v4040
        %v4043 = vmul.f32 %v1907, %v4040
        %v4044 = vmul.f32 %v1911, %v4040
        %v4045 = vmul.f32 %v1915, %v4040
        %v4046 = vmul.f32 %v1919, %v4040
        %v4047 = vmul.f32 %v1923, %v4040
        %v4048 = vmul.f32 %v1927, %v4040
        %v4049 = vmul.f32 %v1931, %v4040
        %v4050 = vmul.f32 %v1935, %v4040
        %v4051 = vmul.f32 %v1939, %v4040
        %v4052 = vmul.f32 %v1943, %v4040
        %v4053 = vmul.f32 %v1947, %v4040
        %v4054 = vmul.f32 %v1951, %v4040
        %v4055 = vmul.f32 %v1955, %v4040
        %v4056 = vmul.f32 %v1959, %v4040
        %v4057 = vmul.f32 %v1963, %v4040
        %v4058 = vmul.f32 %v1967, %v4040
        %v4059 = vmul.f32 %v1971, %v4040
        %v4060 = vmul.f32 %v1975, %v4040
        %v4061 = vmul.f32 %v1979, %v4040
        %v4062 = vmul.f32 %v1983, %v4040
        %v4063 = vmul.f32 %v1987, %v4040
        %v4064 = vmul.f32 %v1991, %v4040
        %v4065 = vmul.f32 %v1995, %v4040
        %v4066 = vmul.f32 %v1999, %v4040
        %v4067 = vmul.f32 %v2003, %v4040
        %v4068 = vmul.f32 %v2007, %v4040
        %v4069 = vmul.f32 %v2011, %v4040
        %v4070 = vmul.f32 %v2015, %v4040
        %v4071 = vmul.f32 %v2019, %v4040
        %v4072 = vmul.f32 %v2023, %v4040
        %v4073 = vmul.f32 %v2027, %v4040
        %v4074 = vmul.f32 %v2031, %v4040
        %v4075 = vmul.f32 %v2035, %v4040
        %v4076 = vmul.f32 %v2039, %v4040
        %v4077 = vmul.f32 %v2043, %v4040
        %v4078 = vmul.f32 %v2047, %v4040
        %v4079 = vmul.f32 %v2051, %v4040
        %v4080 = vmul.f32 %v2055, %v4040
        %v4081 = vmul.f32 %v2059, %v4040
        %v4082 = vmul.f32 %v2063, %v4040
        %v4083 = vmul.f32 %v2067, %v4040
        %v4084 = vmul.f32 %v2071, %v4040
        %v4085 = vmul.f32 %v2075, %v4040
        %v4086 = vmul.f32 %v2079, %v4040
        %v4087 = vmul.f32 %v2083, %v4040
        %v4088 = vmul.f32 %v2087, %v4040
        %v4089 = vmul.f32 %v2091, %v4040
        %v4090 = vmul.f32 %v2095, %v4040
        %v4091 = vmul.f32 %v2099, %v4040
        %v4092 = vmul.f32 %v2103, %v4040
        %v4093 = vmul.f32 %v2107, %v4040
        %v4094 = vmul.f32 %v2111, %v4040
        %v4095 = vmul.f32 %v2115, %v4040
        %v4096 = vmul.f32 %v2119, %v4040
        %v4097 = vmul.f32 %v2123, %v4040
        %v4098 = vmul.f32 %v2127, %v4040
        %v4099 = vmul.f32 %v2131, %v4040
        %v4100 = vmul.f32 %v2135, %v4040
        %v4101 = vmul.f32 %v2139, %v4040
        %v4102 = vmul.f32 %v2143, %v4040
        %v4103 = vmul.f32 %v2147, %v4040
        %v4104 = vmul.f32 %v2151, %v4040
        %v4105 = vmul.f32 %v2155, %v4040
        %v4106 = vmul.f32 %v2159, %v4040
        %v4107 = vmul.f32 %v2163, %v4040
        %v4108 = vmul.f32 %v2167, %v4040
        %v4109 = vmul.f32 %v2171, %v4040
        %v4110 = vmul.f32 %v2175, %v4040
        %v4111 = vmul.f32 %v2179, %v4040
        %v4112 = vmul.f32 %v2183, %v4040
        %v4113 = vmul.f32 %v2187, %v4040
        %v4114 = vmul.f32 %v2191, %v4040
        %v4115 = vmul.f32 %v2195, %v4040
        %v4116 = vmul.f32 %v2199, %v4040
        %v4117 = vmul.f32 %v2203, %v4040
        %v4118 = vmul.f32 %v2207, %v4040
        %v4119 = vmul.f32 %v2211, %v4040
        %v4120 = vmul.f32 %v2215, %v4040
        %v4121 = vmul.f32 %v2219, %v4040
        %v4122 = vmul.f32 %v2223, %v4040
        %v4123 = vmul.f32 %v2227, %v4040
        %v4124 = vmul.f32 %v2231, %v4040
        %v4125 = vmul.f32 %v2235, %v4040
        %v4126 = vmul.f32 %v2239, %v4040
        %v4127 = vmul.f32 %v2243, %v4040
        %v4128 = vmul.f32 %v2247, %v4040
        %v4129 = vmul.f32 %v2251, %v4040
        %v4130 = vmul.f32 %v2255, %v4040
        %v4131 = vmul.f32 %v2259, %v4040
        %v4132 = vmul.f32 %v2263, %v4040
        %v4133 = vmul.f32 %v2267, %v4040
        %v4134 = vmul.f32 %v2271, %v4040
        %v4135 = vmul.f32 %v2275, %v4040
        %v4136 = vmul.f32 %v2279, %v4040
        %v4137 = vmul.f32 %v2283, %v4040
        %v4138 = vmul.f32 %v2287, %v4040
        %v4139 = vmul.f32 %v2291, %v4040
        %v4140 = vmul.f32 %v2295, %v4040
        %v4141 = vmul.f32 %v2299, %v4040
        %v4142 = vmul.f32 %v2303, %v4040
        %v4143 = vmul.f32 %v2307, %v4040
        %v4144 = vmul.f32 %v2311, %v4040
        %v4145 = vmul.f32 %v2315, %v4040
        %v4146 = vmul.f32 %v2319, %v4040
        %v4147 = vmul.f32 %v2323, %v4040
        %v4148 = vmul.f32 %v2327, %v4040
        %v4149 = vmul.f32 %v2331, %v4040
        %v4150 = vmul.f32 %v2335, %v4040
        %v4151 = vmul.f32 %v2339, %v4040
        %v4152 = vmul.f32 %v2343, %v4040
        %v4153 = vmul.f32 %v2347, %v4040
        %v4154 = vmul.f32 %v2351, %v4040
        %v4155 = vmul.f32 %v2355, %v4040
        %v4156 = vmul.f32 %v2359, %v4040
        %v4157 = vmul.f32 %v2363, %v4040
        %v4158 = vmul.f32 %v2367, %v4040
        %v4159 = vmul.f32 %v2371, %v4040
        %v4160 = vmul.f32 %v2375, %v4040
        %v4161 = vmul.f32 %v2379, %v4040
        %v4162 = vmul.f32 %v2383, %v4040
        %v4163 = vmul.f32 %v2387, %v4040
        %v4164 = vmul.f32 %v2391, %v4040
        %v4165 = vmul.f32 %v2395, %v4040
        %v4166 = vmul.f32 %v4022, %v4040
        %v4167 = vmul.f32 %v4026, %v4040
        %v4168 = vmul.f32 %v4030, %v4040
        %v4169 = vmul.f32 %v4034, %v4040
        %v4170 = vadd.f32 %v3880, %v4042
        %v4171 = vadd.f32 %v3881, %v4043
        %v4172 = vadd.f32 %v3882, %v4044
        %v4173 = vadd.f32 %v3883, %v4045
        %v4174 = vadd.f32 %v3884, %v4046
        %v4175 = vadd.f32 %v3885, %v4047
        %v4176 = vadd.f32 %v3886, %v4048
        %v4177 = vadd.f32 %v3887, %v4049
        %v4178 = vadd.f32 %v3888, %v4050
        %v4179 = vadd.f32 %v3889, %v4051
        %v4180 = vadd.f32 %v3890, %v4052
        %v4181 = vadd.f32 %v3891, %v4053
        %v4182 = vadd.f32 %v3892, %v4054
        %v4183 = vadd.f32 %v3893, %v4055
        %v4184 = vadd.f32 %v3894, %v4056
        %v4185 = vadd.f32 %v3895, %v4057
        %v4186 = vadd.f32 %v3896, %v4058
        %v4187 = vadd.f32 %v3897, %v4059
        %v4188 = vadd.f32 %v3898, %v4060
        %v4189 = vadd.f32 %v3899, %v4061
        %v4190 = vadd.f32 %v3900, %v4062
        %v4191 = vadd.f32 %v3901, %v4063
        %v4192 = vadd.f32 %v3902, %v4064
        %v4193 = vadd.f32 %v3903, %v4065
        %v4194 = vadd.f32 %v3904, %v4066
        %v4195 = vadd.f32 %v3905, %v4067
        %v4196 = vadd.f32 %v3906, %v4068
        %v4197 = vadd.f32 %v3907, %v4069
        %v4198 = vadd.f32 %v3908, %v4070
        %v4199 = vadd.f32 %v3909, %v4071
        %v4200 = vadd.f32 %v3910, %v4072
        %v4201 = vadd.f32 %v3911, %v4073
        %v4202 = vadd.f32 %v3912, %v4074
        %v4203 = vadd.f32 %v3913, %v4075
        %v4204 = vadd.f32 %v3914, %v4076
        %v4205 = vadd.f32 %v3915, %v4077
        %v4206 = vadd.f32 %v3916, %v4078
        %v4207 = vadd.f32 %v3917, %v4079
        %v4208 = vadd.f32 %v3918, %v4080
        %v4209 = vadd.f32 %v3919, %v4081
        %v4210 = vadd.f32 %v3920, %v4082
        %v4211 = vadd.f32 %v3921, %v4083
        %v4212 = vadd.f32 %v3922, %v4084
        %v4213 = vadd.f32 %v3923, %v4085
        %v4214 = vadd.f32 %v3924, %v4086
        %v4215 = vadd.f32 %v3925, %v4087
        %v4216 = vadd.f32 %v3926, %v4088
        %v4217 = vadd.f32 %v3927, %v4089
        %v4218 = vadd.f32 %v3928, %v4090
        %v4219 = vadd.f32 %v3929, %v4091
        %v4220 = vadd.f32 %v3930, %v4092
        %v4221 = vadd.f32 %v3931, %v4093
        %v4222 = vadd.f32 %v3932, %v4094
        %v4223 = vadd.f32 %v3933, %v4095
        %v4224 = vadd.f32 %v3934, %v4096
        %v4225 = vadd.f32 %v3935, %v4097
        %v4226 = vadd.f32 %v3936, %v4098
        %v4227 = vadd.f32 %v3937, %v4099
        %v4228 = vadd.f32 %v3938, %v4100
        %v4229 = vadd.f32 %v3939, %v4101
        %v4230 = vadd.f32 %v3940, %v4102
        %v4231 = vadd.f32 %v3941, %v4103
        %v4232 = vadd.f32 %v3942, %v4104
        %v4233 = vadd.f32 %v3943, %v4105
        %v4234 = vadd.f32 %v3944, %v4106
        %v4235 = vadd.f32 %v3945, %v4107
        %v4236 = vadd.f32 %v3946, %v4108
        %v4237 = vadd.f32 %v3947, %v4109
        %v4238 = vadd.f32 %v3948, %v4110
        %v4239 = vadd.f32 %v3949, %v4111
        %v4240 = vadd.f32 %v3950, %v4112
        %v4241 = vadd.f32 %v3951, %v4113
        %v4242 = vadd.f32 %v3952, %v4114
        %v4243 = vadd.f32 %v3953, %v4115
        %v4244 = vadd.f32 %v3954, %v4116
        %v4245 = vadd.f32 %v3955, %v4117
        %v4246 = vadd.f32 %v3956, %v4118
        %v4247 = vadd.f32 %v3957, %v4119
        %v4248 = vadd.f32 %v3958, %v4120
        %v4249 = vadd.f32 %v3959, %v4121
        %v4250 = vadd.f32 %v3960, %v4122
        %v4251 = vadd.f32 %v3961, %v4123
        %v4252 = vadd.f32 %v3962, %v4124
        %v4253 = vadd.f32 %v3963, %v4125
        %v4254 = vadd.f32 %v3964, %v4126
        %v4255 = vadd.f32 %v3965, %v4127
        %v4256 = vadd.f32 %v3966, %v4128
        %v4257 = vadd.f32 %v3967, %v4129
        %v4258 = vadd.f32 %v3968, %v4130
        %v4259 = vadd.f32 %v3969, %v4131
        %v4260 = vadd.f32 %v3970, %v4132
        %v4261 = vadd.f32 %v3971, %v4133
        %v4262 = vadd.f32 %v3972, %v4134
        %v4263 = vadd.f32 %v3973, %v4135
        %v4264 = vadd.f32 %v3974, %v4136
        %v4265 = vadd.f32 %v3975, %v4137
        %v4266 = vadd.f32 %v3976, %v4138
        %v4267 = vadd.f32 %v3977, %v4139
        %v4268 = vadd.f32 %v3978, %v4140
        %v4269 = vadd.f32 %v3979, %v4141
        %v4270 = vadd.f32 %v3980, %v4142
        %v4271 = vadd.f32 %v3981, %v4143
        %v4272 = vadd.f32 %v3982, %v4144
        %v4273 = vadd.f32 %v3983, %v4145
        %v4274 = vadd.f32 %v3984, %v4146
        %v4275 = vadd.f32 %v3985, %v4147
        %v4276 = vadd.f32 %v3986, %v4148
        %v4277 = vadd.f32 %v3987, %v4149
        %v4278 = vadd.f32 %v3988, %v4150
        %v4279 = vadd.f32 %v3989, %v4151
        %v4280 = vadd.f32 %v3990, %v4152
        %v4281 = vadd.f32 %v3991, %v4153
        %v4282 = vadd.f32 %v3992, %v4154
        %v4283 = vadd.f32 %v3993, %v4155
        %v4284 = vadd.f32 %v3994, %v4156
        %v4285 = vadd.f32 %v3995, %v4157
        %v4286 = vadd.f32 %v3996, %v4158
        %v4287 = vadd.f32 %v3997, %v4159
        %v4288 = vadd.f32 %v3998, %v4160
        %v4289 = vadd.f32 %v3999, %v4161
        %v4290 = vadd.f32 %v4000, %v4162
        %v4291 = vadd.f32 %v4001, %v4163
        %v4292 = vadd.f32 %v4002, %v4164
        %v4293 = vadd.f32 %v4003, %v4165
        %v4294 = vadd.f32 %v4004, %v4166
        %v4295 = vadd.f32 %v4005, %v4167
        %v4296 = vadd.f32 %v4006, %v4168
        %v4297 = vadd.f32 %v4007, %v4169
        %v4298 = vrot.slane %v521, 2
        %v4299 = vrot.slane %v522, 2
        %v4300 = vsel %vm2659, %v4298, %v4299
        %v4301 = vrot.slane %v523, 2
        %v4302 = vsel %vm2659, %v4299, %v4301
        %v4303 = vrot.slane %v524, 2
        %v4304 = vsel %vm2659, %v4301, %v4303
        %v4305 = vrot.slane %v525, 2
        %v4306 = vsel %vm2659, %v4303, %v4305
        %s4307 = scalar_lea.vmem %s227, 5
        %v4308 = vld [vmem:[%s4307] sm:$0x1]
        %4309 = vset.pattern.permute.xlu0 0
        %4310 = vperm.xlu0 %4309, %v4300
        %v4311 = vpop.permute.xlu0 %4310
        %4313 = vset.pattern.permute.xlu0 0
        %4314 = vperm.xlu0 %4313, %v4302
        %v4315 = vpop.permute.xlu0 %4314
        %4317 = vset.pattern.permute.xlu0 0
        %4318 = vperm.xlu0 %4317, %v4304
        %v4319 = vpop.permute.xlu0 %4318
        %4321 = vset.pattern.permute.xlu0 0
        %4322 = vperm.xlu0 %4321, %v4306
        %v4323 = vpop.permute.xlu0 %4322
        %v4326 = vlaneseq
        %v4327 = vshrl.u32 %v4326, 7
        %v4328 = vsub.s32 0, %v4327
        %v4329 = vrot.slane %v4308, %v4328
        %v4331 = vmul.f32 %v2968, %v4329
        %v4332 = vmul.f32 %v2972, %v4329
        %v4333 = vmul.f32 %v2976, %v4329
        %v4334 = vmul.f32 %v2980, %v4329
        %v4335 = vmul.f32 %v2984, %v4329
        %v4336 = vmul.f32 %v2988, %v4329
        %v4337 = vmul.f32 %v2992, %v4329
        %v4338 = vmul.f32 %v2996, %v4329
        %v4339 = vmul.f32 %v3000, %v4329
        %v4340 = vmul.f32 %v3004, %v4329
        %v4341 = vmul.f32 %v3008, %v4329
        %v4342 = vmul.f32 %v3012, %v4329
        %v4343 = vmul.f32 %v3016, %v4329
        %v4344 = vmul.f32 %v3020, %v4329
        %v4345 = vmul.f32 %v3024, %v4329
        %v4346 = vmul.f32 %v3028, %v4329
        %v4347 = vmul.f32 %v3032, %v4329
        %v4348 = vmul.f32 %v3036, %v4329
        %v4349 = vmul.f32 %v3040, %v4329
        %v4350 = vmul.f32 %v3044, %v4329
        %v4351 = vmul.f32 %v3048, %v4329
        %v4352 = vmul.f32 %v3052, %v4329
        %v4353 = vmul.f32 %v3056, %v4329
        %v4354 = vmul.f32 %v3060, %v4329
        %v4355 = vmul.f32 %v3064, %v4329
        %v4356 = vmul.f32 %v3068, %v4329
        %v4357 = vmul.f32 %v3072, %v4329
        %v4358 = vmul.f32 %v3076, %v4329
        %v4359 = vmul.f32 %v3080, %v4329
        %v4360 = vmul.f32 %v3084, %v4329
        %v4361 = vmul.f32 %v3088, %v4329
        %v4362 = vmul.f32 %v3092, %v4329
        %v4363 = vmul.f32 %v3096, %v4329
        %v4364 = vmul.f32 %v3100, %v4329
        %v4365 = vmul.f32 %v3104, %v4329
        %v4366 = vmul.f32 %v3108, %v4329
        %v4367 = vmul.f32 %v3112, %v4329
        %v4368 = vmul.f32 %v3116, %v4329
        %v4369 = vmul.f32 %v3120, %v4329
        %v4370 = vmul.f32 %v3124, %v4329
        %v4371 = vmul.f32 %v3128, %v4329
        %v4372 = vmul.f32 %v3132, %v4329
        %v4373 = vmul.f32 %v3136, %v4329
        %v4374 = vmul.f32 %v3140, %v4329
        %v4375 = vmul.f32 %v3144, %v4329
        %v4376 = vmul.f32 %v3148, %v4329
        %v4377 = vmul.f32 %v3152, %v4329
        %v4378 = vmul.f32 %v3156, %v4329
        %v4379 = vmul.f32 %v3160, %v4329
        %v4380 = vmul.f32 %v3164, %v4329
        %v4381 = vmul.f32 %v3168, %v4329
        %v4382 = vmul.f32 %v3172, %v4329
        %v4383 = vmul.f32 %v3176, %v4329
        %v4384 = vmul.f32 %v3180, %v4329
        %v4385 = vmul.f32 %v3184, %v4329
        %v4386 = vmul.f32 %v3188, %v4329
        %v4387 = vmul.f32 %v3192, %v4329
        %v4388 = vmul.f32 %v3196, %v4329
        %v4389 = vmul.f32 %v3200, %v4329
        %v4390 = vmul.f32 %v3204, %v4329
        %v4391 = vmul.f32 %v3208, %v4329
        %v4392 = vmul.f32 %v3212, %v4329
        %v4393 = vmul.f32 %v3216, %v4329
        %v4394 = vmul.f32 %v3220, %v4329
        %v4395 = vmul.f32 %v3224, %v4329
        %v4396 = vmul.f32 %v3228, %v4329
        %v4397 = vmul.f32 %v3232, %v4329
        %v4398 = vmul.f32 %v3236, %v4329
        %v4399 = vmul.f32 %v3240, %v4329
        %v4400 = vmul.f32 %v3244, %v4329
        %v4401 = vmul.f32 %v3248, %v4329
        %v4402 = vmul.f32 %v3252, %v4329
        %v4403 = vmul.f32 %v3256, %v4329
        %v4404 = vmul.f32 %v3260, %v4329
        %v4405 = vmul.f32 %v3264, %v4329
        %v4406 = vmul.f32 %v3268, %v4329
        %v4407 = vmul.f32 %v3272, %v4329
        %v4408 = vmul.f32 %v3276, %v4329
        %v4409 = vmul.f32 %v3280, %v4329
        %v4410 = vmul.f32 %v3284, %v4329
        %v4411 = vmul.f32 %v3288, %v4329
        %v4412 = vmul.f32 %v3292, %v4329
        %v4413 = vmul.f32 %v3296, %v4329
        %v4414 = vmul.f32 %v3300, %v4329
        %v4415 = vmul.f32 %v3304, %v4329
        %v4416 = vmul.f32 %v3308, %v4329
        %v4417 = vmul.f32 %v3312, %v4329
        %v4418 = vmul.f32 %v3316, %v4329
        %v4419 = vmul.f32 %v3320, %v4329
        %v4420 = vmul.f32 %v3324, %v4329
        %v4421 = vmul.f32 %v3328, %v4329
        %v4422 = vmul.f32 %v3332, %v4329
        %v4423 = vmul.f32 %v3336, %v4329
        %v4424 = vmul.f32 %v3340, %v4329
        %v4425 = vmul.f32 %v3344, %v4329
        %v4426 = vmul.f32 %v3348, %v4329
        %v4427 = vmul.f32 %v3352, %v4329
        %v4428 = vmul.f32 %v3356, %v4329
        %v4429 = vmul.f32 %v3360, %v4329
        %v4430 = vmul.f32 %v3364, %v4329
        %v4431 = vmul.f32 %v3368, %v4329
        %v4432 = vmul.f32 %v3372, %v4329
        %v4433 = vmul.f32 %v3376, %v4329
        %v4434 = vmul.f32 %v3380, %v4329
        %v4435 = vmul.f32 %v3384, %v4329
        %v4436 = vmul.f32 %v3388, %v4329
        %v4437 = vmul.f32 %v3392, %v4329
        %v4438 = vmul.f32 %v3396, %v4329
        %v4439 = vmul.f32 %v3400, %v4329
        %v4440 = vmul.f32 %v3404, %v4329
        %v4441 = vmul.f32 %v3408, %v4329
        %v4442 = vmul.f32 %v3412, %v4329
        %v4443 = vmul.f32 %v3416, %v4329
        %v4444 = vmul.f32 %v3420, %v4329
        %v4445 = vmul.f32 %v3424, %v4329
        %v4446 = vmul.f32 %v3428, %v4329
        %v4447 = vmul.f32 %v3432, %v4329
        %v4448 = vmul.f32 %v3436, %v4329
        %v4449 = vmul.f32 %v3440, %v4329
        %v4450 = vmul.f32 %v3444, %v4329
        %v4451 = vmul.f32 %v3448, %v4329
        %v4452 = vmul.f32 %v3452, %v4329
        %v4453 = vmul.f32 %v3456, %v4329
        %v4454 = vmul.f32 %v3460, %v4329
        %v4455 = vmul.f32 %v4311, %v4329
        %v4456 = vmul.f32 %v4315, %v4329
        %v4457 = vmul.f32 %v4319, %v4329
        %v4458 = vmul.f32 %v4323, %v4329
        %v4459 = vadd.f32 %v4170, %v4331
        %v4460 = vadd.f32 %v4171, %v4332
        %v4461 = vadd.f32 %v4172, %v4333
        %v4462 = vadd.f32 %v4173, %v4334
        %v4463 = vadd.f32 %v4174, %v4335
        %v4464 = vadd.f32 %v4175, %v4336
        %v4465 = vadd.f32 %v4176, %v4337
        %v4466 = vadd.f32 %v4177, %v4338
        %v4467 = vadd.f32 %v4178, %v4339
        %v4468 = vadd.f32 %v4179, %v4340
        %v4469 = vadd.f32 %v4180, %v4341
        %v4470 = vadd.f32 %v4181, %v4342
        %v4471 = vadd.f32 %v4182, %v4343
        %v4472 = vadd.f32 %v4183, %v4344
        %v4473 = vadd.f32 %v4184, %v4345
        %v4474 = vadd.f32 %v4185, %v4346
        %v4475 = vadd.f32 %v4186, %v4347
        %v4476 = vadd.f32 %v4187, %v4348
        %v4477 = vadd.f32 %v4188, %v4349
        %v4478 = vadd.f32 %v4189, %v4350
        %v4479 = vadd.f32 %v4190, %v4351
        %v4480 = vadd.f32 %v4191, %v4352
        %v4481 = vadd.f32 %v4192, %v4353
        %v4482 = vadd.f32 %v4193, %v4354
        %v4483 = vadd.f32 %v4194, %v4355
        %v4484 = vadd.f32 %v4195, %v4356
        %v4485 = vadd.f32 %v4196, %v4357
        %v4486 = vadd.f32 %v4197, %v4358
        %v4487 = vadd.f32 %v4198, %v4359
        %v4488 = vadd.f32 %v4199, %v4360
        %v4489 = vadd.f32 %v4200, %v4361
        %v4490 = vadd.f32 %v4201, %v4362
        %v4491 = vadd.f32 %v4202, %v4363
        %v4492 = vadd.f32 %v4203, %v4364
        %v4493 = vadd.f32 %v4204, %v4365
        %v4494 = vadd.f32 %v4205, %v4366
        %v4495 = vadd.f32 %v4206, %v4367
        %v4496 = vadd.f32 %v4207, %v4368
        %v4497 = vadd.f32 %v4208, %v4369
        %v4498 = vadd.f32 %v4209, %v4370
        %v4499 = vadd.f32 %v4210, %v4371
        %v4500 = vadd.f32 %v4211, %v4372
        %v4501 = vadd.f32 %v4212, %v4373
        %v4502 = vadd.f32 %v4213, %v4374
        %v4503 = vadd.f32 %v4214, %v4375
        %v4504 = vadd.f32 %v4215, %v4376
        %v4505 = vadd.f32 %v4216, %v4377
        %v4506 = vadd.f32 %v4217, %v4378
        %v4507 = vadd.f32 %v4218, %v4379
        %v4508 = vadd.f32 %v4219, %v4380
        %v4509 = vadd.f32 %v4220, %v4381
        %v4510 = vadd.f32 %v4221, %v4382
        %v4511 = vadd.f32 %v4222, %v4383
        %v4512 = vadd.f32 %v4223, %v4384
        %v4513 = vadd.f32 %v4224, %v4385
        %v4514 = vadd.f32 %v4225, %v4386
        %v4515 = vadd.f32 %v4226, %v4387
        %v4516 = vadd.f32 %v4227, %v4388
        %v4517 = vadd.f32 %v4228, %v4389
        %v4518 = vadd.f32 %v4229, %v4390
        %v4519 = vadd.f32 %v4230, %v4391
        %v4520 = vadd.f32 %v4231, %v4392
        %v4521 = vadd.f32 %v4232, %v4393
        %v4522 = vadd.f32 %v4233, %v4394
        %v4523 = vadd.f32 %v4234, %v4395
        %v4524 = vadd.f32 %v4235, %v4396
        %v4525 = vadd.f32 %v4236, %v4397
        %v4526 = vadd.f32 %v4237, %v4398
        %v4527 = vadd.f32 %v4238, %v4399
        %v4528 = vadd.f32 %v4239, %v4400
        %v4529 = vadd.f32 %v4240, %v4401
        %v4530 = vadd.f32 %v4241, %v4402
        %v4531 = vadd.f32 %v4242, %v4403
        %v4532 = vadd.f32 %v4243, %v4404
        %v4533 = vadd.f32 %v4244, %v4405
        %v4534 = vadd.f32 %v4245, %v4406
        %v4535 = vadd.f32 %v4246, %v4407
        %v4536 = vadd.f32 %v4247, %v4408
        %v4537 = vadd.f32 %v4248, %v4409
        %v4538 = vadd.f32 %v4249, %v4410
        %v4539 = vadd.f32 %v4250, %v4411
        %v4540 = vadd.f32 %v4251, %v4412
        %v4541 = vadd.f32 %v4252, %v4413
        %v4542 = vadd.f32 %v4253, %v4414
        %v4543 = vadd.f32 %v4254, %v4415
        %v4544 = vadd.f32 %v4255, %v4416
        %v4545 = vadd.f32 %v4256, %v4417
        %v4546 = vadd.f32 %v4257, %v4418
        %v4547 = vadd.f32 %v4258, %v4419
        %v4548 = vadd.f32 %v4259, %v4420
        %v4549 = vadd.f32 %v4260, %v4421
        %v4550 = vadd.f32 %v4261, %v4422
        %v4551 = vadd.f32 %v4262, %v4423
        %v4552 = vadd.f32 %v4263, %v4424
        %v4553 = vadd.f32 %v4264, %v4425
        %v4554 = vadd.f32 %v4265, %v4426
        %v4555 = vadd.f32 %v4266, %v4427
        %v4556 = vadd.f32 %v4267, %v4428
        %v4557 = vadd.f32 %v4268, %v4429
        %v4558 = vadd.f32 %v4269, %v4430
        %v4559 = vadd.f32 %v4270, %v4431
        %v4560 = vadd.f32 %v4271, %v4432
        %v4561 = vadd.f32 %v4272, %v4433
        %v4562 = vadd.f32 %v4273, %v4434
        %v4563 = vadd.f32 %v4274, %v4435
        %v4564 = vadd.f32 %v4275, %v4436
        %v4565 = vadd.f32 %v4276, %v4437
        %v4566 = vadd.f32 %v4277, %v4438
        %v4567 = vadd.f32 %v4278, %v4439
        %v4568 = vadd.f32 %v4279, %v4440
        %v4569 = vadd.f32 %v4280, %v4441
        %v4570 = vadd.f32 %v4281, %v4442
        %v4571 = vadd.f32 %v4282, %v4443
        %v4572 = vadd.f32 %v4283, %v4444
        %v4573 = vadd.f32 %v4284, %v4445
        %v4574 = vadd.f32 %v4285, %v4446
        %v4575 = vadd.f32 %v4286, %v4447
        %v4576 = vadd.f32 %v4287, %v4448
        %v4577 = vadd.f32 %v4288, %v4449
        %v4578 = vadd.f32 %v4289, %v4450
        %v4579 = vadd.f32 %v4290, %v4451
        %v4580 = vadd.f32 %v4291, %v4452
        %v4581 = vadd.f32 %v4292, %v4453
        %v4582 = vadd.f32 %v4293, %v4454
        %v4583 = vadd.f32 %v4294, %v4455
        %v4584 = vadd.f32 %v4295, %v4456
        %v4585 = vadd.f32 %v4296, %v4457
        %v4586 = vadd.f32 %v4297, %v4458
        %s4587 = scalar_lea.vmem %s227, 6
        %v4588 = vld [vmem:[%s4587] sm:$0x1]
        %4590 = vset.pattern.permute.xlu0 0
        %4591 = vperm.xlu0 %4590, %v526
        %v4592 = vpop.permute.xlu0 %4591
        %4595 = vset.pattern.permute.xlu0 0
        %4596 = vperm.xlu0 %4595, %v527
        %v4597 = vpop.permute.xlu0 %4596
        %4600 = vset.pattern.permute.xlu0 0
        %4601 = vperm.xlu0 %4600, %v528
        %v4602 = vpop.permute.xlu0 %4601
        %4605 = vset.pattern.permute.xlu0 0
        %4606 = vperm.xlu0 %4605, %v529
        %v4607 = vpop.permute.xlu0 %4606
        %v4610 = vlaneseq
        %v4611 = vshrl.u32 %v4610, 7
        %v4612 = vsub.s32 0, %v4611
        %v4613 = vrot.slane %v4588, %v4612
        %v4615 = vmul.f32 %v703, %v4613
        %v4616 = vmul.f32 %v708, %v4613
        %v4617 = vmul.f32 %v713, %v4613
        %v4618 = vmul.f32 %v718, %v4613
        %v4619 = vmul.f32 %v723, %v4613
        %v4620 = vmul.f32 %v728, %v4613
        %v4621 = vmul.f32 %v733, %v4613
        %v4622 = vmul.f32 %v738, %v4613
        %v4623 = vmul.f32 %v743, %v4613
        %v4624 = vmul.f32 %v748, %v4613
        %v4625 = vmul.f32 %v753, %v4613
        %v4626 = vmul.f32 %v758, %v4613
        %v4627 = vmul.f32 %v763, %v4613
        %v4628 = vmul.f32 %v768, %v4613
        %v4629 = vmul.f32 %v773, %v4613
        %v4630 = vmul.f32 %v778, %v4613
        %v4631 = vmul.f32 %v783, %v4613
        %v4632 = vmul.f32 %v788, %v4613
        %v4633 = vmul.f32 %v793, %v4613
        %v4634 = vmul.f32 %v798, %v4613
        %v4635 = vmul.f32 %v803, %v4613
        %v4636 = vmul.f32 %v808, %v4613
        %v4637 = vmul.f32 %v813, %v4613
        %v4638 = vmul.f32 %v818, %v4613
        %v4639 = vmul.f32 %v823, %v4613
        %v4640 = vmul.f32 %v828, %v4613
        %v4641 = vmul.f32 %v833, %v4613
        %v4642 = vmul.f32 %v838, %v4613
        %v4643 = vmul.f32 %v843, %v4613
        %v4644 = vmul.f32 %v848, %v4613
        %v4645 = vmul.f32 %v853, %v4613
        %v4646 = vmul.f32 %v858, %v4613
        %v4647 = vmul.f32 %v863, %v4613
        %v4648 = vmul.f32 %v868, %v4613
        %v4649 = vmul.f32 %v873, %v4613
        %v4650 = vmul.f32 %v878, %v4613
        %v4651 = vmul.f32 %v883, %v4613
        %v4652 = vmul.f32 %v888, %v4613
        %v4653 = vmul.f32 %v893, %v4613
        %v4654 = vmul.f32 %v898, %v4613
        %v4655 = vmul.f32 %v903, %v4613
        %v4656 = vmul.f32 %v908, %v4613
        %v4657 = vmul.f32 %v913, %v4613
        %v4658 = vmul.f32 %v918, %v4613
        %v4659 = vmul.f32 %v923, %v4613
        %v4660 = vmul.f32 %v928, %v4613
        %v4661 = vmul.f32 %v933, %v4613
        %v4662 = vmul.f32 %v938, %v4613
        %v4663 = vmul.f32 %v943, %v4613
        %v4664 = vmul.f32 %v948, %v4613
        %v4665 = vmul.f32 %v953, %v4613
        %v4666 = vmul.f32 %v958, %v4613
        %v4667 = vmul.f32 %v963, %v4613
        %v4668 = vmul.f32 %v968, %v4613
        %v4669 = vmul.f32 %v973, %v4613
        %v4670 = vmul.f32 %v978, %v4613
        %v4671 = vmul.f32 %v983, %v4613
        %v4672 = vmul.f32 %v988, %v4613
        %v4673 = vmul.f32 %v993, %v4613
        %v4674 = vmul.f32 %v998, %v4613
        %v4675 = vmul.f32 %v1003, %v4613
        %v4676 = vmul.f32 %v1008, %v4613
        %v4677 = vmul.f32 %v1013, %v4613
        %v4678 = vmul.f32 %v1018, %v4613
        %v4679 = vmul.f32 %v1023, %v4613
        %v4680 = vmul.f32 %v1028, %v4613
        %v4681 = vmul.f32 %v1033, %v4613
        %v4682 = vmul.f32 %v1038, %v4613
        %v4683 = vmul.f32 %v1043, %v4613
        %v4684 = vmul.f32 %v1048, %v4613
        %v4685 = vmul.f32 %v1053, %v4613
        %v4686 = vmul.f32 %v1058, %v4613
        %v4687 = vmul.f32 %v1063, %v4613
        %v4688 = vmul.f32 %v1068, %v4613
        %v4689 = vmul.f32 %v1073, %v4613
        %v4690 = vmul.f32 %v1078, %v4613
        %v4691 = vmul.f32 %v1083, %v4613
        %v4692 = vmul.f32 %v1088, %v4613
        %v4693 = vmul.f32 %v1093, %v4613
        %v4694 = vmul.f32 %v1098, %v4613
        %v4695 = vmul.f32 %v1103, %v4613
        %v4696 = vmul.f32 %v1108, %v4613
        %v4697 = vmul.f32 %v1113, %v4613
        %v4698 = vmul.f32 %v1118, %v4613
        %v4699 = vmul.f32 %v1123, %v4613
        %v4700 = vmul.f32 %v1128, %v4613
        %v4701 = vmul.f32 %v1133, %v4613
        %v4702 = vmul.f32 %v1138, %v4613
        %v4703 = vmul.f32 %v1143, %v4613
        %v4704 = vmul.f32 %v1148, %v4613
        %v4705 = vmul.f32 %v1153, %v4613
        %v4706 = vmul.f32 %v1158, %v4613
        %v4707 = vmul.f32 %v1163, %v4613
        %v4708 = vmul.f32 %v1168, %v4613
        %v4709 = vmul.f32 %v1173, %v4613
        %v4710 = vmul.f32 %v1178, %v4613
        %v4711 = vmul.f32 %v1183, %v4613
        %v4712 = vmul.f32 %v1188, %v4613
        %v4713 = vmul.f32 %v1193, %v4613
        %v4714 = vmul.f32 %v1198, %v4613
        %v4715 = vmul.f32 %v1203, %v4613
        %v4716 = vmul.f32 %v1208, %v4613
        %v4717 = vmul.f32 %v1213, %v4613
        %v4718 = vmul.f32 %v1218, %v4613
        %v4719 = vmul.f32 %v1223, %v4613
        %v4720 = vmul.f32 %v1228, %v4613
        %v4721 = vmul.f32 %v1233, %v4613
        %v4722 = vmul.f32 %v1238, %v4613
        %v4723 = vmul.f32 %v1243, %v4613
        %v4724 = vmul.f32 %v1248, %v4613
        %v4725 = vmul.f32 %v1253, %v4613
        %v4726 = vmul.f32 %v1258, %v4613
        %v4727 = vmul.f32 %v1263, %v4613
        %v4728 = vmul.f32 %v1268, %v4613
        %v4729 = vmul.f32 %v1273, %v4613
        %v4730 = vmul.f32 %v1278, %v4613
        %v4731 = vmul.f32 %v1283, %v4613
        %v4732 = vmul.f32 %v1288, %v4613
        %v4733 = vmul.f32 %v1293, %v4613
        %v4734 = vmul.f32 %v1298, %v4613
        %v4735 = vmul.f32 %v3729, %v4613
        %v4736 = vmul.f32 %v3734, %v4613
        %v4737 = vmul.f32 %v3739, %v4613
        %v4738 = vmul.f32 %v3744, %v4613
        %v4739 = vmul.f32 %v4592, %v4613
        %v4740 = vmul.f32 %v4597, %v4613
        %v4741 = vmul.f32 %v4602, %v4613
        %v4742 = vmul.f32 %v4607, %v4613
        %v4743 = vadd.f32 %v4459, %v4615
        %v4744 = vadd.f32 %v4460, %v4616
        %v4745 = vadd.f32 %v4461, %v4617
        %v4746 = vadd.f32 %v4462, %v4618
        %v4747 = vadd.f32 %v4463, %v4619
        %v4748 = vadd.f32 %v4464, %v4620
        %v4749 = vadd.f32 %v4465, %v4621
        %v4750 = vadd.f32 %v4466, %v4622
        %v4751 = vadd.f32 %v4467, %v4623
        %v4752 = vadd.f32 %v4468, %v4624
        %v4753 = vadd.f32 %v4469, %v4625
        %v4754 = vadd.f32 %v4470, %v4626
        %v4755 = vadd.f32 %v4471, %v4627
        %v4756 = vadd.f32 %v4472, %v4628
        %v4757 = vadd.f32 %v4473, %v4629
        %v4758 = vadd.f32 %v4474, %v4630
        %v4759 = vadd.f32 %v4475, %v4631
        %v4760 = vadd.f32 %v4476, %v4632
        %v4761 = vadd.f32 %v4477, %v4633
        %v4762 = vadd.f32 %v4478, %v4634
        %v4763 = vadd.f32 %v4479, %v4635
        %v4764 = vadd.f32 %v4480, %v4636
        %v4765 = vadd.f32 %v4481, %v4637
        %v4766 = vadd.f32 %v4482, %v4638
        %v4767 = vadd.f32 %v4483, %v4639
        %v4768 = vadd.f32 %v4484, %v4640
        %v4769 = vadd.f32 %v4485, %v4641
        %v4770 = vadd.f32 %v4486, %v4642
        %v4771 = vadd.f32 %v4487, %v4643
        %v4772 = vadd.f32 %v4488, %v4644
        %v4773 = vadd.f32 %v4489, %v4645
        %v4774 = vadd.f32 %v4490, %v4646
        %v4775 = vadd.f32 %v4491, %v4647
        %v4776 = vadd.f32 %v4492, %v4648
        %v4777 = vadd.f32 %v4493, %v4649
        %v4778 = vadd.f32 %v4494, %v4650
        %v4779 = vadd.f32 %v4495, %v4651
        %v4780 = vadd.f32 %v4496, %v4652
        %v4781 = vadd.f32 %v4497, %v4653
        %v4782 = vadd.f32 %v4498, %v4654
        %v4783 = vadd.f32 %v4499, %v4655
        %v4784 = vadd.f32 %v4500, %v4656
        %v4785 = vadd.f32 %v4501, %v4657
        %v4786 = vadd.f32 %v4502, %v4658
        %v4787 = vadd.f32 %v4503, %v4659
        %v4788 = vadd.f32 %v4504, %v4660
        %v4789 = vadd.f32 %v4505, %v4661
        %v4790 = vadd.f32 %v4506, %v4662
        %v4791 = vadd.f32 %v4507, %v4663
        %v4792 = vadd.f32 %v4508, %v4664
        %v4793 = vadd.f32 %v4509, %v4665
        %v4794 = vadd.f32 %v4510, %v4666
        %v4795 = vadd.f32 %v4511, %v4667
        %v4796 = vadd.f32 %v4512, %v4668
        %v4797 = vadd.f32 %v4513, %v4669
        %v4798 = vadd.f32 %v4514, %v4670
        %v4799 = vadd.f32 %v4515, %v4671
        %v4800 = vadd.f32 %v4516, %v4672
        %v4801 = vadd.f32 %v4517, %v4673
        %v4802 = vadd.f32 %v4518, %v4674
        %v4803 = vadd.f32 %v4519, %v4675
        %v4804 = vadd.f32 %v4520, %v4676
        %v4805 = vadd.f32 %v4521, %v4677
        %v4806 = vadd.f32 %v4522, %v4678
        %v4807 = vadd.f32 %v4523, %v4679
        %v4808 = vadd.f32 %v4524, %v4680
        %v4809 = vadd.f32 %v4525, %v4681
        %v4810 = vadd.f32 %v4526, %v4682
        %v4811 = vadd.f32 %v4527, %v4683
        %v4812 = vadd.f32 %v4528, %v4684
        %v4813 = vadd.f32 %v4529, %v4685
        %v4814 = vadd.f32 %v4530, %v4686
        %v4815 = vadd.f32 %v4531, %v4687
        %v4816 = vadd.f32 %v4532, %v4688
        %v4817 = vadd.f32 %v4533, %v4689
        %v4818 = vadd.f32 %v4534, %v4690
        %v4819 = vadd.f32 %v4535, %v4691
        %v4820 = vadd.f32 %v4536, %v4692
        %v4821 = vadd.f32 %v4537, %v4693
        %v4822 = vadd.f32 %v4538, %v4694
        %v4823 = vadd.f32 %v4539, %v4695
        %v4824 = vadd.f32 %v4540, %v4696
        %v4825 = vadd.f32 %v4541, %v4697
        %v4826 = vadd.f32 %v4542, %v4698
        %v4827 = vadd.f32 %v4543, %v4699
        %v4828 = vadd.f32 %v4544, %v4700
        %v4829 = vadd.f32 %v4545, %v4701
        %v4830 = vadd.f32 %v4546, %v4702
        %v4831 = vadd.f32 %v4547, %v4703
        %v4832 = vadd.f32 %v4548, %v4704
        %v4833 = vadd.f32 %v4549, %v4705
        %v4834 = vadd.f32 %v4550, %v4706
        %v4835 = vadd.f32 %v4551, %v4707
        %v4836 = vadd.f32 %v4552, %v4708
        %v4837 = vadd.f32 %v4553, %v4709
        %v4838 = vadd.f32 %v4554, %v4710
        %v4839 = vadd.f32 %v4555, %v4711
        %v4840 = vadd.f32 %v4556, %v4712
        %v4841 = vadd.f32 %v4557, %v4713
        %v4842 = vadd.f32 %v4558, %v4714
        %v4843 = vadd.f32 %v4559, %v4715
        %v4844 = vadd.f32 %v4560, %v4716
        %v4845 = vadd.f32 %v4561, %v4717
        %v4846 = vadd.f32 %v4562, %v4718
        %v4847 = vadd.f32 %v4563, %v4719
        %v4848 = vadd.f32 %v4564, %v4720
        %v4849 = vadd.f32 %v4565, %v4721
        %v4850 = vadd.f32 %v4566, %v4722
        %v4851 = vadd.f32 %v4567, %v4723
        %v4852 = vadd.f32 %v4568, %v4724
        %v4853 = vadd.f32 %v4569, %v4725
        %v4854 = vadd.f32 %v4570, %v4726
        %v4855 = vadd.f32 %v4571, %v4727
        %v4856 = vadd.f32 %v4572, %v4728
        %v4857 = vadd.f32 %v4573, %v4729
        %v4858 = vadd.f32 %v4574, %v4730
        %v4859 = vadd.f32 %v4575, %v4731
        %v4860 = vadd.f32 %v4576, %v4732
        %v4861 = vadd.f32 %v4577, %v4733
        %v4862 = vadd.f32 %v4578, %v4734
        %v4863 = vadd.f32 %v4579, %v4735
        %v4864 = vadd.f32 %v4580, %v4736
        %v4865 = vadd.f32 %v4581, %v4737
        %v4866 = vadd.f32 %v4582, %v4738
        %v4867 = vadd.f32 %v4583, %v4739
        %v4868 = vadd.f32 %v4584, %v4740
        %v4869 = vadd.f32 %v4585, %v4741
        %v4870 = vadd.f32 %v4586, %v4742
        %v4872 = vrot.slane %v526, 1
        %v4873 = vrot.slane %v527, 1
        %v4874 = vsel %vm1594, %v4872, %v4873
        %v4875 = vrot.slane %v528, 1
        %v4876 = vsel %vm1594, %v4873, %v4875
        %v4877 = vrot.slane %v529, 1
        %v4878 = vsel %vm1594, %v4875, %v4877
        %v4879 = vrot.slane %v530, 1
        %v4880 = vsel %vm1594, %v4877, %v4879
        %s4881 = scalar_lea.vmem %s227, 7
        %v4882 = vld [vmem:[%s4881] sm:$0x1]
        %4883 = vset.pattern.permute.xlu0 0
        %4884 = vperm.xlu0 %4883, %v4874
        %v4885 = vpop.permute.xlu0 %4884
        %4887 = vset.pattern.permute.xlu0 0
        %4888 = vperm.xlu0 %4887, %v4876
        %v4889 = vpop.permute.xlu0 %4888
        %4891 = vset.pattern.permute.xlu0 0
        %4892 = vperm.xlu0 %4891, %v4878
        %v4893 = vpop.permute.xlu0 %4892
        %4895 = vset.pattern.permute.xlu0 0
        %4896 = vperm.xlu0 %4895, %v4880
        %v4897 = vpop.permute.xlu0 %4896
        %v4900 = vlaneseq
        %v4901 = vshrl.u32 %v4900, 7
        %v4902 = vsub.s32 0, %v4901
        %v4903 = vrot.slane %v4882, %v4902
        %v4905 = vmul.f32 %v1919, %v4903
        %v4906 = vmul.f32 %v1923, %v4903
        %v4907 = vmul.f32 %v1927, %v4903
        %v4908 = vmul.f32 %v1931, %v4903
        %v4909 = vmul.f32 %v1935, %v4903
        %v4910 = vmul.f32 %v1939, %v4903
        %v4911 = vmul.f32 %v1943, %v4903
        %v4912 = vmul.f32 %v1947, %v4903
        %v4913 = vmul.f32 %v1951, %v4903
        %v4914 = vmul.f32 %v1955, %v4903
        %v4915 = vmul.f32 %v1959, %v4903
        %v4916 = vmul.f32 %v1963, %v4903
        %v4917 = vmul.f32 %v1967, %v4903
        %v4918 = vmul.f32 %v1971, %v4903
        %v4919 = vmul.f32 %v1975, %v4903
        %v4920 = vmul.f32 %v1979, %v4903
        %v4921 = vmul.f32 %v1983, %v4903
        %v4922 = vmul.f32 %v1987, %v4903
        %v4923 = vmul.f32 %v1991, %v4903
        %v4924 = vmul.f32 %v1995, %v4903
        %v4925 = vmul.f32 %v1999, %v4903
        %v4926 = vmul.f32 %v2003, %v4903
        %v4927 = vmul.f32 %v2007, %v4903
        %v4928 = vmul.f32 %v2011, %v4903
        %v4929 = vmul.f32 %v2015, %v4903
        %v4930 = vmul.f32 %v2019, %v4903
        %v4931 = vmul.f32 %v2023, %v4903
        %v4932 = vmul.f32 %v2027, %v4903
        %v4933 = vmul.f32 %v2031, %v4903
        %v4934 = vmul.f32 %v2035, %v4903
        %v4935 = vmul.f32 %v2039, %v4903
        %v4936 = vmul.f32 %v2043, %v4903
        %v4937 = vmul.f32 %v2047, %v4903
        %v4938 = vmul.f32 %v2051, %v4903
        %v4939 = vmul.f32 %v2055, %v4903
        %v4940 = vmul.f32 %v2059, %v4903
        %v4941 = vmul.f32 %v2063, %v4903
        %v4942 = vmul.f32 %v2067, %v4903
        %v4943 = vmul.f32 %v2071, %v4903
        %v4944 = vmul.f32 %v2075, %v4903
        %v4945 = vmul.f32 %v2079, %v4903
        %v4946 = vmul.f32 %v2083, %v4903
        %v4947 = vmul.f32 %v2087, %v4903
        %v4948 = vmul.f32 %v2091, %v4903
        %v4949 = vmul.f32 %v2095, %v4903
        %v4950 = vmul.f32 %v2099, %v4903
        %v4951 = vmul.f32 %v2103, %v4903
        %v4952 = vmul.f32 %v2107, %v4903
        %v4953 = vmul.f32 %v2111, %v4903
        %v4954 = vmul.f32 %v2115, %v4903
        %v4955 = vmul.f32 %v2119, %v4903
        %v4956 = vmul.f32 %v2123, %v4903
        %v4957 = vmul.f32 %v2127, %v4903
        %v4958 = vmul.f32 %v2131, %v4903
        %v4959 = vmul.f32 %v2135, %v4903
        %v4960 = vmul.f32 %v2139, %v4903
        %v4961 = vmul.f32 %v2143, %v4903
        %v4962 = vmul.f32 %v2147, %v4903
        %v4963 = vmul.f32 %v2151, %v4903
        %v4964 = vmul.f32 %v2155, %v4903
        %v4965 = vmul.f32 %v2159, %v4903
        %v4966 = vmul.f32 %v2163, %v4903
        %v4967 = vmul.f32 %v2167, %v4903
        %v4968 = vmul.f32 %v2171, %v4903
        %v4969 = vmul.f32 %v2175, %v4903
        %v4970 = vmul.f32 %v2179, %v4903
        %v4971 = vmul.f32 %v2183, %v4903
        %v4972 = vmul.f32 %v2187, %v4903
        %v4973 = vmul.f32 %v2191, %v4903
        %v4974 = vmul.f32 %v2195, %v4903
        %v4975 = vmul.f32 %v2199, %v4903
        %v4976 = vmul.f32 %v2203, %v4903
        %v4977 = vmul.f32 %v2207, %v4903
        %v4978 = vmul.f32 %v2211, %v4903
        %v4979 = vmul.f32 %v2215, %v4903
        %v4980 = vmul.f32 %v2219, %v4903
        %v4981 = vmul.f32 %v2223, %v4903
        %v4982 = vmul.f32 %v2227, %v4903
        %v4983 = vmul.f32 %v2231, %v4903
        %v4984 = vmul.f32 %v2235, %v4903
        %v4985 = vmul.f32 %v2239, %v4903
        %v4986 = vmul.f32 %v2243, %v4903
        %v4987 = vmul.f32 %v2247, %v4903
        %v4988 = vmul.f32 %v2251, %v4903
        %v4989 = vmul.f32 %v2255, %v4903
        %v4990 = vmul.f32 %v2259, %v4903
        %v4991 = vmul.f32 %v2263, %v4903
        %v4992 = vmul.f32 %v2267, %v4903
        %v4993 = vmul.f32 %v2271, %v4903
        %v4994 = vmul.f32 %v2275, %v4903
        %v4995 = vmul.f32 %v2279, %v4903
        %v4996 = vmul.f32 %v2283, %v4903
        %v4997 = vmul.f32 %v2287, %v4903
        %v4998 = vmul.f32 %v2291, %v4903
        %v4999 = vmul.f32 %v2295, %v4903
        %v5000 = vmul.f32 %v2299, %v4903
        %v5001 = vmul.f32 %v2303, %v4903
        %v5002 = vmul.f32 %v2307, %v4903
        %v5003 = vmul.f32 %v2311, %v4903
        %v5004 = vmul.f32 %v2315, %v4903
        %v5005 = vmul.f32 %v2319, %v4903
        %v5006 = vmul.f32 %v2323, %v4903
        %v5007 = vmul.f32 %v2327, %v4903
        %v5008 = vmul.f32 %v2331, %v4903
        %v5009 = vmul.f32 %v2335, %v4903
        %v5010 = vmul.f32 %v2339, %v4903
        %v5011 = vmul.f32 %v2343, %v4903
        %v5012 = vmul.f32 %v2347, %v4903
        %v5013 = vmul.f32 %v2351, %v4903
        %v5014 = vmul.f32 %v2355, %v4903
        %v5015 = vmul.f32 %v2359, %v4903
        %v5016 = vmul.f32 %v2363, %v4903
        %v5017 = vmul.f32 %v2367, %v4903
        %v5018 = vmul.f32 %v2371, %v4903
        %v5019 = vmul.f32 %v2375, %v4903
        %v5020 = vmul.f32 %v2379, %v4903
        %v5021 = vmul.f32 %v2383, %v4903
        %v5022 = vmul.f32 %v2387, %v4903
        %v5023 = vmul.f32 %v2391, %v4903
        %v5024 = vmul.f32 %v2395, %v4903
        %v5025 = vmul.f32 %v4022, %v4903
        %v5026 = vmul.f32 %v4026, %v4903
        %v5027 = vmul.f32 %v4030, %v4903
        %v5028 = vmul.f32 %v4034, %v4903
        %v5029 = vmul.f32 %v4885, %v4903
        %v5030 = vmul.f32 %v4889, %v4903
        %v5031 = vmul.f32 %v4893, %v4903
        %v5032 = vmul.f32 %v4897, %v4903
        %v5033 = vadd.f32 %v4743, %v4905
        %v5034 = vadd.f32 %v4744, %v4906
        %v5035 = vadd.f32 %v4745, %v4907
        %v5036 = vadd.f32 %v4746, %v4908
        %v5037 = vadd.f32 %v4747, %v4909
        %v5038 = vadd.f32 %v4748, %v4910
        %v5039 = vadd.f32 %v4749, %v4911
        %v5040 = vadd.f32 %v4750, %v4912
        %v5041 = vadd.f32 %v4751, %v4913
        %v5042 = vadd.f32 %v4752, %v4914
        %v5043 = vadd.f32 %v4753, %v4915
        %v5044 = vadd.f32 %v4754, %v4916
        %v5045 = vadd.f32 %v4755, %v4917
        %v5046 = vadd.f32 %v4756, %v4918
        %v5047 = vadd.f32 %v4757, %v4919
        %v5048 = vadd.f32 %v4758, %v4920
        %v5049 = vadd.f32 %v4759, %v4921
        %v5050 = vadd.f32 %v4760, %v4922
        %v5051 = vadd.f32 %v4761, %v4923
        %v5052 = vadd.f32 %v4762, %v4924
        %v5053 = vadd.f32 %v4763, %v4925
        %v5054 = vadd.f32 %v4764, %v4926
        %v5055 = vadd.f32 %v4765, %v4927
        %v5056 = vadd.f32 %v4766, %v4928
        %v5057 = vadd.f32 %v4767, %v4929
        %v5058 = vadd.f32 %v4768, %v4930
        %v5059 = vadd.f32 %v4769, %v4931
        %v5060 = vadd.f32 %v4770, %v4932
        %v5061 = vadd.f32 %v4771, %v4933
        %v5062 = vadd.f32 %v4772, %v4934
        %v5063 = vadd.f32 %v4773, %v4935
        %v5064 = vadd.f32 %v4774, %v4936
        %v5065 = vadd.f32 %v4775, %v4937
        %v5066 = vadd.f32 %v4776, %v4938
        %v5067 = vadd.f32 %v4777, %v4939
        %v5068 = vadd.f32 %v4778, %v4940
        %v5069 = vadd.f32 %v4779, %v4941
        %v5070 = vadd.f32 %v4780, %v4942
        %v5071 = vadd.f32 %v4781, %v4943
        %v5072 = vadd.f32 %v4782, %v4944
        %v5073 = vadd.f32 %v4783, %v4945
        %v5074 = vadd.f32 %v4784, %v4946
        %v5075 = vadd.f32 %v4785, %v4947
        %v5076 = vadd.f32 %v4786, %v4948
        %v5077 = vadd.f32 %v4787, %v4949
        %v5078 = vadd.f32 %v4788, %v4950
        %v5079 = vadd.f32 %v4789, %v4951
        %v5080 = vadd.f32 %v4790, %v4952
        %v5081 = vadd.f32 %v4791, %v4953
        %v5082 = vadd.f32 %v4792, %v4954
        %v5083 = vadd.f32 %v4793, %v4955
        %v5084 = vadd.f32 %v4794, %v4956
        %v5085 = vadd.f32 %v4795, %v4957
        %v5086 = vadd.f32 %v4796, %v4958
        %v5087 = vadd.f32 %v4797, %v4959
        %v5088 = vadd.f32 %v4798, %v4960
        %v5089 = vadd.f32 %v4799, %v4961
        %v5090 = vadd.f32 %v4800, %v4962
        %v5091 = vadd.f32 %v4801, %v4963
        %v5092 = vadd.f32 %v4802, %v4964
        %v5093 = vadd.f32 %v4803, %v4965
        %v5094 = vadd.f32 %v4804, %v4966
        %v5095 = vadd.f32 %v4805, %v4967
        %v5096 = vadd.f32 %v4806, %v4968
        %v5097 = vadd.f32 %v4807, %v4969
        %v5098 = vadd.f32 %v4808, %v4970
        %v5099 = vadd.f32 %v4809, %v4971
        %v5100 = vadd.f32 %v4810, %v4972
        %v5101 = vadd.f32 %v4811, %v4973
        %v5102 = vadd.f32 %v4812, %v4974
        %v5103 = vadd.f32 %v4813, %v4975
        %v5104 = vadd.f32 %v4814, %v4976
        %v5105 = vadd.f32 %v4815, %v4977
        %v5106 = vadd.f32 %v4816, %v4978
        %v5107 = vadd.f32 %v4817, %v4979
        %v5108 = vadd.f32 %v4818, %v4980
        %v5109 = vadd.f32 %v4819, %v4981
        %v5110 = vadd.f32 %v4820, %v4982
        %v5111 = vadd.f32 %v4821, %v4983
        %v5112 = vadd.f32 %v4822, %v4984
        %v5113 = vadd.f32 %v4823, %v4985
        %v5114 = vadd.f32 %v4824, %v4986
        %v5115 = vadd.f32 %v4825, %v4987
        %v5116 = vadd.f32 %v4826, %v4988
        %v5117 = vadd.f32 %v4827, %v4989
        %v5118 = vadd.f32 %v4828, %v4990
        %v5119 = vadd.f32 %v4829, %v4991
        %v5120 = vadd.f32 %v4830, %v4992
        %v5121 = vadd.f32 %v4831, %v4993
        %v5122 = vadd.f32 %v4832, %v4994
        %v5123 = vadd.f32 %v4833, %v4995
        %v5124 = vadd.f32 %v4834, %v4996
        %v5125 = vadd.f32 %v4835, %v4997
        %v5126 = vadd.f32 %v4836, %v4998
        %v5127 = vadd.f32 %v4837, %v4999
        %v5128 = vadd.f32 %v4838, %v5000
        %v5129 = vadd.f32 %v4839, %v5001
        %v5130 = vadd.f32 %v4840, %v5002
        %v5131 = vadd.f32 %v4841, %v5003
        %v5132 = vadd.f32 %v4842, %v5004
        %v5133 = vadd.f32 %v4843, %v5005
        %v5134 = vadd.f32 %v4844, %v5006
        %v5135 = vadd.f32 %v4845, %v5007
        %v5136 = vadd.f32 %v4846, %v5008
        %v5137 = vadd.f32 %v4847, %v5009
        %v5138 = vadd.f32 %v4848, %v5010
        %v5139 = vadd.f32 %v4849, %v5011
        %v5140 = vadd.f32 %v4850, %v5012
        %v5141 = vadd.f32 %v4851, %v5013
        %v5142 = vadd.f32 %v4852, %v5014
        %v5143 = vadd.f32 %v4853, %v5015
        %v5144 = vadd.f32 %v4854, %v5016
        %v5145 = vadd.f32 %v4855, %v5017
        %v5146 = vadd.f32 %v4856, %v5018
        %v5147 = vadd.f32 %v4857, %v5019
        %v5148 = vadd.f32 %v4858, %v5020
        %v5149 = vadd.f32 %v4859, %v5021
        %v5150 = vadd.f32 %v4860, %v5022
        %v5151 = vadd.f32 %v4861, %v5023
        %v5152 = vadd.f32 %v4862, %v5024
        %v5153 = vadd.f32 %v4863, %v5025
        %v5154 = vadd.f32 %v4864, %v5026
        %v5155 = vadd.f32 %v4865, %v5027
        %v5156 = vadd.f32 %v4866, %v5028
        %v5157 = vadd.f32 %v4867, %v5029
        %v5158 = vadd.f32 %v4868, %v5030
        %v5159 = vadd.f32 %v4869, %v5031
        %v5160 = vadd.f32 %v4870, %v5032
        %v5161 = vrot.slane %v526, 2
        %v5162 = vrot.slane %v527, 2
        %v5163 = vsel %vm2659, %v5161, %v5162
        %v5164 = vrot.slane %v528, 2
        %v5165 = vsel %vm2659, %v5162, %v5164
        %v5166 = vrot.slane %v529, 2
        %v5167 = vsel %vm2659, %v5164, %v5166
        %v5168 = vrot.slane %v530, 2
        %v5169 = vsel %vm2659, %v5166, %v5168
        %s5170 = scalar_lea.vmem %s227, 8
        %v5171 = vld [vmem:[%s5170] sm:$0x1]
        %5172 = vset.pattern.permute.xlu0 0
        %5173 = vperm.xlu0 %5172, %v5163
        %v5174 = vpop.permute.xlu0 %5173
        %5176 = vset.pattern.permute.xlu0 0
        %5177 = vperm.xlu0 %5176, %v5165
        %v5178 = vpop.permute.xlu0 %5177
        %5180 = vset.pattern.permute.xlu0 0
        %5181 = vperm.xlu0 %5180, %v5167
        %v5182 = vpop.permute.xlu0 %5181
        %5184 = vset.pattern.permute.xlu0 0
        %5185 = vperm.xlu0 %5184, %v5169
        %v5186 = vpop.permute.xlu0 %5185
        %v5189 = vlaneseq
        %v5190 = vshrl.u32 %v5189, 7
        %v5191 = vsub.s32 0, %v5190
        %v5192 = vrot.slane %v5171, %v5191
        %v5194 = vmul.f32 %v2984, %v5192
        %v5195 = vmul.f32 %v2988, %v5192
        %v5196 = vmul.f32 %v2992, %v5192
        %v5197 = vmul.f32 %v2996, %v5192
        %v5198 = vmul.f32 %v3000, %v5192
        %v5199 = vmul.f32 %v3004, %v5192
        %v5200 = vmul.f32 %v3008, %v5192
        %v5201 = vmul.f32 %v3012, %v5192
        %v5202 = vmul.f32 %v3016, %v5192
        %v5203 = vmul.f32 %v3020, %v5192
        %v5204 = vmul.f32 %v3024, %v5192
        %v5205 = vmul.f32 %v3028, %v5192
        %v5206 = vmul.f32 %v3032, %v5192
        %v5207 = vmul.f32 %v3036, %v5192
        %v5208 = vmul.f32 %v3040, %v5192
        %v5209 = vmul.f32 %v3044, %v5192
        %v5210 = vmul.f32 %v3048, %v5192
        %v5211 = vmul.f32 %v3052, %v5192
        %v5212 = vmul.f32 %v3056, %v5192
        %v5213 = vmul.f32 %v3060, %v5192
        %v5214 = vmul.f32 %v3064, %v5192
        %v5215 = vmul.f32 %v3068, %v5192
        %v5216 = vmul.f32 %v3072, %v5192
        %v5217 = vmul.f32 %v3076, %v5192
        %v5218 = vmul.f32 %v3080, %v5192
        %v5219 = vmul.f32 %v3084, %v5192
        %v5220 = vmul.f32 %v3088, %v5192
        %v5221 = vmul.f32 %v3092, %v5192
        %v5222 = vmul.f32 %v3096, %v5192
        %v5223 = vmul.f32 %v3100, %v5192
        %v5224 = vmul.f32 %v3104, %v5192
        %v5225 = vmul.f32 %v3108, %v5192
        %v5226 = vmul.f32 %v3112, %v5192
        %v5227 = vmul.f32 %v3116, %v5192
        %v5228 = vmul.f32 %v3120, %v5192
        %v5229 = vmul.f32 %v3124, %v5192
        %v5230 = vmul.f32 %v3128, %v5192
        %v5231 = vmul.f32 %v3132, %v5192
        %v5232 = vmul.f32 %v3136, %v5192
        %v5233 = vmul.f32 %v3140, %v5192
        %v5234 = vmul.f32 %v3144, %v5192
        %v5235 = vmul.f32 %v3148, %v5192
        %v5236 = vmul.f32 %v3152, %v5192
        %v5237 = vmul.f32 %v3156, %v5192
        %v5238 = vmul.f32 %v3160, %v5192
        %v5239 = vmul.f32 %v3164, %v5192
        %v5240 = vmul.f32 %v3168, %v5192
        %v5241 = vmul.f32 %v3172, %v5192
        %v5242 = vmul.f32 %v3176, %v5192
        %v5243 = vmul.f32 %v3180, %v5192
        %v5244 = vmul.f32 %v3184, %v5192
        %v5245 = vmul.f32 %v3188, %v5192
        %v5246 = vmul.f32 %v3192, %v5192
        %v5247 = vmul.f32 %v3196, %v5192
        %v5248 = vmul.f32 %v3200, %v5192
        %v5249 = vmul.f32 %v3204, %v5192
        %v5250 = vmul.f32 %v3208, %v5192
        %v5251 = vmul.f32 %v3212, %v5192
        %v5252 = vmul.f32 %v3216, %v5192
        %v5253 = vmul.f32 %v3220, %v5192
        %v5254 = vmul.f32 %v3224, %v5192
        %v5255 = vmul.f32 %v3228, %v5192
        %v5256 = vmul.f32 %v3232, %v5192
        %v5257 = vmul.f32 %v3236, %v5192
        %v5258 = vmul.f32 %v3240, %v5192
        %v5259 = vmul.f32 %v3244, %v5192
        %v5260 = vmul.f32 %v3248, %v5192
        %v5261 = vmul.f32 %v3252, %v5192
        %v5262 = vmul.f32 %v3256, %v5192
        %v5263 = vmul.f32 %v3260, %v5192
        %v5264 = vmul.f32 %v3264, %v5192
        %v5265 = vmul.f32 %v3268, %v5192
        %v5266 = vmul.f32 %v3272, %v5192
        %v5267 = vmul.f32 %v3276, %v5192
        %v5268 = vmul.f32 %v3280, %v5192
        %v5269 = vmul.f32 %v3284, %v5192
        %v5270 = vmul.f32 %v3288, %v5192
        %v5271 = vmul.f32 %v3292, %v5192
        %v5272 = vmul.f32 %v3296, %v5192
        %v5273 = vmul.f32 %v3300, %v5192
        %v5274 = vmul.f32 %v3304, %v5192
        %v5275 = vmul.f32 %v3308, %v5192
        %v5276 = vmul.f32 %v3312, %v5192
        %v5277 = vmul.f32 %v3316, %v5192
        %v5278 = vmul.f32 %v3320, %v5192
        %v5279 = vmul.f32 %v3324, %v5192
        %v5280 = vmul.f32 %v3328, %v5192
        %v5281 = vmul.f32 %v3332, %v5192
        %v5282 = vmul.f32 %v3336, %v5192
        %v5283 = vmul.f32 %v3340, %v5192
        %v5284 = vmul.f32 %v3344, %v5192
        %v5285 = vmul.f32 %v3348, %v5192
        %v5286 = vmul.f32 %v3352, %v5192
        %v5287 = vmul.f32 %v3356, %v5192
        %v5288 = vmul.f32 %v3360, %v5192
        %v5289 = vmul.f32 %v3364, %v5192
        %v5290 = vmul.f32 %v3368, %v5192
        %v5291 = vmul.f32 %v3372, %v5192
        %v5292 = vmul.f32 %v3376, %v5192
        %v5293 = vmul.f32 %v3380, %v5192
        %v5294 = vmul.f32 %v3384, %v5192
        %v5295 = vmul.f32 %v3388, %v5192
        %v5296 = vmul.f32 %v3392, %v5192
        %v5297 = vmul.f32 %v3396, %v5192
        %v5298 = vmul.f32 %v3400, %v5192
        %v5299 = vmul.f32 %v3404, %v5192
        %v5300 = vmul.f32 %v3408, %v5192
        %v5301 = vmul.f32 %v3412, %v5192
        %v5302 = vmul.f32 %v3416, %v5192
        %v5303 = vmul.f32 %v3420, %v5192
        %v5304 = vmul.f32 %v3424, %v5192
        %v5305 = vmul.f32 %v3428, %v5192
        %v5306 = vmul.f32 %v3432, %v5192
        %v5307 = vmul.f32 %v3436, %v5192
        %v5308 = vmul.f32 %v3440, %v5192
        %v5309 = vmul.f32 %v3444, %v5192
        %v5310 = vmul.f32 %v3448, %v5192
        %v5311 = vmul.f32 %v3452, %v5192
        %v5312 = vmul.f32 %v3456, %v5192
        %v5313 = vmul.f32 %v3460, %v5192
        %v5314 = vmul.f32 %v4311, %v5192
        %v5315 = vmul.f32 %v4315, %v5192
        %v5316 = vmul.f32 %v4319, %v5192
        %v5317 = vmul.f32 %v4323, %v5192
        %v5318 = vmul.f32 %v5174, %v5192
        %v5319 = vmul.f32 %v5178, %v5192
        %v5320 = vmul.f32 %v5182, %v5192
        %v5321 = vmul.f32 %v5186, %v5192
        %v5322 = vadd.f32 %v5033, %v5194
        %v5323 = vadd.f32 %v5034, %v5195
        %v5324 = vadd.f32 %v5035, %v5196
        %v5325 = vadd.f32 %v5036, %v5197
        %v5326 = vadd.f32 %v5037, %v5198
        %v5327 = vadd.f32 %v5038, %v5199
        %v5328 = vadd.f32 %v5039, %v5200
        %v5329 = vadd.f32 %v5040, %v5201
        %v5330 = vadd.f32 %v5041, %v5202
        %v5331 = vadd.f32 %v5042, %v5203
        %v5332 = vadd.f32 %v5043, %v5204
        %v5333 = vadd.f32 %v5044, %v5205
        %v5334 = vadd.f32 %v5045, %v5206
        %v5335 = vadd.f32 %v5046, %v5207
        %v5336 = vadd.f32 %v5047, %v5208
        %v5337 = vadd.f32 %v5048, %v5209
        %v5338 = vadd.f32 %v5049, %v5210
        %v5339 = vadd.f32 %v5050, %v5211
        %v5340 = vadd.f32 %v5051, %v5212
        %v5341 = vadd.f32 %v5052, %v5213
        %v5342 = vadd.f32 %v5053, %v5214
        %v5343 = vadd.f32 %v5054, %v5215
        %v5344 = vadd.f32 %v5055, %v5216
        %v5345 = vadd.f32 %v5056, %v5217
        %v5346 = vadd.f32 %v5057, %v5218
        %v5347 = vadd.f32 %v5058, %v5219
        %v5348 = vadd.f32 %v5059, %v5220
        %v5349 = vadd.f32 %v5060, %v5221
        %v5350 = vadd.f32 %v5061, %v5222
        %v5351 = vadd.f32 %v5062, %v5223
        %v5352 = vadd.f32 %v5063, %v5224
        %v5353 = vadd.f32 %v5064, %v5225
        %v5354 = vadd.f32 %v5065, %v5226
        %v5355 = vadd.f32 %v5066, %v5227
        %v5356 = vadd.f32 %v5067, %v5228
        %v5357 = vadd.f32 %v5068, %v5229
        %v5358 = vadd.f32 %v5069, %v5230
        %v5359 = vadd.f32 %v5070, %v5231
        %v5360 = vadd.f32 %v5071, %v5232
        %v5361 = vadd.f32 %v5072, %v5233
        %v5362 = vadd.f32 %v5073, %v5234
        %v5363 = vadd.f32 %v5074, %v5235
        %v5364 = vadd.f32 %v5075, %v5236
        %v5365 = vadd.f32 %v5076, %v5237
        %v5366 = vadd.f32 %v5077, %v5238
        %v5367 = vadd.f32 %v5078, %v5239
        %v5368 = vadd.f32 %v5079, %v5240
        %v5369 = vadd.f32 %v5080, %v5241
        %v5370 = vadd.f32 %v5081, %v5242
        %v5371 = vadd.f32 %v5082, %v5243
        %v5372 = vadd.f32 %v5083, %v5244
        %v5373 = vadd.f32 %v5084, %v5245
        %v5374 = vadd.f32 %v5085, %v5246
        %v5375 = vadd.f32 %v5086, %v5247
        %v5376 = vadd.f32 %v5087, %v5248
        %v5377 = vadd.f32 %v5088, %v5249
        %v5378 = vadd.f32 %v5089, %v5250
        %v5379 = vadd.f32 %v5090, %v5251
        %v5380 = vadd.f32 %v5091, %v5252
        %v5381 = vadd.f32 %v5092, %v5253
        %v5382 = vadd.f32 %v5093, %v5254
        %v5383 = vadd.f32 %v5094, %v5255
        %v5384 = vadd.f32 %v5095, %v5256
        %v5385 = vadd.f32 %v5096, %v5257
        %v5386 = vadd.f32 %v5097, %v5258
        %v5387 = vadd.f32 %v5098, %v5259
        %v5388 = vadd.f32 %v5099, %v5260
        %v5389 = vadd.f32 %v5100, %v5261
        %v5390 = vadd.f32 %v5101, %v5262
        %v5391 = vadd.f32 %v5102, %v5263
        %v5392 = vadd.f32 %v5103, %v5264
        %v5393 = vadd.f32 %v5104, %v5265
        %v5394 = vadd.f32 %v5105, %v5266
        %v5395 = vadd.f32 %v5106, %v5267
        %v5396 = vadd.f32 %v5107, %v5268
        %v5397 = vadd.f32 %v5108, %v5269
        %v5398 = vadd.f32 %v5109, %v5270
        %v5399 = vadd.f32 %v5110, %v5271
        %v5400 = vadd.f32 %v5111, %v5272
        %v5401 = vadd.f32 %v5112, %v5273
        %v5402 = vadd.f32 %v5113, %v5274
        %v5403 = vadd.f32 %v5114, %v5275
        %v5404 = vadd.f32 %v5115, %v5276
        %v5405 = vadd.f32 %v5116, %v5277
        %v5406 = vadd.f32 %v5117, %v5278
        %v5407 = vadd.f32 %v5118, %v5279
        %v5408 = vadd.f32 %v5119, %v5280
        %v5409 = vadd.f32 %v5120, %v5281
        %v5410 = vadd.f32 %v5121, %v5282
        %v5411 = vadd.f32 %v5122, %v5283
        %v5412 = vadd.f32 %v5123, %v5284
        %v5413 = vadd.f32 %v5124, %v5285
        %v5414 = vadd.f32 %v5125, %v5286
        %v5415 = vadd.f32 %v5126, %v5287
        %v5416 = vadd.f32 %v5127, %v5288
        %v5417 = vadd.f32 %v5128, %v5289
        %v5418 = vadd.f32 %v5129, %v5290
        %v5419 = vadd.f32 %v5130, %v5291
        %v5420 = vadd.f32 %v5131, %v5292
        %v5421 = vadd.f32 %v5132, %v5293
        %v5422 = vadd.f32 %v5133, %v5294
        %v5423 = vadd.f32 %v5134, %v5295
        %v5424 = vadd.f32 %v5135, %v5296
        %v5425 = vadd.f32 %v5136, %v5297
        %v5426 = vadd.f32 %v5137, %v5298
        %v5427 = vadd.f32 %v5138, %v5299
        %v5428 = vadd.f32 %v5139, %v5300
        %v5429 = vadd.f32 %v5140, %v5301
        %v5430 = vadd.f32 %v5141, %v5302
        %v5431 = vadd.f32 %v5142, %v5303
        %v5432 = vadd.f32 %v5143, %v5304
        %v5433 = vadd.f32 %v5144, %v5305
        %v5434 = vadd.f32 %v5145, %v5306
        %v5435 = vadd.f32 %v5146, %v5307
        %v5436 = vadd.f32 %v5147, %v5308
        %v5437 = vadd.f32 %v5148, %v5309
        %v5438 = vadd.f32 %v5149, %v5310
        %v5439 = vadd.f32 %v5150, %v5311
        %v5440 = vadd.f32 %v5151, %v5312
        %v5441 = vadd.f32 %v5152, %v5313
        %v5442 = vadd.f32 %v5153, %v5314
        %v5443 = vadd.f32 %v5154, %v5315
        %v5444 = vadd.f32 %v5155, %v5316
        %v5445 = vadd.f32 %v5156, %v5317
        %v5446 = vadd.f32 %v5157, %v5318
        %v5447 = vadd.f32 %v5158, %v5319
        %v5448 = vadd.f32 %v5159, %v5320
        %v5449 = vadd.f32 %v5160, %v5321
        %vm5450 = vcmask 15360
        %5451 = vst.msk [vmem:[#allocation2] sm:$0xff] %vm5450, %v5322
        %5452 = vst.msk [vmem:[#allocation2 + $0x8] sm:$0xff] %vm5450, %v5323
        %5453 = vst.msk [vmem:[#allocation2 + $0x10] sm:$0xff] %vm5450, %v5324
        %5454 = vst.msk [vmem:[#allocation2 + $0x18] sm:$0xff] %vm5450, %v5325
        %5455 = vst.msk [vmem:[#allocation2 + $0x20] sm:$0xff] %vm5450, %v5326
        %5456 = vst.msk [vmem:[#allocation2 + $0x28] sm:$0xff] %vm5450, %v5327
        %5457 = vst.msk [vmem:[#allocation2 + $0x30] sm:$0xff] %vm5450, %v5328
        %5458 = vst.msk [vmem:[#allocation2 + $0x38] sm:$0xff] %vm5450, %v5329
        %5459 = vst.msk [vmem:[#allocation2 + $0x40] sm:$0xff] %vm5450, %v5330
        %5460 = vst.msk [vmem:[#allocation2 + $0x48] sm:$0xff] %vm5450, %v5331
        %5461 = vst.msk [vmem:[#allocation2 + $0x50] sm:$0xff] %vm5450, %v5332
        %5462 = vst.msk [vmem:[#allocation2 + $0x58] sm:$0xff] %vm5450, %v5333
        %5463 = vst.msk [vmem:[#allocation2 + $0x60] sm:$0xff] %vm5450, %v5334
        %5464 = vst.msk [vmem:[#allocation2 + $0x68] sm:$0xff] %vm5450, %v5335
        %5465 = vst.msk [vmem:[#allocation2 + $0x70] sm:$0xff] %vm5450, %v5336
        %5466 = vst.msk [vmem:[#allocation2 + $0x78] sm:$0xff] %vm5450, %v5337
        %5467 = vst.msk [vmem:[#allocation2 + $0x80] sm:$0xff] %vm5450, %v5338
        %5468 = vst.msk [vmem:[#allocation2 + $0x88] sm:$0xff] %vm5450, %v5339
        %5469 = vst.msk [vmem:[#allocation2 + $0x90] sm:$0xff] %vm5450, %v5340
        %5470 = vst.msk [vmem:[#allocation2 + $0x98] sm:$0xff] %vm5450, %v5341
        %5471 = vst.msk [vmem:[#allocation2 + $0xa0] sm:$0xff] %vm5450, %v5342
        %5472 = vst.msk [vmem:[#allocation2 + $0xa8] sm:$0xff] %vm5450, %v5343
        %5473 = vst.msk [vmem:[#allocation2 + $0xb0] sm:$0xff] %vm5450, %v5344
        %5474 = vst.msk [vmem:[#allocation2 + $0xb8] sm:$0xff] %vm5450, %v5345
        %5475 = vst.msk [vmem:[#allocation2 + $0xc0] sm:$0xff] %vm5450, %v5346
        %5476 = vst.msk [vmem:[#allocation2 + $0xc8] sm:$0xff] %vm5450, %v5347
        %5477 = vst.msk [vmem:[#allocation2 + $0xd0] sm:$0xff] %vm5450, %v5348
        %5478 = vst.msk [vmem:[#allocation2 + $0xd8] sm:$0xff] %vm5450, %v5349
        %5479 = vst.msk [vmem:[#allocation2 + $0xe0] sm:$0xff] %vm5450, %v5350
        %5480 = vst.msk [vmem:[#allocation2 + $0xe8] sm:$0xff] %vm5450, %v5351
        %5481 = vst.msk [vmem:[#allocation2 + $0xf0] sm:$0xff] %vm5450, %v5352
        %5482 = vst.msk [vmem:[#allocation2 + $0xf8] sm:$0xff] %vm5450, %v5353
        %5483 = vst.msk [vmem:[#allocation2 + $0x100] sm:$0xff] %vm5450, %v5354
        %5484 = vst.msk [vmem:[#allocation2 + $0x108] sm:$0xff] %vm5450, %v5355
        %5485 = vst.msk [vmem:[#allocation2 + $0x110] sm:$0xff] %vm5450, %v5356
        %5486 = vst.msk [vmem:[#allocation2 + $0x118] sm:$0xff] %vm5450, %v5357
        %5487 = vst.msk [vmem:[#allocation2 + $0x120] sm:$0xff] %vm5450, %v5358
        %5488 = vst.msk [vmem:[#allocation2 + $0x128] sm:$0xff] %vm5450, %v5359
        %5489 = vst.msk [vmem:[#allocation2 + $0x130] sm:$0xff] %vm5450, %v5360
        %5490 = vst.msk [vmem:[#allocation2 + $0x138] sm:$0xff] %vm5450, %v5361
        %5491 = vst.msk [vmem:[#allocation2 + $0x140] sm:$0xff] %vm5450, %v5362
        %5492 = vst.msk [vmem:[#allocation2 + $0x148] sm:$0xff] %vm5450, %v5363
        %5493 = vst.msk [vmem:[#allocation2 + $0x150] sm:$0xff] %vm5450, %v5364
        %5494 = vst.msk [vmem:[#allocation2 + $0x158] sm:$0xff] %vm5450, %v5365
        %5495 = vst.msk [vmem:[#allocation2 + $0x160] sm:$0xff] %vm5450, %v5366
        %5496 = vst.msk [vmem:[#allocation2 + $0x168] sm:$0xff] %vm5450, %v5367
        %5497 = vst.msk [vmem:[#allocation2 + $0x170] sm:$0xff] %vm5450, %v5368
        %5498 = vst.msk [vmem:[#allocation2 + $0x178] sm:$0xff] %vm5450, %v5369
        %5499 = vst.msk [vmem:[#allocation2 + $0x180] sm:$0xff] %vm5450, %v5370
        %5500 = vst.msk [vmem:[#allocation2 + $0x188] sm:$0xff] %vm5450, %v5371
        %5501 = vst.msk [vmem:[#allocation2 + $0x190] sm:$0xff] %vm5450, %v5372
        %5502 = vst.msk [vmem:[#allocation2 + $0x198] sm:$0xff] %vm5450, %v5373
        %5503 = vst.msk [vmem:[#allocation2 + $0x1a0] sm:$0xff] %vm5450, %v5374
        %5504 = vst.msk [vmem:[#allocation2 + $0x1a8] sm:$0xff] %vm5450, %v5375
        %5505 = vst.msk [vmem:[#allocation2 + $0x1b0] sm:$0xff] %vm5450, %v5376
        %5506 = vst.msk [vmem:[#allocation2 + $0x1b8] sm:$0xff] %vm5450, %v5377
        %5507 = vst.msk [vmem:[#allocation2 + $0x1c0] sm:$0xff] %vm5450, %v5378
        %5508 = vst.msk [vmem:[#allocation2 + $0x1c8] sm:$0xff] %vm5450, %v5379
        %5509 = vst.msk [vmem:[#allocation2 + $0x1d0] sm:$0xff] %vm5450, %v5380
        %5510 = vst.msk [vmem:[#allocation2 + $0x1d8] sm:$0xff] %vm5450, %v5381
        %5511 = vst.msk [vmem:[#allocation2 + $0x1e0] sm:$0xff] %vm5450, %v5382
        %5512 = vst.msk [vmem:[#allocation2 + $0x1e8] sm:$0xff] %vm5450, %v5383
        %5513 = vst.msk [vmem:[#allocation2 + $0x1f0] sm:$0xff] %vm5450, %v5384
        %5514 = vst.msk [vmem:[#allocation2 + $0x1f8] sm:$0xff] %vm5450, %v5385
        %5515 = vst.msk [vmem:[#allocation2 + $0x200] sm:$0xff] %vm5450, %v5386
        %5516 = vst.msk [vmem:[#allocation2 + $0x208] sm:$0xff] %vm5450, %v5387
        %5517 = vst.msk [vmem:[#allocation2 + $0x210] sm:$0xff] %vm5450, %v5388
        %5518 = vst.msk [vmem:[#allocation2 + $0x218] sm:$0xff] %vm5450, %v5389
        %5519 = vst.msk [vmem:[#allocation2 + $0x220] sm:$0xff] %vm5450, %v5390
        %5520 = vst.msk [vmem:[#allocation2 + $0x228] sm:$0xff] %vm5450, %v5391
        %5521 = vst.msk [vmem:[#allocation2 + $0x230] sm:$0xff] %vm5450, %v5392
        %5522 = vst.msk [vmem:[#allocation2 + $0x238] sm:$0xff] %vm5450, %v5393
        %5523 = vst.msk [vmem:[#allocation2 + $0x240] sm:$0xff] %vm5450, %v5394
        %5524 = vst.msk [vmem:[#allocation2 + $0x248] sm:$0xff] %vm5450, %v5395
        %5525 = vst.msk [vmem:[#allocation2 + $0x250] sm:$0xff] %vm5450, %v5396
        %5526 = vst.msk [vmem:[#allocation2 + $0x258] sm:$0xff] %vm5450, %v5397
        %5527 = vst.msk [vmem:[#allocation2 + $0x260] sm:$0xff] %vm5450, %v5398
        %5528 = vst.msk [vmem:[#allocation2 + $0x268] sm:$0xff] %vm5450, %v5399
        %5529 = vst.msk [vmem:[#allocation2 + $0x270] sm:$0xff] %vm5450, %v5400
        %5530 = vst.msk [vmem:[#allocation2 + $0x278] sm:$0xff] %vm5450, %v5401
        %5531 = vst.msk [vmem:[#allocation2 + $0x280] sm:$0xff] %vm5450, %v5402
        %5532 = vst.msk [vmem:[#allocation2 + $0x288] sm:$0xff] %vm5450, %v5403
        %5533 = vst.msk [vmem:[#allocation2 + $0x290] sm:$0xff] %vm5450, %v5404
        %5534 = vst.msk [vmem:[#allocation2 + $0x298] sm:$0xff] %vm5450, %v5405
        %5535 = vst.msk [vmem:[#allocation2 + $0x2a0] sm:$0xff] %vm5450, %v5406
        %5536 = vst.msk [vmem:[#allocation2 + $0x2a8] sm:$0xff] %vm5450, %v5407
        %5537 = vst.msk [vmem:[#allocation2 + $0x2b0] sm:$0xff] %vm5450, %v5408
        %5538 = vst.msk [vmem:[#allocation2 + $0x2b8] sm:$0xff] %vm5450, %v5409
        %5539 = vst.msk [vmem:[#allocation2 + $0x2c0] sm:$0xff] %vm5450, %v5410
        %5540 = vst.msk [vmem:[#allocation2 + $0x2c8] sm:$0xff] %vm5450, %v5411
        %5541 = vst.msk [vmem:[#allocation2 + $0x2d0] sm:$0xff] %vm5450, %v5412
        %5542 = vst.msk [vmem:[#allocation2 + $0x2d8] sm:$0xff] %vm5450, %v5413
        %5543 = vst.msk [vmem:[#allocation2 + $0x2e0] sm:$0xff] %vm5450, %v5414
        %5544 = vst.msk [vmem:[#allocation2 + $0x2e8] sm:$0xff] %vm5450, %v5415
        %5545 = vst.msk [vmem:[#allocation2 + $0x2f0] sm:$0xff] %vm5450, %v5416
        %5546 = vst.msk [vmem:[#allocation2 + $0x2f8] sm:$0xff] %vm5450, %v5417
        %5547 = vst.msk [vmem:[#allocation2 + $0x300] sm:$0xff] %vm5450, %v5418
        %5548 = vst.msk [vmem:[#allocation2 + $0x308] sm:$0xff] %vm5450, %v5419
        %5549 = vst.msk [vmem:[#allocation2 + $0x310] sm:$0xff] %vm5450, %v5420
        %5550 = vst.msk [vmem:[#allocation2 + $0x318] sm:$0xff] %vm5450, %v5421
        %5551 = vst.msk [vmem:[#allocation2 + $0x320] sm:$0xff] %vm5450, %v5422
        %5552 = vst.msk [vmem:[#allocation2 + $0x328] sm:$0xff] %vm5450, %v5423
        %5553 = vst.msk [vmem:[#allocation2 + $0x330] sm:$0xff] %vm5450, %v5424
        %5554 = vst.msk [vmem:[#allocation2 + $0x338] sm:$0xff] %vm5450, %v5425
        %5555 = vst.msk [vmem:[#allocation2 + $0x340] sm:$0xff] %vm5450, %v5426
        %5556 = vst.msk [vmem:[#allocation2 + $0x348] sm:$0xff] %vm5450, %v5427
        %5557 = vst.msk [vmem:[#allocation2 + $0x350] sm:$0xff] %vm5450, %v5428
        %5558 = vst.msk [vmem:[#allocation2 + $0x358] sm:$0xff] %vm5450, %v5429
        %5559 = vst.msk [vmem:[#allocation2 + $0x360] sm:$0xff] %vm5450, %v5430
        %5560 = vst.msk [vmem:[#allocation2 + $0x368] sm:$0xff] %vm5450, %v5431
        %5561 = vst.msk [vmem:[#allocation2 + $0x370] sm:$0xff] %vm5450, %v5432
        %5562 = vst.msk [vmem:[#allocation2 + $0x378] sm:$0xff] %vm5450, %v5433
        %5563 = vst.msk [vmem:[#allocation2 + $0x380] sm:$0xff] %vm5450, %v5434
        %5564 = vst.msk [vmem:[#allocation2 + $0x388] sm:$0xff] %vm5450, %v5435
        %5565 = vst.msk [vmem:[#allocation2 + $0x390] sm:$0xff] %vm5450, %v5436
        %5566 = vst.msk [vmem:[#allocation2 + $0x398] sm:$0xff] %vm5450, %v5437
        %5567 = vst.msk [vmem:[#allocation2 + $0x3a0] sm:$0xff] %vm5450, %v5438
        %5568 = vst.msk [vmem:[#allocation2 + $0x3a8] sm:$0xff] %vm5450, %v5439
        %5569 = vst.msk [vmem:[#allocation2 + $0x3b0] sm:$0xff] %vm5450, %v5440
        %5570 = vst.msk [vmem:[#allocation2 + $0x3b8] sm:$0xff] %vm5450, %v5441
        %5571 = vst.msk [vmem:[#allocation2 + $0x3c0] sm:$0xff] %vm5450, %v5442
        %5572 = vst.msk [vmem:[#allocation2 + $0x3c8] sm:$0xff] %vm5450, %v5443
        %5573 = vst.msk [vmem:[#allocation2 + $0x3d0] sm:$0xff] %vm5450, %v5444
        %5574 = vst.msk [vmem:[#allocation2 + $0x3d8] sm:$0xff] %vm5450, %v5445
        %5575 = vst.msk [vmem:[#allocation2 + $0x3e0] sm:$0xff] %vm5450, %v5446
        %5576 = vst.msk [vmem:[#allocation2 + $0x3e8] sm:$0xff] %vm5450, %v5447
        %5577 = vst.msk [vmem:[#allocation2 + $0x3f0] sm:$0xff] %vm5450, %v5448
        %5578 = vst.msk [vmem:[#allocation2 + $0x3f8] sm:$0xff] %vm5450, %v5449
        %p5579 = scmp.eq.s32.totalorder %s24, 2
        // Predicated region
        $region37: #{conv3d_3x3x3.1} parent=31 // pred_check
          %p5580 = pneg %p5579
        $region38: #{conv3d_3x3x3.1} parent=31 // pred_check_branch
          %5582 = sbr.rel (%p5580) target = $region40
        $region39: #{conv3d_3x3x3.1} parent=31 // pred_region
          %v5583 = vld [vmem:[#allocation2] sm:$0xff]
          %v5584 = vld [vmem:[#allocation2 + $0x8] sm:$0xff]
          %v5585 = vld [vmem:[#allocation2 + $0x10] sm:$0xff]
          %v5586 = vld [vmem:[#allocation2 + $0x18] sm:$0xff]
          %v5587 = vld [vmem:[#allocation2 + $0x20] sm:$0xff]
          %v5588 = vld [vmem:[#allocation2 + $0x28] sm:$0xff]
          %v5589 = vld [vmem:[#allocation2 + $0x30] sm:$0xff]
          %v5590 = vld [vmem:[#allocation2 + $0x38] sm:$0xff]
          %v5591 = vld [vmem:[#allocation2 + $0x40] sm:$0xff]
          %v5592 = vld [vmem:[#allocation2 + $0x48] sm:$0xff]
          %v5593 = vld [vmem:[#allocation2 + $0x50] sm:$0xff]
          %v5594 = vld [vmem:[#allocation2 + $0x58] sm:$0xff]
          %v5595 = vld [vmem:[#allocation2 + $0x60] sm:$0xff]
          %v5596 = vld [vmem:[#allocation2 + $0x68] sm:$0xff]
          %v5597 = vld [vmem:[#allocation2 + $0x70] sm:$0xff]
          %v5598 = vld [vmem:[#allocation2 + $0x78] sm:$0xff]
          %v5599 = vld [vmem:[#allocation2 + $0x80] sm:$0xff]
          %v5600 = vld [vmem:[#allocation2 + $0x88] sm:$0xff]
          %v5601 = vld [vmem:[#allocation2 + $0x90] sm:$0xff]
          %v5602 = vld [vmem:[#allocation2 + $0x98] sm:$0xff]
          %v5603 = vld [vmem:[#allocation2 + $0xa0] sm:$0xff]
          %v5604 = vld [vmem:[#allocation2 + $0xa8] sm:$0xff]
          %v5605 = vld [vmem:[#allocation2 + $0xb0] sm:$0xff]
          %v5606 = vld [vmem:[#allocation2 + $0xb8] sm:$0xff]
          %v5607 = vld [vmem:[#allocation2 + $0xc0] sm:$0xff]
          %v5608 = vld [vmem:[#allocation2 + $0xc8] sm:$0xff]
          %v5609 = vld [vmem:[#allocation2 + $0xd0] sm:$0xff]
          %v5610 = vld [vmem:[#allocation2 + $0xd8] sm:$0xff]
          %v5611 = vld [vmem:[#allocation2 + $0xe0] sm:$0xff]
          %v5612 = vld [vmem:[#allocation2 + $0xe8] sm:$0xff]
          %v5613 = vld [vmem:[#allocation2 + $0xf0] sm:$0xff]
          %v5614 = vld [vmem:[#allocation2 + $0xf8] sm:$0xff]
          %v5615 = vld [vmem:[#allocation2 + $0x100] sm:$0xff]
          %v5616 = vld [vmem:[#allocation2 + $0x108] sm:$0xff]
          %v5617 = vld [vmem:[#allocation2 + $0x110] sm:$0xff]
          %v5618 = vld [vmem:[#allocation2 + $0x118] sm:$0xff]
          %v5619 = vld [vmem:[#allocation2 + $0x120] sm:$0xff]
          %v5620 = vld [vmem:[#allocation2 + $0x128] sm:$0xff]
          %v5621 = vld [vmem:[#allocation2 + $0x130] sm:$0xff]
          %v5622 = vld [vmem:[#allocation2 + $0x138] sm:$0xff]
          %v5623 = vld [vmem:[#allocation2 + $0x140] sm:$0xff]
          %v5624 = vld [vmem:[#allocation2 + $0x148] sm:$0xff]
          %v5625 = vld [vmem:[#allocation2 + $0x150] sm:$0xff]
          %v5626 = vld [vmem:[#allocation2 + $0x158] sm:$0xff]
          %v5627 = vld [vmem:[#allocation2 + $0x160] sm:$0xff]
          %v5628 = vld [vmem:[#allocation2 + $0x168] sm:$0xff]
          %v5629 = vld [vmem:[#allocation2 + $0x170] sm:$0xff]
          %v5630 = vld [vmem:[#allocation2 + $0x178] sm:$0xff]
          %v5631 = vld [vmem:[#allocation2 + $0x180] sm:$0xff]
          %v5632 = vld [vmem:[#allocation2 + $0x188] sm:$0xff]
          %v5633 = vld [vmem:[#allocation2 + $0x190] sm:$0xff]
          %v5634 = vld [vmem:[#allocation2 + $0x198] sm:$0xff]
          %v5635 = vld [vmem:[#allocation2 + $0x1a0] sm:$0xff]
          %v5636 = vld [vmem:[#allocation2 + $0x1a8] sm:$0xff]
          %v5637 = vld [vmem:[#allocation2 + $0x1b0] sm:$0xff]
          %v5638 = vld [vmem:[#allocation2 + $0x1b8] sm:$0xff]
          %v5639 = vld [vmem:[#allocation2 + $0x1c0] sm:$0xff]
          %v5640 = vld [vmem:[#allocation2 + $0x1c8] sm:$0xff]
          %v5641 = vld [vmem:[#allocation2 + $0x1d0] sm:$0xff]
          %v5642 = vld [vmem:[#allocation2 + $0x1d8] sm:$0xff]
          %v5643 = vld [vmem:[#allocation2 + $0x1e0] sm:$0xff]
          %v5644 = vld [vmem:[#allocation2 + $0x1e8] sm:$0xff]
          %v5645 = vld [vmem:[#allocation2 + $0x1f0] sm:$0xff]
          %v5646 = vld [vmem:[#allocation2 + $0x1f8] sm:$0xff]
          %v5647 = vld [vmem:[#allocation2 + $0x200] sm:$0xff]
          %v5648 = vld [vmem:[#allocation2 + $0x208] sm:$0xff]
          %v5649 = vld [vmem:[#allocation2 + $0x210] sm:$0xff]
          %v5650 = vld [vmem:[#allocation2 + $0x218] sm:$0xff]
          %v5651 = vld [vmem:[#allocation2 + $0x220] sm:$0xff]
          %v5652 = vld [vmem:[#allocation2 + $0x228] sm:$0xff]
          %v5653 = vld [vmem:[#allocation2 + $0x230] sm:$0xff]
          %v5654 = vld [vmem:[#allocation2 + $0x238] sm:$0xff]
          %v5655 = vld [vmem:[#allocation2 + $0x240] sm:$0xff]
          %v5656 = vld [vmem:[#allocation2 + $0x248] sm:$0xff]
          %v5657 = vld [vmem:[#allocation2 + $0x250] sm:$0xff]
          %v5658 = vld [vmem:[#allocation2 + $0x258] sm:$0xff]
          %v5659 = vld [vmem:[#allocation2 + $0x260] sm:$0xff]
          %v5660 = vld [vmem:[#allocation2 + $0x268] sm:$0xff]
          %v5661 = vld [vmem:[#allocation2 + $0x270] sm:$0xff]
          %v5662 = vld [vmem:[#allocation2 + $0x278] sm:$0xff]
          %v5663 = vld [vmem:[#allocation2 + $0x280] sm:$0xff]
          %v5664 = vld [vmem:[#allocation2 + $0x288] sm:$0xff]
          %v5665 = vld [vmem:[#allocation2 + $0x290] sm:$0xff]
          %v5666 = vld [vmem:[#allocation2 + $0x298] sm:$0xff]
          %v5667 = vld [vmem:[#allocation2 + $0x2a0] sm:$0xff]
          %v5668 = vld [vmem:[#allocation2 + $0x2a8] sm:$0xff]
          %v5669 = vld [vmem:[#allocation2 + $0x2b0] sm:$0xff]
          %v5670 = vld [vmem:[#allocation2 + $0x2b8] sm:$0xff]
          %v5671 = vld [vmem:[#allocation2 + $0x2c0] sm:$0xff]
          %v5672 = vld [vmem:[#allocation2 + $0x2c8] sm:$0xff]
          %v5673 = vld [vmem:[#allocation2 + $0x2d0] sm:$0xff]
          %v5674 = vld [vmem:[#allocation2 + $0x2d8] sm:$0xff]
          %v5675 = vld [vmem:[#allocation2 + $0x2e0] sm:$0xff]
          %v5676 = vld [vmem:[#allocation2 + $0x2e8] sm:$0xff]
          %v5677 = vld [vmem:[#allocation2 + $0x2f0] sm:$0xff]
          %v5678 = vld [vmem:[#allocation2 + $0x2f8] sm:$0xff]
          %v5679 = vld [vmem:[#allocation2 + $0x300] sm:$0xff]
          %v5680 = vld [vmem:[#allocation2 + $0x308] sm:$0xff]
          %v5681 = vld [vmem:[#allocation2 + $0x310] sm:$0xff]
          %v5682 = vld [vmem:[#allocation2 + $0x318] sm:$0xff]
          %v5683 = vld [vmem:[#allocation2 + $0x320] sm:$0xff]
          %v5684 = vld [vmem:[#allocation2 + $0x328] sm:$0xff]
          %v5685 = vld [vmem:[#allocation2 + $0x330] sm:$0xff]
          %v5686 = vld [vmem:[#allocation2 + $0x338] sm:$0xff]
          %v5687 = vld [vmem:[#allocation2 + $0x340] sm:$0xff]
          %v5688 = vld [vmem:[#allocation2 + $0x348] sm:$0xff]
          %v5689 = vld [vmem:[#allocation2 + $0x350] sm:$0xff]
          %v5690 = vld [vmem:[#allocation2 + $0x358] sm:$0xff]
          %v5691 = vld [vmem:[#allocation2 + $0x360] sm:$0xff]
          %v5692 = vld [vmem:[#allocation2 + $0x368] sm:$0xff]
          %v5693 = vld [vmem:[#allocation2 + $0x370] sm:$0xff]
          %v5694 = vld [vmem:[#allocation2 + $0x378] sm:$0xff]
          %v5695 = vld [vmem:[#allocation2 + $0x380] sm:$0xff]
          %v5696 = vld [vmem:[#allocation2 + $0x388] sm:$0xff]
          %v5697 = vld [vmem:[#allocation2 + $0x390] sm:$0xff]
          %v5698 = vld [vmem:[#allocation2 + $0x398] sm:$0xff]
          %v5699 = vld [vmem:[#allocation2 + $0x3a0] sm:$0xff]
          %v5700 = vld [vmem:[#allocation2 + $0x3a8] sm:$0xff]
          %v5701 = vld [vmem:[#allocation2 + $0x3b0] sm:$0xff]
          %v5702 = vld [vmem:[#allocation2 + $0x3b8] sm:$0xff]
          %v5703 = vld [vmem:[#allocation2 + $0x3c0] sm:$0xff]
          %v5704 = vld [vmem:[#allocation2 + $0x3c8] sm:$0xff]
          %v5705 = vld [vmem:[#allocation2 + $0x3d0] sm:$0xff]
          %v5706 = vld [vmem:[#allocation2 + $0x3d8] sm:$0xff]
          %v5707 = vld [vmem:[#allocation2 + $0x3e0] sm:$0xff]
          %v5708 = vld [vmem:[#allocation2 + $0x3e8] sm:$0xff]
          %v5709 = vld [vmem:[#allocation2 + $0x3f0] sm:$0xff]
          %v5710 = vld [vmem:[#allocation2 + $0x3f8] sm:$0xff]
          %v5711 = vld [vmem:[%s2] sm:$0x1]
          %v5713 = vlaneseq
          %v5714 = vshrl.u32 %v5713, 7
          %v5715 = vsub.s32 0, %v5714
          %v5716 = vrot.slane %v5711, %v5715
          %v5718 = vadd.f32 %v5583, %v5716
          %v5719 = vadd.f32 %v5584, %v5716
          %v5720 = vadd.f32 %v5585, %v5716
          %v5721 = vadd.f32 %v5586, %v5716
          %v5722 = vadd.f32 %v5587, %v5716
          %v5723 = vadd.f32 %v5588, %v5716
          %v5724 = vadd.f32 %v5589, %v5716
          %v5725 = vadd.f32 %v5590, %v5716
          %v5726 = vadd.f32 %v5591, %v5716
          %v5727 = vadd.f32 %v5592, %v5716
          %v5728 = vadd.f32 %v5593, %v5716
          %v5729 = vadd.f32 %v5594, %v5716
          %v5730 = vadd.f32 %v5595, %v5716
          %v5731 = vadd.f32 %v5596, %v5716
          %v5732 = vadd.f32 %v5597, %v5716
          %v5733 = vadd.f32 %v5598, %v5716
          %v5734 = vadd.f32 %v5599, %v5716
          %v5735 = vadd.f32 %v5600, %v5716
          %v5736 = vadd.f32 %v5601, %v5716
          %v5737 = vadd.f32 %v5602, %v5716
          %v5738 = vadd.f32 %v5603, %v5716
          %v5739 = vadd.f32 %v5604, %v5716
          %v5740 = vadd.f32 %v5605, %v5716
          %v5741 = vadd.f32 %v5606, %v5716
          %v5742 = vadd.f32 %v5607, %v5716
          %v5743 = vadd.f32 %v5608, %v5716
          %v5744 = vadd.f32 %v5609, %v5716
          %v5745 = vadd.f32 %v5610, %v5716
          %v5746 = vadd.f32 %v5611, %v5716
          %v5747 = vadd.f32 %v5612, %v5716
          %v5748 = vadd.f32 %v5613, %v5716
          %v5749 = vadd.f32 %v5614, %v5716
          %v5750 = vadd.f32 %v5615, %v5716
          %v5751 = vadd.f32 %v5616, %v5716
          %v5752 = vadd.f32 %v5617, %v5716
          %v5753 = vadd.f32 %v5618, %v5716
          %v5754 = vadd.f32 %v5619, %v5716
          %v5755 = vadd.f32 %v5620, %v5716
          %v5756 = vadd.f32 %v5621, %v5716
          %v5757 = vadd.f32 %v5622, %v5716
          %v5758 = vadd.f32 %v5623, %v5716
          %v5759 = vadd.f32 %v5624, %v5716
          %v5760 = vadd.f32 %v5625, %v5716
          %v5761 = vadd.f32 %v5626, %v5716
          %v5762 = vadd.f32 %v5627, %v5716
          %v5763 = vadd.f32 %v5628, %v5716
          %v5764 = vadd.f32 %v5629, %v5716
          %v5765 = vadd.f32 %v5630, %v5716
          %v5766 = vadd.f32 %v5631, %v5716
          %v5767 = vadd.f32 %v5632, %v5716
          %v5768 = vadd.f32 %v5633, %v5716
          %v5769 = vadd.f32 %v5634, %v5716
          %v5770 = vadd.f32 %v5635, %v5716
          %v5771 = vadd.f32 %v5636, %v5716
          %v5772 = vadd.f32 %v5637, %v5716
          %v5773 = vadd.f32 %v5638, %v5716
          %v5774 = vadd.f32 %v5639, %v5716
          %v5775 = vadd.f32 %v5640, %v5716
          %v5776 = vadd.f32 %v5641, %v5716
          %v5777 = vadd.f32 %v5642, %v5716
          %v5778 = vadd.f32 %v5643, %v5716
          %v5779 = vadd.f32 %v5644, %v5716
          %v5780 = vadd.f32 %v5645, %v5716
          %v5781 = vadd.f32 %v5646, %v5716
          %v5782 = vadd.f32 %v5647, %v5716
          %v5783 = vadd.f32 %v5648, %v5716
          %v5784 = vadd.f32 %v5649, %v5716
          %v5785 = vadd.f32 %v5650, %v5716
          %v5786 = vadd.f32 %v5651, %v5716
          %v5787 = vadd.f32 %v5652, %v5716
          %v5788 = vadd.f32 %v5653, %v5716
          %v5789 = vadd.f32 %v5654, %v5716
          %v5790 = vadd.f32 %v5655, %v5716
          %v5791 = vadd.f32 %v5656, %v5716
          %v5792 = vadd.f32 %v5657, %v5716
          %v5793 = vadd.f32 %v5658, %v5716
          %v5794 = vadd.f32 %v5659, %v5716
          %v5795 = vadd.f32 %v5660, %v5716
          %v5796 = vadd.f32 %v5661, %v5716
          %v5797 = vadd.f32 %v5662, %v5716
          %v5798 = vadd.f32 %v5663, %v5716
          %v5799 = vadd.f32 %v5664, %v5716
          %v5800 = vadd.f32 %v5665, %v5716
          %v5801 = vadd.f32 %v5666, %v5716
          %v5802 = vadd.f32 %v5667, %v5716
          %v5803 = vadd.f32 %v5668, %v5716
          %v5804 = vadd.f32 %v5669, %v5716
          %v5805 = vadd.f32 %v5670, %v5716
          %v5806 = vadd.f32 %v5671, %v5716
          %v5807 = vadd.f32 %v5672, %v5716
          %v5808 = vadd.f32 %v5673, %v5716
          %v5809 = vadd.f32 %v5674, %v5716
          %v5810 = vadd.f32 %v5675, %v5716
          %v5811 = vadd.f32 %v5676, %v5716
          %v5812 = vadd.f32 %v5677, %v5716
          %v5813 = vadd.f32 %v5678, %v5716
          %v5814 = vadd.f32 %v5679, %v5716
          %v5815 = vadd.f32 %v5680, %v5716
          %v5816 = vadd.f32 %v5681, %v5716
          %v5817 = vadd.f32 %v5682, %v5716
          %v5818 = vadd.f32 %v5683, %v5716
          %v5819 = vadd.f32 %v5684, %v5716
          %v5820 = vadd.f32 %v5685, %v5716
          %v5821 = vadd.f32 %v5686, %v5716
          %v5822 = vadd.f32 %v5687, %v5716
          %v5823 = vadd.f32 %v5688, %v5716
          %v5824 = vadd.f32 %v5689, %v5716
          %v5825 = vadd.f32 %v5690, %v5716
          %v5826 = vadd.f32 %v5691, %v5716
          %v5827 = vadd.f32 %v5692, %v5716
          %v5828 = vadd.f32 %v5693, %v5716
          %v5829 = vadd.f32 %v5694, %v5716
          %v5830 = vadd.f32 %v5695, %v5716
          %v5831 = vadd.f32 %v5696, %v5716
          %v5832 = vadd.f32 %v5697, %v5716
          %v5833 = vadd.f32 %v5698, %v5716
          %v5834 = vadd.f32 %v5699, %v5716
          %v5835 = vadd.f32 %v5700, %v5716
          %v5836 = vadd.f32 %v5701, %v5716
          %v5837 = vadd.f32 %v5702, %v5716
          %v5838 = vadd.f32 %v5703, %v5716
          %v5839 = vadd.f32 %v5704, %v5716
          %v5840 = vadd.f32 %v5705, %v5716
          %v5841 = vadd.f32 %v5706, %v5716
          %v5842 = vadd.f32 %v5707, %v5716
          %v5843 = vadd.f32 %v5708, %v5716
          %v5844 = vadd.f32 %v5709, %v5716
          %v5845 = vadd.f32 %v5710, %v5716
          %5846 = vst.msk [vmem:[%s212] sm:$0xff] %vm5450, %v5718
          %5847 = vst.msk [vmem:[%s212 + $0x8] sm:$0xff] %vm5450, %v5719
          %5848 = vst.msk [vmem:[%s212 + $0x10] sm:$0xff] %vm5450, %v5720
          %5849 = vst.msk [vmem:[%s212 + $0x18] sm:$0xff] %vm5450, %v5721
          %5850 = vst.msk [vmem:[%s212 + $0x20] sm:$0xff] %vm5450, %v5722
          %5851 = vst.msk [vmem:[%s212 + $0x28] sm:$0xff] %vm5450, %v5723
          %5852 = vst.msk [vmem:[%s212 + $0x30] sm:$0xff] %vm5450, %v5724
          %5853 = vst.msk [vmem:[%s212 + $0x38] sm:$0xff] %vm5450, %v5725
          %5854 = vst.msk [vmem:[%s212 + $0x40] sm:$0xff] %vm5450, %v5726
          %5855 = vst.msk [vmem:[%s212 + $0x48] sm:$0xff] %vm5450, %v5727
          %5856 = vst.msk [vmem:[%s212 + $0x50] sm:$0xff] %vm5450, %v5728
          %5857 = vst.msk [vmem:[%s212 + $0x58] sm:$0xff] %vm5450, %v5729
          %5858 = vst.msk [vmem:[%s212 + $0x60] sm:$0xff] %vm5450, %v5730
          %5859 = vst.msk [vmem:[%s212 + $0x68] sm:$0xff] %vm5450, %v5731
          %5860 = vst.msk [vmem:[%s212 + $0x70] sm:$0xff] %vm5450, %v5732
          %5861 = vst.msk [vmem:[%s212 + $0x78] sm:$0xff] %vm5450, %v5733
          %5862 = vst.msk [vmem:[%s212 + $0x80] sm:$0xff] %vm5450, %v5734
          %5863 = vst.msk [vmem:[%s212 + $0x88] sm:$0xff] %vm5450, %v5735
          %5864 = vst.msk [vmem:[%s212 + $0x90] sm:$0xff] %vm5450, %v5736
          %5865 = vst.msk [vmem:[%s212 + $0x98] sm:$0xff] %vm5450, %v5737
          %5866 = vst.msk [vmem:[%s212 + $0xa0] sm:$0xff] %vm5450, %v5738
          %5867 = vst.msk [vmem:[%s212 + $0xa8] sm:$0xff] %vm5450, %v5739
          %5868 = vst.msk [vmem:[%s212 + $0xb0] sm:$0xff] %vm5450, %v5740
          %5869 = vst.msk [vmem:[%s212 + $0xb8] sm:$0xff] %vm5450, %v5741
          %5870 = vst.msk [vmem:[%s212 + $0xc0] sm:$0xff] %vm5450, %v5742
          %5871 = vst.msk [vmem:[%s212 + $0xc8] sm:$0xff] %vm5450, %v5743
          %5872 = vst.msk [vmem:[%s212 + $0xd0] sm:$0xff] %vm5450, %v5744
          %5873 = vst.msk [vmem:[%s212 + $0xd8] sm:$0xff] %vm5450, %v5745
          %5874 = vst.msk [vmem:[%s212 + $0xe0] sm:$0xff] %vm5450, %v5746
          %5875 = vst.msk [vmem:[%s212 + $0xe8] sm:$0xff] %vm5450, %v5747
          %5876 = vst.msk [vmem:[%s212 + $0xf0] sm:$0xff] %vm5450, %v5748
          %5877 = vst.msk [vmem:[%s212 + $0xf8] sm:$0xff] %vm5450, %v5749
          %5878 = vst.msk [vmem:[%s212 + $0x100] sm:$0xff] %vm5450, %v5750
          %5879 = vst.msk [vmem:[%s212 + $0x108] sm:$0xff] %vm5450, %v5751
          %5880 = vst.msk [vmem:[%s212 + $0x110] sm:$0xff] %vm5450, %v5752
          %5881 = vst.msk [vmem:[%s212 + $0x118] sm:$0xff] %vm5450, %v5753
          %5882 = vst.msk [vmem:[%s212 + $0x120] sm:$0xff] %vm5450, %v5754
          %5883 = vst.msk [vmem:[%s212 + $0x128] sm:$0xff] %vm5450, %v5755
          %5884 = vst.msk [vmem:[%s212 + $0x130] sm:$0xff] %vm5450, %v5756
          %5885 = vst.msk [vmem:[%s212 + $0x138] sm:$0xff] %vm5450, %v5757
          %5886 = vst.msk [vmem:[%s212 + $0x140] sm:$0xff] %vm5450, %v5758
          %5887 = vst.msk [vmem:[%s212 + $0x148] sm:$0xff] %vm5450, %v5759
          %5888 = vst.msk [vmem:[%s212 + $0x150] sm:$0xff] %vm5450, %v5760
          %5889 = vst.msk [vmem:[%s212 + $0x158] sm:$0xff] %vm5450, %v5761
          %5890 = vst.msk [vmem:[%s212 + $0x160] sm:$0xff] %vm5450, %v5762
          %5891 = vst.msk [vmem:[%s212 + $0x168] sm:$0xff] %vm5450, %v5763
          %5892 = vst.msk [vmem:[%s212 + $0x170] sm:$0xff] %vm5450, %v5764
          %5893 = vst.msk [vmem:[%s212 + $0x178] sm:$0xff] %vm5450, %v5765
          %5894 = vst.msk [vmem:[%s212 + $0x180] sm:$0xff] %vm5450, %v5766
          %5895 = vst.msk [vmem:[%s212 + $0x188] sm:$0xff] %vm5450, %v5767
          %5896 = vst.msk [vmem:[%s212 + $0x190] sm:$0xff] %vm5450, %v5768
          %5897 = vst.msk [vmem:[%s212 + $0x198] sm:$0xff] %vm5450, %v5769
          %5898 = vst.msk [vmem:[%s212 + $0x1a0] sm:$0xff] %vm5450, %v5770
          %5899 = vst.msk [vmem:[%s212 + $0x1a8] sm:$0xff] %vm5450, %v5771
          %5900 = vst.msk [vmem:[%s212 + $0x1b0] sm:$0xff] %vm5450, %v5772
          %5901 = vst.msk [vmem:[%s212 + $0x1b8] sm:$0xff] %vm5450, %v5773
          %5902 = vst.msk [vmem:[%s212 + $0x1c0] sm:$0xff] %vm5450, %v5774
          %5903 = vst.msk [vmem:[%s212 + $0x1c8] sm:$0xff] %vm5450, %v5775
          %5904 = vst.msk [vmem:[%s212 + $0x1d0] sm:$0xff] %vm5450, %v5776
          %5905 = vst.msk [vmem:[%s212 + $0x1d8] sm:$0xff] %vm5450, %v5777
          %5906 = vst.msk [vmem:[%s212 + $0x1e0] sm:$0xff] %vm5450, %v5778
          %5907 = vst.msk [vmem:[%s212 + $0x1e8] sm:$0xff] %vm5450, %v5779
          %5908 = vst.msk [vmem:[%s212 + $0x1f0] sm:$0xff] %vm5450, %v5780
          %5909 = vst.msk [vmem:[%s212 + $0x1f8] sm:$0xff] %vm5450, %v5781
          %5910 = vst.msk [vmem:[%s212 + $0x200] sm:$0xff] %vm5450, %v5782
          %5911 = vst.msk [vmem:[%s212 + $0x208] sm:$0xff] %vm5450, %v5783
          %5912 = vst.msk [vmem:[%s212 + $0x210] sm:$0xff] %vm5450, %v5784
          %5913 = vst.msk [vmem:[%s212 + $0x218] sm:$0xff] %vm5450, %v5785
          %5914 = vst.msk [vmem:[%s212 + $0x220] sm:$0xff] %vm5450, %v5786
          %5915 = vst.msk [vmem:[%s212 + $0x228] sm:$0xff] %vm5450, %v5787
          %5916 = vst.msk [vmem:[%s212 + $0x230] sm:$0xff] %vm5450, %v5788
          %5917 = vst.msk [vmem:[%s212 + $0x238] sm:$0xff] %vm5450, %v5789
          %5918 = vst.msk [vmem:[%s212 + $0x240] sm:$0xff] %vm5450, %v5790
          %5919 = vst.msk [vmem:[%s212 + $0x248] sm:$0xff] %vm5450, %v5791
          %5920 = vst.msk [vmem:[%s212 + $0x250] sm:$0xff] %vm5450, %v5792
          %5921 = vst.msk [vmem:[%s212 + $0x258] sm:$0xff] %vm5450, %v5793
          %5922 = vst.msk [vmem:[%s212 + $0x260] sm:$0xff] %vm5450, %v5794
          %5923 = vst.msk [vmem:[%s212 + $0x268] sm:$0xff] %vm5450, %v5795
          %5924 = vst.msk [vmem:[%s212 + $0x270] sm:$0xff] %vm5450, %v5796
          %5925 = vst.msk [vmem:[%s212 + $0x278] sm:$0xff] %vm5450, %v5797
          %5926 = vst.msk [vmem:[%s212 + $0x280] sm:$0xff] %vm5450, %v5798
          %5927 = vst.msk [vmem:[%s212 + $0x288] sm:$0xff] %vm5450, %v5799
          %5928 = vst.msk [vmem:[%s212 + $0x290] sm:$0xff] %vm5450, %v5800
          %5929 = vst.msk [vmem:[%s212 + $0x298] sm:$0xff] %vm5450, %v5801
          %5930 = vst.msk [vmem:[%s212 + $0x2a0] sm:$0xff] %vm5450, %v5802
          %5931 = vst.msk [vmem:[%s212 + $0x2a8] sm:$0xff] %vm5450, %v5803
          %5932 = vst.msk [vmem:[%s212 + $0x2b0] sm:$0xff] %vm5450, %v5804
          %5933 = vst.msk [vmem:[%s212 + $0x2b8] sm:$0xff] %vm5450, %v5805
          %5934 = vst.msk [vmem:[%s212 + $0x2c0] sm:$0xff] %vm5450, %v5806
          %5935 = vst.msk [vmem:[%s212 + $0x2c8] sm:$0xff] %vm5450, %v5807
          %5936 = vst.msk [vmem:[%s212 + $0x2d0] sm:$0xff] %vm5450, %v5808
          %5937 = vst.msk [vmem:[%s212 + $0x2d8] sm:$0xff] %vm5450, %v5809
          %5938 = vst.msk [vmem:[%s212 + $0x2e0] sm:$0xff] %vm5450, %v5810
          %5939 = vst.msk [vmem:[%s212 + $0x2e8] sm:$0xff] %vm5450, %v5811
          %5940 = vst.msk [vmem:[%s212 + $0x2f0] sm:$0xff] %vm5450, %v5812
          %5941 = vst.msk [vmem:[%s212 + $0x2f8] sm:$0xff] %vm5450, %v5813
          %5942 = vst.msk [vmem:[%s212 + $0x300] sm:$0xff] %vm5450, %v5814
          %5943 = vst.msk [vmem:[%s212 + $0x308] sm:$0xff] %vm5450, %v5815
          %5944 = vst.msk [vmem:[%s212 + $0x310] sm:$0xff] %vm5450, %v5816
          %5945 = vst.msk [vmem:[%s212 + $0x318] sm:$0xff] %vm5450, %v5817
          %5946 = vst.msk [vmem:[%s212 + $0x320] sm:$0xff] %vm5450, %v5818
          %5947 = vst.msk [vmem:[%s212 + $0x328] sm:$0xff] %vm5450, %v5819
          %5948 = vst.msk [vmem:[%s212 + $0x330] sm:$0xff] %vm5450, %v5820
          %5949 = vst.msk [vmem:[%s212 + $0x338] sm:$0xff] %vm5450, %v5821
          %5950 = vst.msk [vmem:[%s212 + $0x340] sm:$0xff] %vm5450, %v5822
          %5951 = vst.msk [vmem:[%s212 + $0x348] sm:$0xff] %vm5450, %v5823
          %5952 = vst.msk [vmem:[%s212 + $0x350] sm:$0xff] %vm5450, %v5824
          %5953 = vst.msk [vmem:[%s212 + $0x358] sm:$0xff] %vm5450, %v5825
          %5954 = vst.msk [vmem:[%s212 + $0x360] sm:$0xff] %vm5450, %v5826
          %5955 = vst.msk [vmem:[%s212 + $0x368] sm:$0xff] %vm5450, %v5827
          %5956 = vst.msk [vmem:[%s212 + $0x370] sm:$0xff] %vm5450, %v5828
          %5957 = vst.msk [vmem:[%s212 + $0x378] sm:$0xff] %vm5450, %v5829
          %5958 = vst.msk [vmem:[%s212 + $0x380] sm:$0xff] %vm5450, %v5830
          %5959 = vst.msk [vmem:[%s212 + $0x388] sm:$0xff] %vm5450, %v5831
          %5960 = vst.msk [vmem:[%s212 + $0x390] sm:$0xff] %vm5450, %v5832
          %5961 = vst.msk [vmem:[%s212 + $0x398] sm:$0xff] %vm5450, %v5833
          %5962 = vst.msk [vmem:[%s212 + $0x3a0] sm:$0xff] %vm5450, %v5834
          %5963 = vst.msk [vmem:[%s212 + $0x3a8] sm:$0xff] %vm5450, %v5835
          %5964 = vst.msk [vmem:[%s212 + $0x3b0] sm:$0xff] %vm5450, %v5836
          %5965 = vst.msk [vmem:[%s212 + $0x3b8] sm:$0xff] %vm5450, %v5837
          %5966 = vst.msk [vmem:[%s212 + $0x3c0] sm:$0xff] %vm5450, %v5838
          %5967 = vst.msk [vmem:[%s212 + $0x3c8] sm:$0xff] %vm5450, %v5839
          %5968 = vst.msk [vmem:[%s212 + $0x3d0] sm:$0xff] %vm5450, %v5840
          %5969 = vst.msk [vmem:[%s212 + $0x3d8] sm:$0xff] %vm5450, %v5841
          %5970 = vst.msk [vmem:[%s212 + $0x3e0] sm:$0xff] %vm5450, %v5842
          %5971 = vst.msk [vmem:[%s212 + $0x3e8] sm:$0xff] %vm5450, %v5843
          %5972 = vst.msk [vmem:[%s212 + $0x3f0] sm:$0xff] %vm5450, %v5844
          %5973 = vst.msk [vmem:[%s212 + $0x3f8] sm:$0xff] %vm5450, %v5845
        $region40: #{conv3d_3x3x3.1} parent=31 // pred_fallthru
          _
        %s5974 = sand.u32 %s123, 1
        %s5975 = scalar_lea.sflag [#allocation4], %s5974
        %s5976 = sand.u32 %s123, 1
        %s5977 = smul.addr %s5976, 1024
        %s5978 = scalar_lea.vmem [#allocation3], %s5977
        // Predicated region
        $region41: #{conv3d_3x3x3.1} parent=31 // pred_check
          %p5979 = pneg %p133
        $region42: #{conv3d_3x3x3.1} parent=31 // pred_check_branch
          %5981 = sbr.rel (%p5979) target = $region44
        $region43: #{conv3d_3x3x3.1} parent=31 // pred_region
          %s5983 = ssub.s32 16384, 16384
          %5984 = vsyncadd %s5975, %s5983
          %s5985 = smul.addr %s23, 128
          %s5986 = smul.addr %s22, 4096
          %s5987 = sadd.s32 %s5985, %s5986
          %s5988 = smul.addr %s5987, 128
          %s5989 = scalar_lea.hbm %s3, %s5988
          %s5990 = sshll.u32 %s5978, 4
          %s5991 = int_to_ptr.vmem [resolvable:$true] %s5990
          %5996 = dma.vmem_to_hbm [thread:$0]  %s5991, 16384, %s5989, %s5975, 128, 128, 8
        $region44: #{conv3d_3x3x3.1} parent=31 // pred_fallthru
          _
      $region32: #{conv3d_3x3x3.1} parent=5 // pred_fallthru
        _
      %p5997 = scmp.le.s32.totalorder 2, %s12
      // Predicated region
      $region45: #{conv3d_3x3x3.1} parent=5 // pred_check
        %p5998 = pneg %p5997
      $region46: #{conv3d_3x3x3.1} parent=5 // pred_check_branch
        %6000 = sbr.rel (%p5998) target = $region48
      $region47: #{conv3d_3x3x3.1} parent=5 // pred_region
        %s6001 = ssub.s32 %s12, 2
        // Predicated region
        $region49: #{conv3d_3x3x3.1} parent=47 // pred_check
          %p6002 = pneg %p139
        $region50: #{conv3d_3x3x3.1} parent=47 // pred_check_branch
          %6004 = sbr.rel (%p6002) target = $region52
        $region51: #{conv3d_3x3x3.1} parent=47 // pred_region
          %s6005 = sand.u32 %s124, 1
          %s6006 = scalar_lea.sflag [#allocation4], %s6005
          %s6007 = sand.u32 %s124, 1
          %s6008 = smul.addr %s6007, 1024
          %s6009 = scalar_lea.vmem [#allocation3], %s6008
          %6010 = dma.done %s6006, 16384
        $region52: #{conv3d_3x3x3.1} parent=47 // pred_fallthru
          _
      $region48: #{conv3d_3x3x3.1} parent=5 // pred_fallthru
        _
    $region6: #{conv3d_3x3x3.1} parent=1 // loop_footer
      %s16 = sadd.s32 1, %s12
    $region7: #{conv3d_3x3x3.1} parent=1 // loop_footer_branch
      %11 = sbr.rel target = $region3
    $region8: #{conv3d_3x3x3.1} parent=1 // loop_exit
      _
    %6011 = vsyncpa [#allocation4], 1
    %s6012 = scalar_lea.sflag [#allocation4], 1
    %6013 = vsyncpa %s6012, 1

</llo_original>
